<compile_context>
chip_gen: v7x
topology: tpu7x:2x2x1
jax: 0.10.0
libtpu: 0.0.40
codegen_flags: <defaults>
</compile_context>

<pallas_src>
import functools

import numpy as np
import jax
import jax.numpy as jnp
from jax import lax
from jax.experimental import pallas as pl
from jax.experimental.pallas import tpu as pltpu


def _resblock_bcin_kernel(
    x_can_ref,   # (C, Lc)     zero-margined input canvas, channel-major, flat spatial
    ls0_ref,     # (C, 1)      latent_scale[:, 2*layer_id]   (per sample, f32)
    ls1_ref,     # (C, 1)      latent_scale[:, 2*layer_id+1] (per sample, f32)
    dc_ref,      # (1, D)      domain code (per sample, f32)
    w0_ref,      # (K*K, C, C) conv0 per-tap (Cout, Cin) weights (ConvTranspose flip folded)
    w1_ref,      # (K*K, C, C) conv1 per-tap weights
    b0_ref,      # (C, 1)      conv0 bias (f32)
    b1_ref,      # (C, 1)      conv1 bias (f32)
    wbc_ref,     # (2, D)      BCIN W*b rows (norm0, norm1) (f32)
    out_ref,     # (C, L_out)
    *, offsets, Wc, pk, H0, W0, OW, L_mid, L_out, dmax, n0, n1):
    f32 = jnp.float32
    C = out_ref.shape[0]
    x = x_can_ref[...]                      # (C, Lc), matmul staging dtype
    dc = dc_ref[...]
    wbc = wbc_ref[...]

    # ---- validity masks from static geometry (in-kernel iota; no HBM mask streams). ----
    # Row range is a contiguous flat-index range; the column index is decoded with a float
    # reciprocal-multiply + floor (+0.5 keeps it exact under 1-ulp errors; avoids int div).
    one, zero = jnp.float32(1.0), jnp.float32(0.0)

    def col_of(pos_i32):
        pos_f = pos_i32.astype(f32)
        row_f = jnp.floor((pos_f + 0.5) * (1.0 / Wc))
        return pos_f - row_f * float(Wc)

    pos_m = lax.broadcasted_iota(jnp.int32, (1, L_mid), 1)
    col_m = col_of(pos_m)
    mask0 = jnp.where((pos_m >= pk * Wc) & (pos_m < (pk + H0) * Wc)
                      & (col_m > pk - 0.5) & (col_m < pk + W0 - 0.5), one, zero)
    pos_o = lax.broadcasted_iota(jnp.int32, (1, L_out), 1)
    mask1 = jnp.where(col_of(pos_o) < OW - 0.5, one, zero)

    # ---- conv0: per-tap accumulation (channel-major, lane-dense spatial axis). ----
    # NOTE: matmul precision is the Mosaic default; at production contraction depths either
    # pin it or accept bf16 staging explicitly (operands are already staged wrapper-side).
    acc0 = jnp.zeros((C, L_mid), f32)
    for t, d in enumerate(offsets):
        acc0 = acc0 + jnp.dot(w0_ref[t], x[:, d:d + L_mid], preferred_element_type=f32)
    v0 = (acc0 + b0_ref[...]) * ls0_ref[...]          # conv bias + per-sample latent scale

    # ---- BCIN norm0: per-sample scalar mean / unbiased std over (C,H,W); ReLU. ----
    vm0 = v0 * mask0
    m0 = jnp.sum(vm0, keepdims=True) / n0
    c0 = (vm0 - m0) * mask0                            # mean-shifted (two-pass) variance
    inv0 = lax.rsqrt(jnp.sum(c0 * c0, keepdims=True) / (n0 - 1.0))
    bias0 = jnp.tanh(jnp.sum(dc * wbc[0:1, :], keepdims=True))
    y0 = jnp.maximum(c0 * inv0 + bias0, 0.0) * mask0   # re-zero margins for conv1's taps

    # ---- conv1: same per-tap scheme over the masked conv0 output. ----
    y0s = y0.astype(x.dtype)                           # stage for the MXU (bf16 on v6e/v7x)
    acc1 = jnp.zeros((C, L_out), f32)
    for t, d in enumerate(offsets):
        acc1 = acc1 + jnp.dot(w1_ref[t], y0s[:, d:d + L_out], preferred_element_type=f32)
    v1 = (acc1 + b1_ref[...]) * ls1_ref[...]

    # ---- BCIN norm1 + zero-padded skip (a lane-shifted slice of the same canvas). ----
    vm1 = v1 * mask1
    m1 = jnp.sum(vm1, keepdims=True) / n1
    c1 = (vm1 - m1) * mask1
    inv1 = lax.rsqrt(jnp.sum(c1 * c1, keepdims=True) / (n1 - 1.0))
    bias1 = jnp.tanh(jnp.sum(dc * wbc[1:2, :], keepdims=True))
    skip = x[:, dmax:dmax + L_out].astype(f32)
    out = (c1 * inv1 + bias1) * mask1 + skip           # margin columns end up exactly 0
    out_ref[...] = out.astype(out_ref.dtype)


def resblock_bcin_pallas(x, w0_pt, b0, w1_pt, b1, latent_scale, domain_code,
                         bcin0_W, bcin0_b, bcin1_W, bcin1_b, layer_id=0,
                         matmul_dtype=jnp.bfloat16):
    """ResBlockBCIN forward (stride=1, padding=0, in_channels == out_channels).

    x:            (N, C, H, W)  NCHW, like the PyTorch module
    w0_pt, w1_pt: (C, C, K, K)  PyTorch ConvTranspose2d weight layout (in, out, kh, kw)
    b0, b1:       (C,)          conv biases
    latent_scale: (N, S, C)     with S >= 2*layer_id + 2
    domain_code:  (N, D);  bcin*_W: (D,), bcin*_b: (1,)
    matmul_dtype: staging dtype of the conv operands (bf16 recommended on v6e/v7x MXUs; pass
                  jnp.float32 for exact parity with the f32 reference).  The cast happens
                  wrapper-side, so the kernel never burns VPU passes converting big tensors
                  (v5e has no bf16 VPU path); all statistics / normalization math is f32.
    Returns (N, C, H+2(K-1), W+2(K-1)); the module's latent_scale / domain_code pass-through
    is trivial and left to the caller.
    # TODO(synk): BCIN's instance_norm / batch_norm fallback branches are dead code for this
    # module (both flags are False) and are not implemented.
    """
    N, C, H, W = x.shape
    Cin, Cout, K, _ = w0_pt.shape
    assert Cin == C and Cout == C, "skip connection requires in_channels == out_channels"
    assert latent_scale.shape[1] >= 2 * layer_id + 2
    D = domain_code.shape[1]
    f32 = jnp.float32

    pk = K - 1                                 # spatial growth per transposed conv
    grow = 2 * pk                              # total growth after the two convs
    OH, OW = H + grow, W + grow                # final output spatial size
    H0, W0 = H + pk, W + pk                    # conv0 output spatial size

    # flat-spatial canvas geometry (fixed row stride Wc, zero margins covering all taps)
    Wc = W + 2 * grow
    L_out = OH * Wc                            # output slab: rows [0, OH), all Wc columns
    dmax = pk * (Wc + 1)                       # largest conv tap offset in flat indexing
    L_mid = L_out + dmax                       # conv0-output window that conv1 reads
    Hc = max(H + 2 * grow, -(-(L_mid + dmax) // Wc))   # enough zero rows below x
    Lc = Hc * Wc
    offsets = tuple(kh * Wc + kw for kh in range(K) for kw in range(K))

    # channel-major canvas: x embedded at (grow, grow); pad + reshape only (no transpose).
    # TODO(synk): at production sizes fuse this pad into the producer, or pass x with
    # memory_space=pl.ANY and embed rows via in-kernel DMA to avoid the extra HBM round trip.
    x_can = jnp.pad(x.astype(f32),
                    ((0, 0), (0, 0), (grow, Hc - grow - H), (grow, Wc - grow - W)))
    x_can = x_can.reshape(N, C, Lc).astype(matmul_dtype)

    # ConvTranspose2d(stride=1, pad=0) == full correlation with the spatially flipped kernel.
    # Per-tap (Cout, Cin) matrices, staged wrapper-side in matmul_dtype.
    def conv_taps(w_pt):
        w = jnp.transpose(w_pt.astype(f32), (2, 3, 1, 0))[::-1, ::-1]   # (K,K,Cout,Cin) flipped
        return w.reshape(K * K, Cout, Cin).astype(matmul_dtype)
    w0_taps = conv_taps(w0_pt)
    w1_taps = conv_taps(w1_pt)

    ls0 = latent_scale[:, 2 * layer_id, :].astype(f32).reshape(N, C, 1)
    ls1 = latent_scale[:, 2 * layer_id + 1, :].astype(f32).reshape(N, C, 1)
    dc = domain_code.astype(f32).reshape(N, 1, D)
    wbc = jnp.stack([bcin0_W.astype(f32) * bcin0_b.astype(f32)[0],
                     bcin1_W.astype(f32) * bcin1_b.astype(f32)[0]], axis=0)       # (2, D)
    b0c = b0.astype(f32).reshape(C, 1)
    b1c = b1.astype(f32).reshape(C, 1)

    kernel = functools.partial(
        _resblock_bcin_kernel, offsets=offsets, Wc=Wc, pk=pk, H0=H0, W0=W0, OW=OW,
        L_mid=L_mid, L_out=L_out, dmax=dmax,
        n0=float(C * H0 * W0), n1=float(C * OH * OW))

    mm_bytes = jnp.dtype(matmul_dtype).itemsize
    cost = pl.CostEstimate(
        flops=int(2 * N * C * C * K * K * (L_mid + L_out)),
        transcendentals=int(4 * N),
        bytes_accessed=int(N * C * Lc * mm_bytes
                           + N * C * L_out * jnp.dtype(x.dtype).itemsize
                           + 2 * K * K * C * C * mm_bytes))

    # NOTE(production sizing, v7x 64 MiB VMEM): add an explicit
    # pltpu.CompilerParams(vmem_limit_bytes=...) budget, single-buffer the grid-invariant
    # weight/bias specs (pipeline_mode=pl.Buffered(1)) or keep them VMEM-resident, and split
    # each sample into >= 3 grid steps per core (spatial row bands + two-pass stats) so the
    # BlockSpec pipeline has a next block to prefetch.  Unnecessary at this toy size.
    out_flat = pl.pallas_call(
        kernel,
        out_shape=jax.ShapeDtypeStruct((N, C, L_out), x.dtype),
        grid_spec=pltpu.PrefetchScalarGridSpec(
            num_scalar_prefetch=0,
            grid=(N,),                         # one sample per grid step
            in_specs=[
                pl.BlockSpec((pl.Squeezed(), C, Lc), lambda n: (n, 0, 0)),      # x canvas
                pl.BlockSpec((pl.Squeezed(), C, 1), lambda n: (n, 0, 0)),       # latent scale 0
                pl.BlockSpec((pl.Squeezed(), C, 1), lambda n: (n, 0, 0)),       # latent scale 1
                pl.BlockSpec((pl.Squeezed(), 1, D), lambda n: (n, 0, 0)),       # domain code
                pl.BlockSpec((K * K, C, C), lambda n: (0, 0, 0)),               # conv0 taps
                pl.BlockSpec((K * K, C, C), lambda n: (0, 0, 0)),               # conv1 taps
                pl.BlockSpec((C, 1), lambda n: (0, 0)),                         # conv0 bias
                pl.BlockSpec((C, 1), lambda n: (0, 0)),                         # conv1 bias
                pl.BlockSpec((2, D), lambda n: (0, 0)),                         # BCIN W*b
            ],
            out_specs=pl.BlockSpec((pl.Squeezed(), C, L_out), lambda n: (n, 0, 0)),
        ),
        compiler_params=pltpu.CompilerParams(dimension_semantics=("parallel",)),
        cost_estimate=cost,
    )(x_can, ls0, ls1, dc, w0_taps, w1_taps, b0c, b1c, wbc)

    # lane-dense (C, OH*Wc) slab -> NCHW via reshape + column crop only (no transpose);
    # margin columns are exactly zero in out_flat (masked before the skip add).
    return out_flat.reshape(N, C, OH, Wc)[:, :, :, :OW]


def resblock_bcin_reference(x, w0_pt, b0, w1_pt, b1, latent_scale, domain_code,
                            bcin0_W, bcin0_b, bcin1_W, bcin1_b, layer_id=0):
    """Pure-JAX mirror of the PyTorch ResBlockBCIN forward (stride=1, padding=0)."""
    f32 = jnp.float32
    x = x.astype(f32)

    def conv_transpose(inp, w_pt, b):
        K = w_pt.shape[2]
        w_hwio = jnp.transpose(w_pt.astype(f32), (2, 3, 0, 1))[::-1, ::-1, :, :]
        y = lax.conv_general_dilated(
            jnp.transpose(inp, (0, 2, 3, 1)), w_hwio, (1, 1),
            padding=[(K - 1, K - 1), (K - 1, K - 1)],
            dimension_numbers=("NHWC", "HWIO", "NHWC"),
            precision=lax.Precision.HIGHEST)
        y = y + b.astype(f32)[None, None, None, :]
        return jnp.transpose(y, (0, 3, 1, 2))

    def bcin(y, dcode, Wb, bb):
        std = jnp.sqrt(jnp.var(y, axis=(1, 2, 3), ddof=1))      # torch.var is unbiased, no eps
        mean = jnp.mean(y, axis=(1, 2, 3))
        bias = jnp.tanh(jnp.sum(dcode.astype(f32) * Wb.astype(f32)[None, :], axis=1)
                        * bb.astype(f32)[0])
        return (y - mean[:, None, None, None]) / std[:, None, None, None] \
            + bias[:, None, None, None]

    y = conv_transpose(x, w0_pt, b0)
    y = y * latent_scale[:, 2 * layer_id, :].astype(f32)[:, :, None, None]
    y = bcin(y, domain_code, bcin0_W, bcin0_b)
    y = jnp.maximum(y, 0.0)
    y = conv_transpose(y, w1_pt, b1)
    y = y * latent_scale[:, 2 * layer_id + 1, :].astype(f32)[:, :, None, None]
    y = bcin(y, domain_code, bcin1_W, bcin1_b)
    pad = (y.shape[2] - x.shape[2]) // 2
    skip = jnp.pad(x, ((0, 0), (0, 0), (pad, pad), (pad, pad)))
    return y + skip


if __name__ == "__main__":
    N, C, H, W, K, D = 2, 4, 16, 16, 3, 10
    key = jax.random.PRNGKey(0)
    ks = jax.random.split(key, 11)

    x = jax.random.normal(ks[0], (N, C, H, W), dtype=jnp.float32)
    w0 = jax.random.normal(ks[1], (C, C, K, K), dtype=jnp.float32) * 0.1   # ConvTranspose2d layout
    b0 = jax.random.normal(ks[2], (C,), dtype=jnp.float32) * 0.1
    w1 = jax.random.normal(ks[3], (C, C, K, K), dtype=jnp.float32) * 0.1
    b1 = jax.random.normal(ks[4], (C,), dtype=jnp.float32) * 0.1
    latent_scale = jax.random.uniform(ks[5], (N, 2, C), dtype=jnp.float32, minval=0.5, maxval=1.5)
    domain_code = jax.random.normal(ks[6], (N, D), dtype=jnp.float32)
    bcin0_W = jax.random.uniform(ks[7], (D,), dtype=jnp.float32)           # torch.rand-like init
    bcin0_b = jax.random.uniform(ks[8], (1,), dtype=jnp.float32)
    bcin1_W = jax.random.uniform(ks[9], (D,), dtype=jnp.float32)
    bcin1_b = jax.random.uniform(ks[10], (1,), dtype=jnp.float32)

    args = (x, w0, b0, w1, b1, latent_scale, domain_code, bcin0_W, bcin0_b, bcin1_W, bcin1_b)

    ref = jax.block_until_ready(resblock_bcin_reference(*args))

    # exact-parity path: f32 matmul staging, tight tolerance
    out_f32 = jax.block_until_ready(resblock_bcin_pallas(*args, matmul_dtype=jnp.float32))
    assert out_f32.shape == (N, C, H + 2 * (K - 1), W + 2 * (K - 1)), out_f32.shape
    np.testing.assert_allclose(np.asarray(out_f32), np.asarray(ref), rtol=5e-4, atol=5e-4)

    # bf16 MXU-staging path (recommended on v6e/v7x): loose tolerance by construction
    out_bf16 = jax.block_until_ready(resblock_bcin_pallas(*args, matmul_dtype=jnp.bfloat16))
    np.testing.assert_allclose(np.asarray(out_bf16), np.asarray(ref), rtol=2e-2, atol=1e-1)

    print("KERNEL_OK")
</pallas_src>

<mosaic_0001>
module attributes {stable_mosaic.version = 11 : i64} {
  func.func @_resblock_bcin_kernel(%arg0: i32, %arg1: memref<1x4x600xf32, #tpu.memory_space<vmem>>, %arg2: memref<1x4x1xf32, #tpu.memory_space<vmem>>, %arg3: memref<1x4x1xf32, #tpu.memory_space<vmem>>, %arg4: memref<1x1x10xf32, #tpu.memory_space<vmem>>, %arg5: memref<9x4x4xf32, #tpu.memory_space<vmem>>, %arg6: memref<9x4x4xf32, #tpu.memory_space<vmem>>, %arg7: memref<4x1xf32, #tpu.memory_space<vmem>>, %arg8: memref<4x1xf32, #tpu.memory_space<vmem>>, %arg9: memref<2x10xf32, #tpu.memory_space<vmem>>, %arg10: memref<1x4x480xf32, #tpu.memory_space<vmem>>) attributes {dimension_semantics = [#tpu.dimension_semantics<parallel>], iteration_bounds = array<i64: 2>, scalar_prefetch = 0 : i64, scratch_operands = 0 : i64, tpu.core_type = #tpu.core_type<tc>, window_params = [{transform_indices = @transform_0, window_bounds = array<i64: 1, 4, 600>}, {transform_indices = @transform_1, window_bounds = array<i64: 1, 4, 1>}, {transform_indices = @transform_2, window_bounds = array<i64: 1, 4, 1>}, {transform_indices = @transform_3, window_bounds = array<i64: 1, 1, 10>}, {pipeline_mode = #tpu.pipeline_mode<synchronous>, transform_indices = @transform_4, window_bounds = array<i64: 9, 4, 4>}, {pipeline_mode = #tpu.pipeline_mode<synchronous>, transform_indices = @transform_5, window_bounds = array<i64: 9, 4, 4>}, {pipeline_mode = #tpu.pipeline_mode<synchronous>, transform_indices = @transform_6, window_bounds = array<i64: 4, 1>}, {pipeline_mode = #tpu.pipeline_mode<synchronous>, transform_indices = @transform_7, window_bounds = array<i64: 4, 1>}, {pipeline_mode = #tpu.pipeline_mode<synchronous>, transform_indices = @transform_8, window_bounds = array<i64: 2, 10>}, {transform_indices = @transform_9, window_bounds = array<i64: 1, 4, 480>}]} {
    %c0 = arith.constant 0 : index
    %c0_0 = arith.constant 0 : index
    %c0_1 = arith.constant 0 : index
    %0 = vector.load %arg1[%c0, %c0_0, %c0_1] : memref<1x4x600xf32, #tpu.memory_space<vmem>>, vector<1x4x600xf32>
    %1 = vector.shape_cast %0 : vector<1x4x600xf32> to vector<4x600xf32>
    %c0_2 = arith.constant 0 : index
    %c0_3 = arith.constant 0 : index
    %c0_4 = arith.constant 0 : index
    %2 = vector.load %arg4[%c0_2, %c0_3, %c0_4] : memref<1x1x10xf32, #tpu.memory_space<vmem>>, vector<1x1x10xf32>
    %3 = vector.shape_cast %2 : vector<1x1x10xf32> to vector<1x10xf32>
    %c0_5 = arith.constant 0 : index
    %c0_6 = arith.constant 0 : index
    %4 = vector.load %arg9[%c0_5, %c0_6] : memref<2x10xf32, #tpu.memory_space<vmem>>, vector<2x10xf32>
    %5 = tpu.iota {dimensions = array<i32: 1>} : vector<1x530xi32>
    %6 = arith.sitofp %5 : vector<1x530xi32> to vector<1x530xf32>
    %cst = arith.constant 5.000000e-01 : f32
    %7 = vector.broadcast %cst : f32 to vector<1x530xf32>
    %8 = arith.addf %6, %7 : vector<1x530xf32>
    %cst_7 = arith.constant 0.0416666679 : f32
    %9 = vector.broadcast %cst_7 : f32 to vector<1x530xf32>
    %10 = arith.mulf %8, %9 : vector<1x530xf32>
    %11 = math.floor %10 : vector<1x530xf32>
    %cst_8 = arith.constant 2.400000e+01 : f32
    %12 = vector.broadcast %cst_8 : f32 to vector<1x530xf32>
    %13 = arith.mulf %11, %12 : vector<1x530xf32>
    %14 = arith.subf %6, %13 : vector<1x530xf32>
    %c48_i32 = arith.constant 48 : i32
    %15 = vector.broadcast %c48_i32 : i32 to vector<1x530xi32>
    %16 = arith.cmpi sge, %5, %15 : vector<1x530xi32>
    %c480_i32 = arith.constant 480 : i32
    %17 = vector.broadcast %c480_i32 : i32 to vector<1x530xi32>
    %18 = arith.cmpi slt, %5, %17 : vector<1x530xi32>
    %19 = arith.andi %16, %18 : vector<1x530xi1>
    %cst_9 = arith.constant 1.500000e+00 : f32
    %20 = vector.broadcast %cst_9 : f32 to vector<1x530xf32>
    %21 = arith.cmpf ogt, %14, %20 : vector<1x530xf32>
    %22 = arith.andi %19, %21 : vector<1x530xi1>
    %cst_10 = arith.constant 1.950000e+01 : f32
    %23 = vector.broadcast %cst_10 : f32 to vector<1x530xf32>
    %24 = arith.cmpf olt, %14, %23 : vector<1x530xf32>
    %25 = arith.andi %22, %24 : vector<1x530xi1>
    %cst_11 = arith.constant 1.000000e+00 : f32
    %cst_12 = arith.constant 0.000000e+00 : f32
    %26 = vector.broadcast %cst_11 : f32 to vector<1x530xf32>
    %27 = vector.broadcast %cst_12 : f32 to vector<1x530xf32>
    %28 = arith.select %25, %26, %27 : vector<1x530xi1>, vector<1x530xf32>
    %29 = tpu.iota {dimensions = array<i32: 1>} : vector<1x480xi32>
    %30 = arith.sitofp %29 : vector<1x480xi32> to vector<1x480xf32>
    %cst_13 = arith.constant 5.000000e-01 : f32
    %31 = vector.broadcast %cst_13 : f32 to vector<1x480xf32>
    %32 = arith.addf %30, %31 : vector<1x480xf32>
    %cst_14 = arith.constant 0.0416666679 : f32
    %33 = vector.broadcast %cst_14 : f32 to vector<1x480xf32>
    %34 = arith.mulf %32, %33 : vector<1x480xf32>
    %35 = math.floor %34 : vector<1x480xf32>
    %cst_15 = arith.constant 2.400000e+01 : f32
    %36 = vector.broadcast %cst_15 : f32 to vector<1x480xf32>
    %37 = arith.mulf %35, %36 : vector<1x480xf32>
    %38 = arith.subf %30, %37 : vector<1x480xf32>
    %cst_16 = arith.constant 1.950000e+01 : f32
    %39 = vector.broadcast %cst_16 : f32 to vector<1x480xf32>
    %40 = arith.cmpf olt, %38, %39 : vector<1x480xf32>
    %cst_17 = arith.constant 1.000000e+00 : f32
    %cst_18 = arith.constant 0.000000e+00 : f32
    %41 = vector.broadcast %cst_17 : f32 to vector<1x480xf32>
    %42 = vector.broadcast %cst_18 : f32 to vector<1x480xf32>
    %43 = arith.select %40, %41, %42 : vector<1x480xi1>, vector<1x480xf32>
    %cst_19 = arith.constant 0.000000e+00 : f32
    %44 = vector.broadcast %cst_19 : f32 to vector<4x530xf32>
    %c0_20 = arith.constant 0 : index
    %c0_21 = arith.constant 0 : index
    %c0_22 = arith.constant 0 : index
    %45 = vector.load %arg5[%c0_20, %c0_21, %c0_22] : memref<9x4x4xf32, #tpu.memory_space<vmem>>, vector<1x4x4xf32>
    %46 = vector.shape_cast %45 : vector<1x4x4xf32> to vector<4x4xf32>
    %47 = vector.extract_strided_slice %1 {offsets = [0, 0], sizes = [4, 530], strides = [1, 1]} : vector<4x600xf32> to vector<4x530xf32>
    %cst_23 = arith.constant dense<0.000000e+00> : vector<4x530xf32>
    %48 = tpu.matmul %46, %47, %cst_23 {dimension_numbers = #tpu.dot_dimension_numbers<[1], [0], [0], [1], [0, 0, 1, 1], [], []>} : vector<4x4xf32>, vector<4x530xf32>, vector<4x530xf32> -> vector<4x530xf32>
    %49 = arith.addf %44, %48 : vector<4x530xf32>
    %c1 = arith.constant 1 : index
    %c0_24 = arith.constant 0 : index
    %c0_25 = arith.constant 0 : index
    %50 = vector.load %arg5[%c1, %c0_24, %c0_25] : memref<9x4x4xf32, #tpu.memory_space<vmem>>, vector<1x4x4xf32>
    %51 = vector.shape_cast %50 : vector<1x4x4xf32> to vector<4x4xf32>
    %52 = vector.extract_strided_slice %1 {offsets = [0, 1], sizes = [4, 530], strides = [1, 1]} : vector<4x600xf32> to vector<4x530xf32>
    %cst_26 = arith.constant dense<0.000000e+00> : vector<4x530xf32>
    %53 = tpu.matmul %51, %52, %cst_26 {dimension_numbers = #tpu.dot_dimension_numbers<[1], [0], [0], [1], [0, 0, 1, 1], [], []>} : vector<4x4xf32>, vector<4x530xf32>, vector<4x530xf32> -> vector<4x530xf32>
    %54 = arith.addf %49, %53 : vector<4x530xf32>
    %c2 = arith.constant 2 : index
    %c0_27 = arith.constant 0 : index
    %c0_28 = arith.constant 0 : index
    %55 = vector.load %arg5[%c2, %c0_27, %c0_28] : memref<9x4x4xf32, #tpu.memory_space<vmem>>, vector<1x4x4xf32>
    %56 = vector.shape_cast %55 : vector<1x4x4xf32> to vector<4x4xf32>
    %57 = vector.extract_strided_slice %1 {offsets = [0, 2], sizes = [4, 530], strides = [1, 1]} : vector<4x600xf32> to vector<4x530xf32>
    %cst_29 = arith.constant dense<0.000000e+00> : vector<4x530xf32>
    %58 = tpu.matmul %56, %57, %cst_29 {dimension_numbers = #tpu.dot_dimension_numbers<[1], [0], [0], [1], [0, 0, 1, 1], [], []>} : vector<4x4xf32>, vector<4x530xf32>, vector<4x530xf32> -> vector<4x530xf32>
    %59 = arith.addf %54, %58 : vector<4x530xf32>
    %c3 = arith.constant 3 : index
    %c0_30 = arith.constant 0 : index
    %c0_31 = arith.constant 0 : index
    %60 = vector.load %arg5[%c3, %c0_30, %c0_31] : memref<9x4x4xf32, #tpu.memory_space<vmem>>, vector<1x4x4xf32>
    %61 = vector.shape_cast %60 : vector<1x4x4xf32> to vector<4x4xf32>
    %62 = vector.extract_strided_slice %1 {offsets = [0, 24], sizes = [4, 530], strides = [1, 1]} : vector<4x600xf32> to vector<4x530xf32>
    %cst_32 = arith.constant dense<0.000000e+00> : vector<4x530xf32>
    %63 = tpu.matmul %61, %62, %cst_32 {dimension_numbers = #tpu.dot_dimension_numbers<[1], [0], [0], [1], [0, 0, 1, 1], [], []>} : vector<4x4xf32>, vector<4x530xf32>, vector<4x530xf32> -> vector<4x530xf32>
    %64 = arith.addf %59, %63 : vector<4x530xf32>
    %c4 = arith.constant 4 : index
    %c0_33 = arith.constant 0 : index
    %c0_34 = arith.constant 0 : index
    %65 = vector.load %arg5[%c4, %c0_33, %c0_34] : memref<9x4x4xf32, #tpu.memory_space<vmem>>, vector<1x4x4xf32>
    %66 = vector.shape_cast %65 : vector<1x4x4xf32> to vector<4x4xf32>
    %67 = vector.extract_strided_slice %1 {offsets = [0, 25], sizes = [4, 530], strides = [1, 1]} : vector<4x600xf32> to vector<4x530xf32>
    %cst_35 = arith.constant dense<0.000000e+00> : vector<4x530xf32>
    %68 = tpu.matmul %66, %67, %cst_35 {dimension_numbers = #tpu.dot_dimension_numbers<[1], [0], [0], [1], [0, 0, 1, 1], [], []>} : vector<4x4xf32>, vector<4x530xf32>, vector<4x530xf32> -> vector<4x530xf32>
    %69 = arith.addf %64, %68 : vector<4x530xf32>
    %c5 = arith.constant 5 : index
    %c0_36 = arith.constant 0 : index
    %c0_37 = arith.constant 0 : index
    %70 = vector.load %arg5[%c5, %c0_36, %c0_37] : memref<9x4x4xf32, #tpu.memory_space<vmem>>, vector<1x4x4xf32>
    %71 = vector.shape_cast %70 : vector<1x4x4xf32> to vector<4x4xf32>
    %72 = vector.extract_strided_slice %1 {offsets = [0, 26], sizes = [4, 530], strides = [1, 1]} : vector<4x600xf32> to vector<4x530xf32>
    %cst_38 = arith.constant dense<0.000000e+00> : vector<4x530xf32>
    %73 = tpu.matmul %71, %72, %cst_38 {dimension_numbers = #tpu.dot_dimension_numbers<[1], [0], [0], [1], [0, 0, 1, 1], [], []>} : vector<4x4xf32>, vector<4x530xf32>, vector<4x530xf32> -> vector<4x530xf32>
    %74 = arith.addf %69, %73 : vector<4x530xf32>
    %c6 = arith.constant 6 : index
    %c0_39 = arith.constant 0 : index
    %c0_40 = arith.constant 0 : index
    %75 = vector.load %arg5[%c6, %c0_39, %c0_40] : memref<9x4x4xf32, #tpu.memory_space<vmem>>, vector<1x4x4xf32>
    %76 = vector.shape_cast %75 : vector<1x4x4xf32> to vector<4x4xf32>
    %77 = vector.extract_strided_slice %1 {offsets = [0, 48], sizes = [4, 530], strides = [1, 1]} : vector<4x600xf32> to vector<4x530xf32>
    %cst_41 = arith.constant dense<0.000000e+00> : vector<4x530xf32>
    %78 = tpu.matmul %76, %77, %cst_41 {dimension_numbers = #tpu.dot_dimension_numbers<[1], [0], [0], [1], [0, 0, 1, 1], [], []>} : vector<4x4xf32>, vector<4x530xf32>, vector<4x530xf32> -> vector<4x530xf32>
    %79 = arith.addf %74, %78 : vector<4x530xf32>
    %c7 = arith.constant 7 : index
    %c0_42 = arith.constant 0 : index
    %c0_43 = arith.constant 0 : index
    %80 = vector.load %arg5[%c7, %c0_42, %c0_43] : memref<9x4x4xf32, #tpu.memory_space<vmem>>, vector<1x4x4xf32>
    %81 = vector.shape_cast %80 : vector<1x4x4xf32> to vector<4x4xf32>
    %82 = vector.extract_strided_slice %1 {offsets = [0, 49], sizes = [4, 530], strides = [1, 1]} : vector<4x600xf32> to vector<4x530xf32>
    %cst_44 = arith.constant dense<0.000000e+00> : vector<4x530xf32>
    %83 = tpu.matmul %81, %82, %cst_44 {dimension_numbers = #tpu.dot_dimension_numbers<[1], [0], [0], [1], [0, 0, 1, 1], [], []>} : vector<4x4xf32>, vector<4x530xf32>, vector<4x530xf32> -> vector<4x530xf32>
    %84 = arith.addf %79, %83 : vector<4x530xf32>
    %c8 = arith.constant 8 : index
    %c0_45 = arith.constant 0 : index
    %c0_46 = arith.constant 0 : index
    %85 = vector.load %arg5[%c8, %c0_45, %c0_46] : memref<9x4x4xf32, #tpu.memory_space<vmem>>, vector<1x4x4xf32>
    %86 = vector.shape_cast %85 : vector<1x4x4xf32> to vector<4x4xf32>
    %87 = vector.extract_strided_slice %1 {offsets = [0, 50], sizes = [4, 530], strides = [1, 1]} : vector<4x600xf32> to vector<4x530xf32>
    %cst_47 = arith.constant dense<0.000000e+00> : vector<4x530xf32>
    %88 = tpu.matmul %86, %87, %cst_47 {dimension_numbers = #tpu.dot_dimension_numbers<[1], [0], [0], [1], [0, 0, 1, 1], [], []>} : vector<4x4xf32>, vector<4x530xf32>, vector<4x530xf32> -> vector<4x530xf32>
    %89 = arith.addf %84, %88 : vector<4x530xf32>
    %c0_48 = arith.constant 0 : index
    %c0_49 = arith.constant 0 : index
    %90 = vector.load %arg7[%c0_48, %c0_49] : memref<4x1xf32, #tpu.memory_space<vmem>>, vector<4x1xf32>
    %91 = vector.broadcast %90 : vector<4x1xf32> to vector<4x530xf32>
    %92 = arith.addf %89, %91 : vector<4x530xf32>
    %c0_50 = arith.constant 0 : index
    %c0_51 = arith.constant 0 : index
    %c0_52 = arith.constant 0 : index
    %93 = vector.load %arg2[%c0_50, %c0_51, %c0_52] : memref<1x4x1xf32, #tpu.memory_space<vmem>>, vector<1x4x1xf32>
    %94 = vector.shape_cast %93 : vector<1x4x1xf32> to vector<4x1xf32>
    %95 = vector.broadcast %94 : vector<4x1xf32> to vector<4x530xf32>
    %96 = arith.mulf %92, %95 : vector<4x530xf32>
    %97 = vector.broadcast %28 : vector<1x530xf32> to vector<4x530xf32>
    %98 = arith.mulf %96, %97 : vector<4x530xf32>
    %99 = vector.shape_cast %98 : vector<4x530xf32> to vector<1x4x530xf32>
    %cst_53 = arith.constant dense<0.000000e+00> : vector<1xf32>
    %100 = vector.multi_reduction <add>, %99, %cst_53 [1, 2] : vector<1x4x530xf32> to vector<1xf32>
    %101 = vector.shape_cast %100 : vector<1xf32> to vector<1x1x1xf32>
    %102 = vector.extract %101[0, 0, 0] : f32 from vector<1x1x1xf32>
    %103 = vector.broadcast %102 : f32 to vector<1x1xf32>
    %cst_54 = arith.constant 1.296000e+03 : f32
    %104 = vector.broadcast %cst_54 : f32 to vector<1x1xf32>
    %105 = arith.divf %103, %104 : vector<1x1xf32>
    %106 = vector.broadcast %105 : vector<1x1xf32> to vector<4x530xf32>
    %107 = arith.subf %98, %106 : vector<4x530xf32>
    %108 = vector.broadcast %28 : vector<1x530xf32> to vector<4x530xf32>
    %109 = arith.mulf %107, %108 : vector<4x530xf32>
    %110 = arith.mulf %109, %109 : vector<4x530xf32>
    %111 = vector.shape_cast %110 : vector<4x530xf32> to vector<1x4x530xf32>
    %cst_55 = arith.constant dense<0.000000e+00> : vector<1xf32>
    %112 = vector.multi_reduction <add>, %111, %cst_55 [1, 2] : vector<1x4x530xf32> to vector<1xf32>
    %113 = vector.shape_cast %112 : vector<1xf32> to vector<1x1x1xf32>
    %114 = vector.extract %113[0, 0, 0] : f32 from vector<1x1x1xf32>
    %115 = vector.broadcast %114 : f32 to vector<1x1xf32>
    %cst_56 = arith.constant 1.295000e+03 : f32
    %116 = vector.broadcast %cst_56 : f32 to vector<1x1xf32>
    %117 = arith.divf %115, %116 : vector<1x1xf32>
    %118 = math.rsqrt %117 : vector<1x1xf32>
    %119 = vector.extract_strided_slice %4 {offsets = [0, 0], sizes = [1, 10], strides = [1, 1]} : vector<2x10xf32> to vector<1x10xf32>
    %120 = arith.mulf %3, %119 : vector<1x10xf32>
    %121 = vector.shape_cast %120 : vector<1x10xf32> to vector<1x1x10xf32>
    %cst_57 = arith.constant dense<0.000000e+00> : vector<1xf32>
    %122 = vector.multi_reduction <add>, %121, %cst_57 [1, 2] : vector<1x1x10xf32> to vector<1xf32>
    %123 = vector.shape_cast %122 : vector<1xf32> to vector<1x1x1xf32>
    %124 = vector.extract %123[0, 0, 0] : f32 from vector<1x1x1xf32>
    %125 = vector.broadcast %124 : f32 to vector<1x1xf32>
    %126 = math.tanh %125 : vector<1x1xf32>
    %127 = vector.broadcast %118 : vector<1x1xf32> to vector<4x530xf32>
    %128 = arith.mulf %109, %127 : vector<4x530xf32>
    %129 = vector.broadcast %126 : vector<1x1xf32> to vector<4x530xf32>
    %130 = arith.addf %128, %129 : vector<4x530xf32>
    %cst_58 = arith.constant 0.000000e+00 : f32
    %131 = vector.broadcast %cst_58 : f32 to vector<4x530xf32>
    %132 = arith.maximumf %130, %131 : vector<4x530xf32>
    %133 = vector.broadcast %28 : vector<1x530xf32> to vector<4x530xf32>
    %134 = arith.mulf %132, %133 : vector<4x530xf32>
    %cst_59 = arith.constant 0.000000e+00 : f32
    %135 = vector.broadcast %cst_59 : f32 to vector<4x480xf32>
    %c0_60 = arith.constant 0 : index
    %c0_61 = arith.constant 0 : index
    %c0_62 = arith.constant 0 : index
    %136 = vector.load %arg6[%c0_60, %c0_61, %c0_62] : memref<9x4x4xf32, #tpu.memory_space<vmem>>, vector<1x4x4xf32>
    %137 = vector.shape_cast %136 : vector<1x4x4xf32> to vector<4x4xf32>
    %138 = vector.extract_strided_slice %134 {offsets = [0, 0], sizes = [4, 480], strides = [1, 1]} : vector<4x530xf32> to vector<4x480xf32>
    %cst_63 = arith.constant dense<0.000000e+00> : vector<4x480xf32>
    %139 = tpu.matmul %137, %138, %cst_63 {dimension_numbers = #tpu.dot_dimension_numbers<[1], [0], [0], [1], [0, 0, 1, 1], [], []>} : vector<4x4xf32>, vector<4x480xf32>, vector<4x480xf32> -> vector<4x480xf32>
    %140 = arith.addf %135, %139 : vector<4x480xf32>
    %c1_64 = arith.constant 1 : index
    %c0_65 = arith.constant 0 : index
    %c0_66 = arith.constant 0 : index
    %141 = vector.load %arg6[%c1_64, %c0_65, %c0_66] : memref<9x4x4xf32, #tpu.memory_space<vmem>>, vector<1x4x4xf32>
    %142 = vector.shape_cast %141 : vector<1x4x4xf32> to vector<4x4xf32>
    %143 = vector.extract_strided_slice %134 {offsets = [0, 1], sizes = [4, 480], strides = [1, 1]} : vector<4x530xf32> to vector<4x480xf32>
    %cst_67 = arith.constant dense<0.000000e+00> : vector<4x480xf32>
    %144 = tpu.matmul %142, %143, %cst_67 {dimension_numbers = #tpu.dot_dimension_numbers<[1], [0], [0], [1], [0, 0, 1, 1], [], []>} : vector<4x4xf32>, vector<4x480xf32>, vector<4x480xf32> -> vector<4x480xf32>
    %145 = arith.addf %140, %144 : vector<4x480xf32>
    %c2_68 = arith.constant 2 : index
    %c0_69 = arith.constant 0 : index
    %c0_70 = arith.constant 0 : index
    %146 = vector.load %arg6[%c2_68, %c0_69, %c0_70] : memref<9x4x4xf32, #tpu.memory_space<vmem>>, vector<1x4x4xf32>
    %147 = vector.shape_cast %146 : vector<1x4x4xf32> to vector<4x4xf32>
    %148 = vector.extract_strided_slice %134 {offsets = [0, 2], sizes = [4, 480], strides = [1, 1]} : vector<4x530xf32> to vector<4x480xf32>
    %cst_71 = arith.constant dense<0.000000e+00> : vector<4x480xf32>
    %149 = tpu.matmul %147, %148, %cst_71 {dimension_numbers = #tpu.dot_dimension_numbers<[1], [0], [0], [1], [0, 0, 1, 1], [], []>} : vector<4x4xf32>, vector<4x480xf32>, vector<4x480xf32> -> vector<4x480xf32>
    %150 = arith.addf %145, %149 : vector<4x480xf32>
    %c3_72 = arith.constant 3 : index
    %c0_73 = arith.constant 0 : index
    %c0_74 = arith.constant 0 : index
    %151 = vector.load %arg6[%c3_72, %c0_73, %c0_74] : memref<9x4x4xf32, #tpu.memory_space<vmem>>, vector<1x4x4xf32>
    %152 = vector.shape_cast %151 : vector<1x4x4xf32> to vector<4x4xf32>
    %153 = vector.extract_strided_slice %134 {offsets = [0, 24], sizes = [4, 480], strides = [1, 1]} : vector<4x530xf32> to vector<4x480xf32>
    %cst_75 = arith.constant dense<0.000000e+00> : vector<4x480xf32>
    %154 = tpu.matmul %152, %153, %cst_75 {dimension_numbers = #tpu.dot_dimension_numbers<[1], [0], [0], [1], [0, 0, 1, 1], [], []>} : vector<4x4xf32>, vector<4x480xf32>, vector<4x480xf32> -> vector<4x480xf32>
    %155 = arith.addf %150, %154 : vector<4x480xf32>
    %c4_76 = arith.constant 4 : index
    %c0_77 = arith.constant 0 : index
    %c0_78 = arith.constant 0 : index
    %156 = vector.load %arg6[%c4_76, %c0_77, %c0_78] : memref<9x4x4xf32, #tpu.memory_space<vmem>>, vector<1x4x4xf32>
    %157 = vector.shape_cast %156 : vector<1x4x4xf32> to vector<4x4xf32>
    %158 = vector.extract_strided_slice %134 {offsets = [0, 25], sizes = [4, 480], strides = [1, 1]} : vector<4x530xf32> to vector<4x480xf32>
    %cst_79 = arith.constant dense<0.000000e+00> : vector<4x480xf32>
    %159 = tpu.matmul %157, %158, %cst_79 {dimension_numbers = #tpu.dot_dimension_numbers<[1], [0], [0], [1], [0, 0, 1, 1], [], []>} : vector<4x4xf32>, vector<4x480xf32>, vector<4x480xf32> -> vector<4x480xf32>
    %160 = arith.addf %155, %159 : vector<4x480xf32>
    %c5_80 = arith.constant 5 : index
    %c0_81 = arith.constant 0 : index
    %c0_82 = arith.constant 0 : index
    %161 = vector.load %arg6[%c5_80, %c0_81, %c0_82] : memref<9x4x4xf32, #tpu.memory_space<vmem>>, vector<1x4x4xf32>
    %162 = vector.shape_cast %161 : vector<1x4x4xf32> to vector<4x4xf32>
    %163 = vector.extract_strided_slice %134 {offsets = [0, 26], sizes = [4, 480], strides = [1, 1]} : vector<4x530xf32> to vector<4x480xf32>
    %cst_83 = arith.constant dense<0.000000e+00> : vector<4x480xf32>
    %164 = tpu.matmul %162, %163, %cst_83 {dimension_numbers = #tpu.dot_dimension_numbers<[1], [0], [0], [1], [0, 0, 1, 1], [], []>} : vector<4x4xf32>, vector<4x480xf32>, vector<4x480xf32> -> vector<4x480xf32>
    %165 = arith.addf %160, %164 : vector<4x480xf32>
    %c6_84 = arith.constant 6 : index
    %c0_85 = arith.constant 0 : index
    %c0_86 = arith.constant 0 : index
    %166 = vector.load %arg6[%c6_84, %c0_85, %c0_86] : memref<9x4x4xf32, #tpu.memory_space<vmem>>, vector<1x4x4xf32>
    %167 = vector.shape_cast %166 : vector<1x4x4xf32> to vector<4x4xf32>
    %168 = vector.extract_strided_slice %134 {offsets = [0, 48], sizes = [4, 480], strides = [1, 1]} : vector<4x530xf32> to vector<4x480xf32>
    %cst_87 = arith.constant dense<0.000000e+00> : vector<4x480xf32>
    %169 = tpu.matmul %167, %168, %cst_87 {dimension_numbers = #tpu.dot_dimension_numbers<[1], [0], [0], [1], [0, 0, 1, 1], [], []>} : vector<4x4xf32>, vector<4x480xf32>, vector<4x480xf32> -> vector<4x480xf32>
    %170 = arith.addf %165, %169 : vector<4x480xf32>
    %c7_88 = arith.constant 7 : index
    %c0_89 = arith.constant 0 : index
    %c0_90 = arith.constant 0 : index
    %171 = vector.load %arg6[%c7_88, %c0_89, %c0_90] : memref<9x4x4xf32, #tpu.memory_space<vmem>>, vector<1x4x4xf32>
    %172 = vector.shape_cast %171 : vector<1x4x4xf32> to vector<4x4xf32>
    %173 = vector.extract_strided_slice %134 {offsets = [0, 49], sizes = [4, 480], strides = [1, 1]} : vector<4x530xf32> to vector<4x480xf32>
    %cst_91 = arith.constant dense<0.000000e+00> : vector<4x480xf32>
    %174 = tpu.matmul %172, %173, %cst_91 {dimension_numbers = #tpu.dot_dimension_numbers<[1], [0], [0], [1], [0, 0, 1, 1], [], []>} : vector<4x4xf32>, vector<4x480xf32>, vector<4x480xf32> -> vector<4x480xf32>
    %175 = arith.addf %170, %174 : vector<4x480xf32>
    %c8_92 = arith.constant 8 : index
    %c0_93 = arith.constant 0 : index
    %c0_94 = arith.constant 0 : index
    %176 = vector.load %arg6[%c8_92, %c0_93, %c0_94] : memref<9x4x4xf32, #tpu.memory_space<vmem>>, vector<1x4x4xf32>
    %177 = vector.shape_cast %176 : vector<1x4x4xf32> to vector<4x4xf32>
    %178 = vector.extract_strided_slice %134 {offsets = [0, 50], sizes = [4, 480], strides = [1, 1]} : vector<4x530xf32> to vector<4x480xf32>
    %cst_95 = arith.constant dense<0.000000e+00> : vector<4x480xf32>
    %179 = tpu.matmul %177, %178, %cst_95 {dimension_numbers = #tpu.dot_dimension_numbers<[1], [0], [0], [1], [0, 0, 1, 1], [], []>} : vector<4x4xf32>, vector<4x480xf32>, vector<4x480xf32> -> vector<4x480xf32>
    %180 = arith.addf %175, %179 : vector<4x480xf32>
    %c0_96 = arith.constant 0 : index
    %c0_97 = arith.constant 0 : index
    %181 = vector.load %arg8[%c0_96, %c0_97] : memref<4x1xf32, #tpu.memory_space<vmem>>, vector<4x1xf32>
    %182 = vector.broadcast %181 : vector<4x1xf32> to vector<4x480xf32>
    %183 = arith.addf %180, %182 : vector<4x480xf32>
    %c0_98 = arith.constant 0 : index
    %c0_99 = arith.constant 0 : index
    %c0_100 = arith.constant 0 : index
    %184 = vector.load %arg3[%c0_98, %c0_99, %c0_100] : memref<1x4x1xf32, #tpu.memory_space<vmem>>, vector<1x4x1xf32>
    %185 = vector.shape_cast %184 : vector<1x4x1xf32> to vector<4x1xf32>
    %186 = vector.broadcast %185 : vector<4x1xf32> to vector<4x480xf32>
    %187 = arith.mulf %183, %186 : vector<4x480xf32>
    %188 = vector.broadcast %43 : vector<1x480xf32> to vector<4x480xf32>
    %189 = arith.mulf %187, %188 : vector<4x480xf32>
    %190 = vector.shape_cast %189 : vector<4x480xf32> to vector<1x4x480xf32>
    %cst_101 = arith.constant dense<0.000000e+00> : vector<1xf32>
    %191 = vector.multi_reduction <add>, %190, %cst_101 [1, 2] : vector<1x4x480xf32> to vector<1xf32>
    %192 = vector.shape_cast %191 : vector<1xf32> to vector<1x1x1xf32>
    %193 = vector.extract %192[0, 0, 0] : f32 from vector<1x1x1xf32>
    %194 = vector.broadcast %193 : f32 to vector<1x1xf32>
    %cst_102 = arith.constant 1.600000e+03 : f32
    %195 = vector.broadcast %cst_102 : f32 to vector<1x1xf32>
    %196 = arith.divf %194, %195 : vector<1x1xf32>
    %197 = vector.broadcast %196 : vector<1x1xf32> to vector<4x480xf32>
    %198 = arith.subf %189, %197 : vector<4x480xf32>
    %199 = vector.broadcast %43 : vector<1x480xf32> to vector<4x480xf32>
    %200 = arith.mulf %198, %199 : vector<4x480xf32>
    %201 = arith.mulf %200, %200 : vector<4x480xf32>
    %202 = vector.shape_cast %201 : vector<4x480xf32> to vector<1x4x480xf32>
    %cst_103 = arith.constant dense<0.000000e+00> : vector<1xf32>
    %203 = vector.multi_reduction <add>, %202, %cst_103 [1, 2] : vector<1x4x480xf32> to vector<1xf32>
    %204 = vector.shape_cast %203 : vector<1xf32> to vector<1x1x1xf32>
    %205 = vector.extract %204[0, 0, 0] : f32 from vector<1x1x1xf32>
    %206 = vector.broadcast %205 : f32 to vector<1x1xf32>
    %cst_104 = arith.constant 1.599000e+03 : f32
    %207 = vector.broadcast %cst_104 : f32 to vector<1x1xf32>
    %208 = arith.divf %206, %207 : vector<1x1xf32>
    %209 = math.rsqrt %208 : vector<1x1xf32>
    %210 = vector.extract_strided_slice %4 {offsets = [1, 0], sizes = [1, 10], strides = [1, 1]} : vector<2x10xf32> to vector<1x10xf32>
    %211 = arith.mulf %3, %210 : vector<1x10xf32>
    %212 = vector.shape_cast %211 : vector<1x10xf32> to vector<1x1x10xf32>
    %cst_105 = arith.constant dense<0.000000e+00> : vector<1xf32>
    %213 = vector.multi_reduction <add>, %212, %cst_105 [1, 2] : vector<1x1x10xf32> to vector<1xf32>
    %214 = vector.shape_cast %213 : vector<1xf32> to vector<1x1x1xf32>
    %215 = vector.extract %214[0, 0, 0] : f32 from vector<1x1x1xf32>
    %216 = vector.broadcast %215 : f32 to vector<1x1xf32>
    %217 = math.tanh %216 : vector<1x1xf32>
    %218 = vector.extract_strided_slice %1 {offsets = [0, 50], sizes = [4, 480], strides = [1, 1]} : vector<4x600xf32> to vector<4x480xf32>
    %219 = vector.broadcast %209 : vector<1x1xf32> to vector<4x480xf32>
    %220 = arith.mulf %200, %219 : vector<4x480xf32>
    %221 = vector.broadcast %217 : vector<1x1xf32> to vector<4x480xf32>
    %222 = arith.addf %220, %221 : vector<4x480xf32>
    %223 = vector.broadcast %43 : vector<1x480xf32> to vector<4x480xf32>
    %224 = arith.mulf %222, %223 : vector<4x480xf32>
    %225 = arith.addf %224, %218 : vector<4x480xf32>
    %c0_106 = arith.constant 0 : index
    %c0_107 = arith.constant 0 : index
    %c0_108 = arith.constant 0 : index
    %226 = vector.load %arg10[%c0_106, %c0_107, %c0_108] : memref<1x4x480xf32, #tpu.memory_space<vmem>>, vector<1x4x480xf32>
    %227 = vector.shape_cast %226 : vector<1x4x480xf32> to vector<4x480xf32>
    %228 = vector.shape_cast %225 : vector<4x480xf32> to vector<1x4x480xf32>
    tpu.vector_store %arg10[%c0_106, %c0_107, %c0_108], %228 {strides = array<i32>} : memref<1x4x480xf32, #tpu.memory_space<vmem>>, vector<1x4x480xf32>,
    return
  }
  func.func @transform_0(%arg0: i32) -> (i32, i32, i32) {
    %c0_i32 = arith.constant 0 : i32
    %c0_i32_0 = arith.constant 0 : i32
    %c0_i32_1 = arith.constant 0 : i32
    return %arg0, %c0_i32, %c0_i32_0 : i32, i32, i32
  }
  func.func @transform_1(%arg0: i32) -> (i32, i32, i32) {
    %c0_i32 = arith.constant 0 : i32
    %c0_i32_0 = arith.constant 0 : i32
    %c0_i32_1 = arith.constant 0 : i32
    return %arg0, %c0_i32, %c0_i32_0 : i32, i32, i32
  }
  func.func @transform_2(%arg0: i32) -> (i32, i32, i32) {
    %c0_i32 = arith.constant 0 : i32
    %c0_i32_0 = arith.constant 0 : i32
    %c0_i32_1 = arith.constant 0 : i32
    return %arg0, %c0_i32, %c0_i32_0 : i32, i32, i32
  }
  func.func @transform_3(%arg0: i32) -> (i32, i32, i32) {
    %c0_i32 = arith.constant 0 : i32
    %c0_i32_0 = arith.constant 0 : i32
    %c0_i32_1 = arith.constant 0 : i32
    return %arg0, %c0_i32, %c0_i32_0 : i32, i32, i32
  }
  func.func @transform_4(%arg0: i32) -> (i32, i32, i32) {
    %c0_i32 = arith.constant 0 : i32
    %c0_i32_0 = arith.constant 0 : i32
    %c0_i32_1 = arith.constant 0 : i32
    %c0_i32_2 = arith.constant 0 : i32
    return %c0_i32, %c0_i32_0, %c0_i32_1 : i32, i32, i32
  }
  func.func @transform_5(%arg0: i32) -> (i32, i32, i32) {
    %c0_i32 = arith.constant 0 : i32
    %c0_i32_0 = arith.constant 0 : i32
    %c0_i32_1 = arith.constant 0 : i32
    %c0_i32_2 = arith.constant 0 : i32
    return %c0_i32, %c0_i32_0, %c0_i32_1 : i32, i32, i32
  }
  func.func @transform_6(%arg0: i32) -> (i32, i32) {
    %c0_i32 = arith.constant 0 : i32
    %c0_i32_0 = arith.constant 0 : i32
    %c0_i32_1 = arith.constant 0 : i32
    return %c0_i32, %c0_i32_0 : i32, i32
  }
  func.func @transform_7(%arg0: i32) -> (i32, i32) {
    %c0_i32 = arith.constant 0 : i32
    %c0_i32_0 = arith.constant 0 : i32
    %c0_i32_1 = arith.constant 0 : i32
    return %c0_i32, %c0_i32_0 : i32, i32
  }
  func.func @transform_8(%arg0: i32) -> (i32, i32) {
    %c0_i32 = arith.constant 0 : i32
    %c0_i32_0 = arith.constant 0 : i32
    %c0_i32_1 = arith.constant 0 : i32
    return %c0_i32, %c0_i32_0 : i32, i32
  }
  func.func @transform_9(%arg0: i32) -> (i32, i32, i32) {
    %c0_i32 = arith.constant 0 : i32
    %c0_i32_0 = arith.constant 0 : i32
    %c0_i32_1 = arith.constant 0 : i32
    return %arg0, %c0_i32, %c0_i32_0 : i32, i32, i32
  }
}

</mosaic_0001>

<llo_original>
// kernel: tpu_custom_call.1
$region0: #{tpu_custom_call.1}
  #allocation0 [shape = 'u32[]', space=smem, size = 0x4, offset = 0x4, fixed_abs, tag = 'smem constant byte address 0x4 - core index']
  #allocation1 [shape = 'u32[144,128]{1,0:T(1,128)}', space=vmem, size = 0x12000, scoped, tag = 'internal scratch']
  %s0 = inlined_call_operand.vmem [shape: f32[2,4,600], index: 0, kind: input, shape index: {}]
  %s1 = inlined_call_operand.vmem [shape: f32[2,4,1], index: 1, kind: input, shape index: {}]
  %s2 = inlined_call_operand.vmem [shape: f32[2,4,1], index: 2, kind: input, shape index: {}]
  %s3 = inlined_call_operand.vmem [shape: f32[2,1,10], index: 3, kind: input, shape index: {}]
  %s4 = inlined_call_operand.vmem [shape: f32[9,4,4], index: 4, kind: input, shape index: {}]
  %s5 = inlined_call_operand.vmem [shape: f32[9,4,4], index: 5, kind: input, shape index: {}]
  %s6 = inlined_call_operand.vmem [shape: f32[4,1], index: 6, kind: input, shape index: {}]
  %s7 = inlined_call_operand.vmem [shape: f32[4,1], index: 7, kind: input, shape index: {}]
  %s8 = inlined_call_operand.vmem [shape: f32[2,10], index: 8, kind: input, shape index: {}]
  %s9 = inlined_call_operand.hbm [shape: f32[2,4,480], index: 9, kind: output, shape index: {}]
  %s10 = sld [smem:[#allocation0]]
  $region69: #{tpu_custom_call.1} parent=0
    _
  %s12 = ssub.s32 1, %s10
  %s13 = scalar_select 0, %s12, %s10
  $region1: #{tpu_custom_call.1} parent=0
    #allocation2 [shape = 'u8[16384]{0}', space=vmem, size = 0x4000, scoped, tag = 'output window, operand 0']
    #allocation3 [shape = 's32[2]{0}', space=sflag, size = 0x8, scoped, tag = 'scoped memory for tpu_custom_call.1']
    %14 = vsyncpa [#allocation3], 0
    %s15 = scalar_lea.sflag [#allocation3], 1
    %16 = vsyncpa %s15, 0
    loop: start=0, step=1, limit=4
    $region2: #{tpu_custom_call.1} parent=1 // loop_pre_header
      _
    $region3: #{tpu_custom_call.1} parent=1 // loop_header
      %s18 = sphi 0, %s22
      %p19 = scmp.ge.s32.totalorder %s18, 4
      %s28 = sphi 0, %s30
      %s31 = sphi 0, %s28
      %s32 = sphi 0, %s31
      %s48 = sphi 0, %s32
      %s54 = sphi 0, %s56
      %s57 = sphi 0, %s54
      %s58 = sphi 0, %s57
      %s74 = sphi 0, %s58
      %s80 = sphi 0, %s82
      %s83 = sphi 0, %s80
      %s84 = sphi 0, %s83
      %s100 = sphi 0, %s84
      %s106 = sphi 0, %s108
      %s109 = sphi 0, %s106
      %s110 = sphi 0, %s109
      %s126 = sphi 0, %s110
      %s130 = sphi 0, %s130
      %s132 = sphi 0, %s130
      %s133 = sphi 0, %s132
      %s147 = sphi 0, %s133
      %s151 = sphi 0, %s151
      %s153 = sphi 0, %s151
      %s154 = sphi 0, %s153
      %s168 = sphi 0, %s154
      %s172 = sphi 0, %s172
      %s174 = sphi 0, %s172
      %s175 = sphi 0, %s174
      %s189 = sphi 0, %s175
      %s193 = sphi 0, %s193
      %s195 = sphi 0, %s193
      %s196 = sphi 0, %s195
      %s210 = sphi 0, %s196
      %s214 = sphi 0, %s214
      %s216 = sphi 0, %s214
      %s217 = sphi 0, %s216
      %s231 = sphi 0, %s217
      %s237 = sphi 0, %s239
      %s240 = sphi 0, %s237
      %s241 = sphi 0, %s240
      %s257 = sphi 0, %s241
    $region4: #{tpu_custom_call.1} parent=1 // loop_header_branch
      %21 = sbr.rel (%p19) target = $region8
    $region5: #{tpu_custom_call.1} parent=1 // loop_body
      %s23 = ssub.s32 %s18, 1
      %s24 = ssub.s32 %s18, 2
      %s25 = sadd.s32 %s18, 1
      %s26 = ssub.s32 %s18, %s25
      %p27 = scmp.eq.s32.totalorder %s26, 0
      %s29 = sadd.s32 %s28, 1
      %s30 = scalar_select %p27, %s28, %s29
      %p33 = pneg %p27
      %p34 = scmp.eq.s32.totalorder %s18, 1
      %p35 = por %p33, %p34
      %p36 = scmp.ne.s32.totalorder %s28, %s31
      %p37 = scmp.eq.s32.totalorder %s18, 0
      %p38 = por %p36, %p37
      %p39 = scmp.ne.s32.totalorder %s28, %s31
      %p40 = scmp.eq.s32.totalorder %s23, 1
      %p41 = por %p39, %p40
      %p42 = scmp.ne.s32.totalorder %s31, %s32
      %p43 = scmp.eq.s32.totalorder %s23, 0
      %p44 = por %p42, %p43
      %p45 = scmp.ne.s32.totalorder %s31, %s32
      %p46 = scmp.eq.s32.totalorder %s24, 1
      %p47 = por %p45, %p46
      %p49 = scmp.ne.s32.totalorder %s32, %s48
      %p50 = scmp.eq.s32.totalorder %s24, 0
      %p51 = por %p49, %p50
      %s52 = ssub.s32 %s18, %s25
      %p53 = scmp.eq.s32.totalorder %s52, 0
      %s55 = sadd.s32 %s54, 1
      %s56 = scalar_select %p53, %s54, %s55
      %p59 = pneg %p53
      %p60 = scmp.eq.s32.totalorder %s18, 1
      %p61 = por %p59, %p60
      %p62 = scmp.ne.s32.totalorder %s54, %s57
      %p63 = scmp.eq.s32.totalorder %s18, 0
      %p64 = por %p62, %p63
      %p65 = scmp.ne.s32.totalorder %s54, %s57
      %p66 = scmp.eq.s32.totalorder %s23, 1
      %p67 = por %p65, %p66
      %p68 = scmp.ne.s32.totalorder %s57, %s58
      %p69 = scmp.eq.s32.totalorder %s23, 0
      %p70 = por %p68, %p69
      %p71 = scmp.ne.s32.totalorder %s57, %s58
      %p72 = scmp.eq.s32.totalorder %s24, 1
      %p73 = por %p71, %p72
      %p75 = scmp.ne.s32.totalorder %s58, %s74
      %p76 = scmp.eq.s32.totalorder %s24, 0
      %p77 = por %p75, %p76
      %s78 = ssub.s32 %s18, %s25
      %p79 = scmp.eq.s32.totalorder %s78, 0
      %s81 = sadd.s32 %s80, 1
      %s82 = scalar_select %p79, %s80, %s81
      %p85 = pneg %p79
      %p86 = scmp.eq.s32.totalorder %s18, 1
      %p87 = por %p85, %p86
      %p88 = scmp.ne.s32.totalorder %s80, %s83
      %p89 = scmp.eq.s32.totalorder %s18, 0
      %p90 = por %p88, %p89
      %p91 = scmp.ne.s32.totalorder %s80, %s83
      %p92 = scmp.eq.s32.totalorder %s23, 1
      %p93 = por %p91, %p92
      %p94 = scmp.ne.s32.totalorder %s83, %s84
      %p95 = scmp.eq.s32.totalorder %s23, 0
      %p96 = por %p94, %p95
      %p97 = scmp.ne.s32.totalorder %s83, %s84
      %p98 = scmp.eq.s32.totalorder %s24, 1
      %p99 = por %p97, %p98
      %p101 = scmp.ne.s32.totalorder %s84, %s100
      %p102 = scmp.eq.s32.totalorder %s24, 0
      %p103 = por %p101, %p102
      %s104 = ssub.s32 %s18, %s25
      %p105 = scmp.eq.s32.totalorder %s104, 0
      %s107 = sadd.s32 %s106, 1
      %s108 = scalar_select %p105, %s106, %s107
      %p111 = pneg %p105
      %p112 = scmp.eq.s32.totalorder %s18, 1
      %p113 = por %p111, %p112
      %p114 = scmp.ne.s32.totalorder %s106, %s109
      %p115 = scmp.eq.s32.totalorder %s18, 0
      %p116 = por %p114, %p115
      %p117 = scmp.ne.s32.totalorder %s106, %s109
      %p118 = scmp.eq.s32.totalorder %s23, 1
      %p119 = por %p117, %p118
      %p120 = scmp.ne.s32.totalorder %s109, %s110
      %p121 = scmp.eq.s32.totalorder %s23, 0
      %p122 = por %p120, %p121
      %p123 = scmp.ne.s32.totalorder %s109, %s110
      %p124 = scmp.eq.s32.totalorder %s24, 1
      %p125 = por %p123, %p124
      %p127 = scmp.ne.s32.totalorder %s110, %s126
      %p128 = scmp.eq.s32.totalorder %s24, 0
      %p129 = por %p127, %p128
      %s131 = sadd.s32 %s130, 1
      %p134 = scmp.eq.s32.totalorder %s18, 1
      %p135 = scmp.ne.s32.totalorder %s130, %s132
      %p136 = scmp.eq.s32.totalorder %s18, 0
      %p137 = por %p135, %p136
      %p138 = scmp.ne.s32.totalorder %s130, %s132
      %p139 = scmp.eq.s32.totalorder %s23, 1
      %p140 = por %p138, %p139
      %p141 = scmp.ne.s32.totalorder %s132, %s133
      %p142 = scmp.eq.s32.totalorder %s23, 0
      %p143 = por %p141, %p142
      %p144 = scmp.ne.s32.totalorder %s132, %s133
      %p145 = scmp.eq.s32.totalorder %s24, 1
      %p146 = por %p144, %p145
      %p148 = scmp.ne.s32.totalorder %s133, %s147
      %p149 = scmp.eq.s32.totalorder %s24, 0
      %p150 = por %p148, %p149
      %s152 = sadd.s32 %s151, 1
      %p155 = scmp.eq.s32.totalorder %s18, 1
      %p156 = scmp.ne.s32.totalorder %s151, %s153
      %p157 = scmp.eq.s32.totalorder %s18, 0
      %p158 = por %p156, %p157
      %p159 = scmp.ne.s32.totalorder %s151, %s153
      %p160 = scmp.eq.s32.totalorder %s23, 1
      %p161 = por %p159, %p160
      %p162 = scmp.ne.s32.totalorder %s153, %s154
      %p163 = scmp.eq.s32.totalorder %s23, 0
      %p164 = por %p162, %p163
      %p165 = scmp.ne.s32.totalorder %s153, %s154
      %p166 = scmp.eq.s32.totalorder %s24, 1
      %p167 = por %p165, %p166
      %p169 = scmp.ne.s32.totalorder %s154, %s168
      %p170 = scmp.eq.s32.totalorder %s24, 0
      %p171 = por %p169, %p170
      %s173 = sadd.s32 %s172, 1
      %p176 = scmp.eq.s32.totalorder %s18, 1
      %p177 = scmp.ne.s32.totalorder %s172, %s174
      %p178 = scmp.eq.s32.totalorder %s18, 0
      %p179 = por %p177, %p178
      %p180 = scmp.ne.s32.totalorder %s172, %s174
      %p181 = scmp.eq.s32.totalorder %s23, 1
      %p182 = por %p180, %p181
      %p183 = scmp.ne.s32.totalorder %s174, %s175
      %p184 = scmp.eq.s32.totalorder %s23, 0
      %p185 = por %p183, %p184
      %p186 = scmp.ne.s32.totalorder %s174, %s175
      %p187 = scmp.eq.s32.totalorder %s24, 1
      %p188 = por %p186, %p187
      %p190 = scmp.ne.s32.totalorder %s175, %s189
      %p191 = scmp.eq.s32.totalorder %s24, 0
      %p192 = por %p190, %p191
      %s194 = sadd.s32 %s193, 1
      %p197 = scmp.eq.s32.totalorder %s18, 1
      %p198 = scmp.ne.s32.totalorder %s193, %s195
      %p199 = scmp.eq.s32.totalorder %s18, 0
      %p200 = por %p198, %p199
      %p201 = scmp.ne.s32.totalorder %s193, %s195
      %p202 = scmp.eq.s32.totalorder %s23, 1
      %p203 = por %p201, %p202
      %p204 = scmp.ne.s32.totalorder %s195, %s196
      %p205 = scmp.eq.s32.totalorder %s23, 0
      %p206 = por %p204, %p205
      %p207 = scmp.ne.s32.totalorder %s195, %s196
      %p208 = scmp.eq.s32.totalorder %s24, 1
      %p209 = por %p207, %p208
      %p211 = scmp.ne.s32.totalorder %s196, %s210
      %p212 = scmp.eq.s32.totalorder %s24, 0
      %p213 = por %p211, %p212
      %s215 = sadd.s32 %s214, 1
      %p218 = scmp.eq.s32.totalorder %s18, 1
      %p219 = scmp.ne.s32.totalorder %s214, %s216
      %p220 = scmp.eq.s32.totalorder %s18, 0
      %p221 = por %p219, %p220
      %p222 = scmp.ne.s32.totalorder %s214, %s216
      %p223 = scmp.eq.s32.totalorder %s23, 1
      %p224 = por %p222, %p223
      %p225 = scmp.ne.s32.totalorder %s216, %s217
      %p226 = scmp.eq.s32.totalorder %s23, 0
      %p227 = por %p225, %p226
      %p228 = scmp.ne.s32.totalorder %s216, %s217
      %p229 = scmp.eq.s32.totalorder %s24, 1
      %p230 = por %p228, %p229
      %p232 = scmp.ne.s32.totalorder %s217, %s231
      %p233 = scmp.eq.s32.totalorder %s24, 0
      %p234 = por %p232, %p233
      %s235 = ssub.s32 %s18, %s25
      %p236 = scmp.eq.s32.totalorder %s235, 0
      %s238 = sadd.s32 %s237, 1
      %s239 = scalar_select %p236, %s237, %s238
      %p242 = pneg %p236
      %p243 = scmp.eq.s32.totalorder %s18, 1
      %p244 = por %p242, %p243
      %p245 = scmp.ne.s32.totalorder %s237, %s240
      %p246 = scmp.eq.s32.totalorder %s18, 0
      %p247 = por %p245, %p246
      %p248 = scmp.ne.s32.totalorder %s237, %s240
      %p249 = scmp.eq.s32.totalorder %s23, 1
      %p250 = por %p248, %p249
      %p251 = scmp.ne.s32.totalorder %s240, %s241
      %p252 = scmp.eq.s32.totalorder %s23, 0
      %p253 = por %p251, %p252
      %p254 = scmp.ne.s32.totalorder %s240, %s241
      %p255 = scmp.eq.s32.totalorder %s24, 1
      %p256 = por %p254, %p255
      %p258 = scmp.ne.s32.totalorder %s241, %s257
      %p259 = scmp.eq.s32.totalorder %s24, 0
      %p260 = por %p258, %p259
      %p261 = scmp.le.s32.totalorder 1, %s18
      %p262 = scmp.lt.s32.totalorder %s18, 3
      %p263 = pnand %p261, %p262
      %p264 = pneg %p263
      // Predicated region
      $region9: #{tpu_custom_call.1} parent=5 // pred_check
        _
      $region10: #{tpu_custom_call.1} parent=5 // pred_check_branch
        %266 = sbr.rel (%p263) target = $region12
      $region11: #{tpu_custom_call.1} parent=5 // pred_region
        %s267 = ssub.s32 %s18, 1
        // Predicated region
        $region13: #{tpu_custom_call.1} parent=11 // pred_check
          %p268 = pneg %p143
        $region14: #{tpu_custom_call.1} parent=11 // pred_check_branch
          %270 = sbr.rel (%p268) target = $region16
        $region15: #{tpu_custom_call.1} parent=11 // pred_region
          _
        $region16: #{tpu_custom_call.1} parent=11 // pred_fallthru
          _
        // Predicated region
        $region17: #{tpu_custom_call.1} parent=11 // pred_check
          %p271 = pneg %p164
        $region18: #{tpu_custom_call.1} parent=11 // pred_check_branch
          %273 = sbr.rel (%p271) target = $region20
        $region19: #{tpu_custom_call.1} parent=11 // pred_region
          _
        $region20: #{tpu_custom_call.1} parent=11 // pred_fallthru
          _
        // Predicated region
        $region21: #{tpu_custom_call.1} parent=11 // pred_check
          %p274 = pneg %p185
        $region22: #{tpu_custom_call.1} parent=11 // pred_check_branch
          %276 = sbr.rel (%p274) target = $region24
        $region23: #{tpu_custom_call.1} parent=11 // pred_region
          _
        $region24: #{tpu_custom_call.1} parent=11 // pred_fallthru
          _
        // Predicated region
        $region25: #{tpu_custom_call.1} parent=11 // pred_check
          %p277 = pneg %p206
        $region26: #{tpu_custom_call.1} parent=11 // pred_check_branch
          %279 = sbr.rel (%p277) target = $region28
        $region27: #{tpu_custom_call.1} parent=11 // pred_region
          _
        $region28: #{tpu_custom_call.1} parent=11 // pred_fallthru
          _
        // Predicated region
        $region29: #{tpu_custom_call.1} parent=11 // pred_check
          %p280 = pneg %p227
        $region30: #{tpu_custom_call.1} parent=11 // pred_check_branch
          %282 = sbr.rel (%p280) target = $region32
        $region31: #{tpu_custom_call.1} parent=11 // pred_region
          _
        $region32: #{tpu_custom_call.1} parent=11 // pred_fallthru
          _
      $region12: #{tpu_custom_call.1} parent=5 // pred_fallthru
        _
      %p283 = scmp.lt.s32.totalorder %s18, 2
      // Predicated region
      $region33: #{tpu_custom_call.1} parent=5 // pred_check
        %p284 = pneg %p283
      $region34: #{tpu_custom_call.1} parent=5 // pred_check_branch
        %286 = sbr.rel (%p284) target = $region36
      $region35: #{tpu_custom_call.1} parent=5 // pred_region
        // Predicated region
        $region37: #{tpu_custom_call.1} parent=35 // pred_check
          %p287 = pneg %p38
        $region38: #{tpu_custom_call.1} parent=35 // pred_check_branch
          %289 = sbr.rel (%p287) target = $region40
        $region39: #{tpu_custom_call.1} parent=35 // pred_region
          %p290 = scmp.lt.s32.totalorder %s18, 1
          %s291 = scalar_select %p290, %s18, 1
          %s292 = smul.addr %s291, 5
          %s293 = smul.addr %s292, 4
          %s294 = scalar_lea.vmem %s0, %s293
        $region40: #{tpu_custom_call.1} parent=35 // pred_fallthru
          _
        // Predicated region
        $region41: #{tpu_custom_call.1} parent=35 // pred_check
          %p295 = pneg %p64
        $region42: #{tpu_custom_call.1} parent=35 // pred_check_branch
          %297 = sbr.rel (%p295) target = $region44
        $region43: #{tpu_custom_call.1} parent=35 // pred_region
          %p298 = scmp.lt.s32.totalorder %s18, 1
          %s299 = scalar_select %p298, %s18, 1
          %s300 = smul.addr %s299, 4
          %s301 = scalar_lea.vmem %s1, %s300
        $region44: #{tpu_custom_call.1} parent=35 // pred_fallthru
          _
        // Predicated region
        $region45: #{tpu_custom_call.1} parent=35 // pred_check
          %p302 = pneg %p90
        $region46: #{tpu_custom_call.1} parent=35 // pred_check_branch
          %304 = sbr.rel (%p302) target = $region48
        $region47: #{tpu_custom_call.1} parent=35 // pred_region
          %p305 = scmp.lt.s32.totalorder %s18, 1
          %s306 = scalar_select %p305, %s18, 1
          %s307 = smul.addr %s306, 4
          %s308 = scalar_lea.vmem %s2, %s307
        $region48: #{tpu_custom_call.1} parent=35 // pred_fallthru
          _
        // Predicated region
        $region49: #{tpu_custom_call.1} parent=35 // pred_check
          %p309 = pneg %p116
        $region50: #{tpu_custom_call.1} parent=35 // pred_check_branch
          %311 = sbr.rel (%p309) target = $region52
        $region51: #{tpu_custom_call.1} parent=35 // pred_region
          %p312 = scmp.lt.s32.totalorder %s18, 1
          %s313 = scalar_select %p312, %s18, 1
          %s314 = scalar_lea.vmem %s3, %s313
        $region52: #{tpu_custom_call.1} parent=35 // pred_fallthru
          _
      $region36: #{tpu_custom_call.1} parent=5 // pred_fallthru
        _
      %p315 = scmp.le.s32.totalorder 1, %s18
      %p316 = scmp.lt.s32.totalorder %s18, 3
      %p317 = pnand %p315, %p316
      %p318 = pneg %p317
      // Predicated region
      $region53: #{tpu_custom_call.1} parent=5 // pred_check
        _
      $region54: #{tpu_custom_call.1} parent=5 // pred_check_branch
        %320 = sbr.rel (%p317) target = $region56
      $region55: #{tpu_custom_call.1} parent=5 // pred_region
        %s321 = ssub.s32 %s18, 1
        %p322 = scmp.lt.s32.totalorder %s23, 1
        %s323 = scalar_select %p322, %s23, 1
        %s324 = smul.addr %s323, 5
        %s325 = smul.addr %s324, 4
        %s326 = scalar_lea.vmem %s0, %s325
        %p327 = pneg %p44
        %p328 = pneg %p41
        %p329 = scmp.lt.s32.totalorder %s23, 1
        %s330 = scalar_select %p329, %s23, 1
        %s331 = smul.addr %s330, 4
        %s332 = scalar_lea.vmem %s1, %s331
        %p333 = pneg %p70
        %p334 = pneg %p67
        %p335 = scmp.lt.s32.totalorder %s23, 1
        %s336 = scalar_select %p335, %s23, 1
        %s337 = smul.addr %s336, 4
        %s338 = scalar_lea.vmem %s2, %s337
        %p339 = pneg %p96
        %p340 = pneg %p93
        %p341 = scmp.lt.s32.totalorder %s23, 1
        %s342 = scalar_select %p341, %s23, 1
        %s343 = scalar_lea.vmem %s3, %s342
        %p344 = pneg %p122
        %p345 = pneg %p119
        %p346 = pneg %p143
        %p347 = pneg %p140
        %p348 = pneg %p164
        %p349 = pneg %p161
        %p350 = pneg %p185
        %p351 = pneg %p182
        %p352 = pneg %p206
        %p353 = pneg %p203
        %p354 = pneg %p227
        %p355 = pneg %p224
        %p356 = pneg %p253
        %p357 = pneg %p250
        %s358 = sand.u32 %s240, 1
        %s359 = scalar_lea.sflag [#allocation3], %s358
        %s360 = sand.u32 %s240, 1
        %s361 = smul.addr %s360, 16
        %s362 = scalar_lea.vmem [#allocation2], %s361
        %p363 = scmp.lt.s32.totalorder %s23, 1
        %s364 = scalar_select %p363, %s23, 1
        %s365 = smul.addr %s364, 5
        %s366 = smul.addr %s365, 4
        %s367 = scalar_lea.vmem %s0, %s366
        %p368 = scmp.lt.s32.totalorder %s23, 1
        %s369 = scalar_select %p368, %s23, 1
        %s370 = smul.addr %s369, 4
        %s371 = scalar_lea.vmem %s1, %s370
        %p372 = scmp.lt.s32.totalorder %s23, 1
        %s373 = scalar_select %p372, %s23, 1
        %s374 = smul.addr %s373, 4
        %s375 = scalar_lea.vmem %s2, %s374
        %p376 = scmp.lt.s32.totalorder %s23, 1
        %s377 = scalar_select %p376, %s23, 1
        %s378 = scalar_lea.vmem %s3, %s377
        %v379 = vld [vmem:[%s367] sm:$0xff]
        %v380 = vld [vmem:[%s367 + $0x8] sm:$0xff]
        %v381 = vld [vmem:[%s367 + $0x10] sm:$0xf]
        %v382 = vld [vmem:[%s378] sm:$0x1]
        %v383 = vld [vmem:[%s8] sm:$0x3]
        %v384 = vlaneseq
        %v385 = vand.u32 %v384, 127
        %v386 = vadd.s32 %v385, 128
        %v387 = vadd.s32 %v385, 256
        %v388 = vadd.s32 %v385, 384
        %v389 = vadd.s32 %v385, 512
        %v390 = vcvt.s32.f32 %v385
        %v391 = vcvt.s32.f32 %v386
        %v392 = vcvt.s32.f32 %v387
        %v393 = vcvt.s32.f32 %v388
        %v394 = vcvt.s32.f32 %v389
        %v395 = vadd.f32 %v390, 0.5
        %v396 = vadd.f32 %v391, 0.5
        %v397 = vadd.f32 %v392, 0.5
        %v398 = vadd.f32 %v393, 0.5
        %v399 = vadd.f32 %v394, 0.5
        %v400 = vmul.f32 %v395, 0.041666668
        %v401 = vmul.f32 %v396, 0.041666668
        %v402 = vmul.f32 %v397, 0.041666668
        %v403 = vmul.f32 %v398, 0.041666668
        %v404 = vmul.f32 %v399, 0.041666668
        %v405 = vfloor.f32 %v400
        %v406 = vfloor.f32 %v401
        %v407 = vfloor.f32 %v402
        %v408 = vfloor.f32 %v403
        %v409 = vfloor.f32 %v404
        %v410 = vmul.f32 %v405, 24.0
        %v411 = vmul.f32 %v406, 24.0
        %v412 = vmul.f32 %v407, 24.0
        %v413 = vmul.f32 %v408, 24.0
        %v414 = vmul.f32 %v409, 24.0
        %v415 = vsub.f32 %v390, %v410
        %v416 = vsub.f32 %v391, %v411
        %v417 = vsub.f32 %v392, %v412
        %v418 = vsub.f32 %v393, %v413
        %v419 = vsub.f32 %v394, %v414
        %vm420 = vcmp.ge.s32.totalorder %v385, 48
        %vm421 = vcmp.ge.s32.totalorder %v386, 48
        %vm422 = vcmp.ge.s32.totalorder %v387, 48
        %vm423 = vcmp.ge.s32.totalorder %v388, 48
        %vm424 = vcmp.ge.s32.totalorder %v389, 48
        %vm425 = vcmp.lt.s32.totalorder %v385, 480
        %vm426 = vcmp.lt.s32.totalorder %v386, 480
        %vm427 = vcmp.lt.s32.totalorder %v387, 480
        %vm428 = vcmp.lt.s32.totalorder %v388, 480
        %vm429 = vcmp.lt.s32.totalorder %v389, 480
        %vm430 = vmand %vm420, %vm425
        %vm431 = vmand %vm421, %vm426
        %vm432 = vmand %vm422, %vm427
        %vm433 = vmand %vm423, %vm428
        %vm434 = vmand %vm424, %vm429
        %vm435 = vcmp.gt.f32.partialorder %v415, 1.5
        %vm436 = vcmp.gt.f32.partialorder %v416, 1.5
        %vm437 = vcmp.gt.f32.partialorder %v417, 1.5
        %vm438 = vcmp.gt.f32.partialorder %v418, 1.5
        %vm439 = vcmp.gt.f32.partialorder %v419, 1.5
        %vm440 = vmand %vm430, %vm435
        %vm441 = vmand %vm431, %vm436
        %vm442 = vmand %vm432, %vm437
        %vm443 = vmand %vm433, %vm438
        %vm444 = vmand %vm434, %vm439
        %vm445 = vcmp.lt.f32.partialorder %v415, 19.5
        %vm446 = vcmp.lt.f32.partialorder %v416, 19.5
        %vm447 = vcmp.lt.f32.partialorder %v417, 19.5
        %vm448 = vcmp.lt.f32.partialorder %v418, 19.5
        %vm449 = vcmp.lt.f32.partialorder %v419, 19.5
        %vm450 = vmand %vm440, %vm445
        %vm451 = vmand %vm441, %vm446
        %vm452 = vmand %vm442, %vm447
        %vm453 = vmand %vm443, %vm448
        %vm454 = vmand %vm444, %vm449
        %v455 = vsel %vm450, 1.0, 0.0
        %v456 = vsel %vm451, 1.0, 0.0
        %v457 = vsel %vm452, 1.0, 0.0
        %v458 = vsel %vm453, 1.0, 0.0
        %v459 = vsel %vm454, 1.0, 0.0
        %v460 = vsel %vm445, 1.0, 0.0
        %v461 = vsel %vm446, 1.0, 0.0
        %v462 = vsel %vm447, 1.0, 0.0
        %v463 = vsel %vm448, 1.0, 0.0
        %v464 = vld [vmem:[%s4] sm:$0xf]
        %s465 = scalar_lea.vmem %s4, 4
        %v466 = vld [vmem:[%s465] sm:$0xf]
        %v470 = vcombine.high %v379, %v379
        %v471 = vcombine.high %v380, %v380
        %472 = vrot.lane.b32.xlu0 %v379, 127
        %v473 = vpop.permute.xlu0 %472
        %474 = vrot.lane.b32.xlu0 %v470, 127
        %v475 = vpop.permute.xlu0 %474
        %476 = vrot.lane.b32.xlu0 %v380, 127
        %v477 = vpop.permute.xlu0 %476
        %478 = vrot.lane.b32.xlu0 %v471, 127
        %v479 = vpop.permute.xlu0 %478
        %480 = vrot.lane.b32.xlu0 %v381, 127
        %v481 = vpop.permute.xlu0 %480
        %vm482 = vcmask 1039360
        %v483 = vsel %vm482, %v473, %v475
        %v484 = vsel %vm482, %v475, %v477
        %v485 = vsel %vm482, %v477, %v479
        %v486 = vsel %vm482, %v479, %v481
        %vm487 = vcmask 31744
        %v489 = vsel %vm487, %v466, 0
        %vm491 = vcmask 1043456
        %v492 = vsel %vm491, %v483, 0
        %v494 = vsel %vm491, %v484, 0
        %v496 = vsel %vm491, %v485, 0
        %v498 = vsel %vm491, %v486, 0
        %v500 = vsel %vm491, %v481, 0
        %502 = vmatprep.subr.mxu0 %v494
        %503 = vmatpush1.msra.mxu0 %v492
        %504 = vmatprep.subr.mxu0 0.0
        %505 = vmatpush1.msra.mxu0 0.0
        %506 = vmatprep.subr.mxu0 0.0
        %507 = vmatpush1.msra.mxu0 0.0
        %508 = vmatprep.subr.mxu0 0.0
        %509 = vmatpush1.msra.mxu0 0.0
        %510 = vmatprep.subr.mxu0 0.0
        %511 = vmatpush1.msra.mxu0 0.0
        %512 = vmatprep.subr.mxu0 0.0
        %513 = vmatpush1.msra.mxu0 0.0
        %514 = vmatprep.subr.mxu0 0.0
        %515 = vmatpush1.msra.mxu0 0.0
        %516 = vmatprep.subr.mxu0 0.0
        %517 = vmatpush1.msra.mxu0 0.0
        %518 = vmatprep.subr.mxu0 0.0
        %519 = vmatpush1.msra.mxu0 0.0
        %520 = vmatprep.subr.mxu0 0.0
        %521 = vmatpush1.msra.mxu0 0.0
        %522 = vmatprep.subr.mxu0 0.0
        %523 = vmatpush1.msra.mxu0 0.0
        %524 = vmatprep.subr.mxu0 0.0
        %525 = vmatpush1.msra.mxu0 0.0
        %526 = vmatprep.subr.mxu0 0.0
        %527 = vmatpush1.msra.mxu0 0.0
        %528 = vmatprep.subr.mxu0 0.0
        %529 = vmatpush1.msra.mxu0 0.0
        %530 = vmatprep.subr.mxu0 0.0
        %531 = vmatpush1.msra.mxu0 0.0
        %532 = vmatprep.subr.mxu0 0.0
        %533 = vmatpush1.msra.mxu0 0.0
        %534 = vmatprep.subr.mxu0 0.0
        %535 = vmatpush1.msra.mxu0 0.0
        %536 = vmatprep.subr.mxu0 0.0
        %537 = vmatpush1.msra.mxu0 0.0
        %538 = vmatprep.subr.mxu0 0.0
        %539 = vmatpush1.msra.mxu0 0.0
        %540 = vmatprep.subr.mxu0 0.0
        %541 = vmatpush1.msra.mxu0 0.0
        %542 = vmatprep.subr.mxu0 0.0
        %543 = vmatpush1.msra.mxu0 0.0
        %544 = vmatprep.subr.mxu0 0.0
        %545 = vmatpush1.msra.mxu0 0.0
        %546 = vmatprep.subr.mxu0 0.0
        %547 = vmatpush1.msra.mxu0 0.0
        %548 = vmatprep.subr.mxu0 0.0
        %549 = vmatpush1.msra.mxu0 0.0
        %550 = vmatprep.subr.mxu0 0.0
        %551 = vmatpush1.msra.mxu0 0.0
        %552 = vmatprep.subr.mxu0 0.0
        %553 = vmatpush1.msra.mxu0 0.0
        %554 = vmatprep.subr.mxu0 0.0
        %555 = vmatpush1.msra.mxu0 0.0
        %556 = vmatprep.subr.mxu0 0.0
        %557 = vmatpush1.msra.mxu0 0.0
        %558 = vmatprep.subr.mxu0 0.0
        %559 = vmatpush1.msra.mxu0 0.0
        %560 = vmatprep.subr.mxu0 0.0
        %561 = vmatpush1.msra.mxu0 0.0
        %562 = vmatprep.subr.mxu0 0.0
        %563 = vmatpush1.msra.mxu0 0.0
        %564 = vmatprep.subr.mxu0 0.0
        %565 = vmatpush1.msra.mxu0 0.0
        %566 = vmatprep.mubr.f32.mxu0 0.0
        %567 = vmatmul.mubr.f32.gmra.mrb[0].mxu0 %v489
        %v568 = vpop.f32.mrb[0].mxu0
        %v569 = vadd.f32 0.0, %v568
        %v570 = vpop.f32.mrb[0].mxu0
        %v571 = vadd.f32 0.0, %v570
        %572 = vdwg.mxu0
        %573 = vmatprep.subr.mxu0 %v498
        %574 = vmatpush1.msra.mxu0 %v496
        %575 = vmatprep.subr.mxu0 0.0
        %576 = vmatpush1.msra.mxu0 0.0
        %577 = vmatprep.subr.mxu0 0.0
        %578 = vmatpush1.msra.mxu0 0.0
        %579 = vmatprep.subr.mxu0 0.0
        %580 = vmatpush1.msra.mxu0 0.0
        %581 = vmatprep.subr.mxu0 0.0
        %582 = vmatpush1.msra.mxu0 0.0
        %583 = vmatprep.subr.mxu0 0.0
        %584 = vmatpush1.msra.mxu0 0.0
        %585 = vmatprep.subr.mxu0 0.0
        %586 = vmatpush1.msra.mxu0 0.0
        %587 = vmatprep.subr.mxu0 0.0
        %588 = vmatpush1.msra.mxu0 0.0
        %589 = vmatprep.subr.mxu0 0.0
        %590 = vmatpush1.msra.mxu0 0.0
        %591 = vmatprep.subr.mxu0 0.0
        %592 = vmatpush1.msra.mxu0 0.0
        %593 = vmatprep.subr.mxu0 0.0
        %594 = vmatpush1.msra.mxu0 0.0
        %595 = vmatprep.subr.mxu0 0.0
        %596 = vmatpush1.msra.mxu0 0.0
        %597 = vmatprep.subr.mxu0 0.0
        %598 = vmatpush1.msra.mxu0 0.0
        %599 = vmatprep.subr.mxu0 0.0
        %600 = vmatpush1.msra.mxu0 0.0
        %601 = vmatprep.subr.mxu0 0.0
        %602 = vmatpush1.msra.mxu0 0.0
        %603 = vmatprep.subr.mxu0 0.0
        %604 = vmatpush1.msra.mxu0 0.0
        %605 = vmatprep.subr.mxu0 0.0
        %606 = vmatpush1.msra.mxu0 0.0
        %607 = vmatprep.subr.mxu0 0.0
        %608 = vmatpush1.msra.mxu0 0.0
        %609 = vmatprep.subr.mxu0 0.0
        %610 = vmatpush1.msra.mxu0 0.0
        %611 = vmatprep.subr.mxu0 0.0
        %612 = vmatpush1.msra.mxu0 0.0
        %613 = vmatprep.subr.mxu0 0.0
        %614 = vmatpush1.msra.mxu0 0.0
        %615 = vmatprep.subr.mxu0 0.0
        %616 = vmatpush1.msra.mxu0 0.0
        %617 = vmatprep.subr.mxu0 0.0
        %618 = vmatpush1.msra.mxu0 0.0
        %619 = vmatprep.subr.mxu0 0.0
        %620 = vmatpush1.msra.mxu0 0.0
        %621 = vmatprep.subr.mxu0 0.0
        %622 = vmatpush1.msra.mxu0 0.0
        %623 = vmatprep.subr.mxu0 0.0
        %624 = vmatpush1.msra.mxu0 0.0
        %625 = vmatprep.subr.mxu0 0.0
        %626 = vmatpush1.msra.mxu0 0.0
        %627 = vmatprep.subr.mxu0 0.0
        %628 = vmatpush1.msra.mxu0 0.0
        %629 = vmatprep.subr.mxu0 0.0
        %630 = vmatpush1.msra.mxu0 0.0
        %631 = vmatprep.subr.mxu0 0.0
        %632 = vmatpush1.msra.mxu0 0.0
        %633 = vmatprep.subr.mxu0 0.0
        %634 = vmatpush1.msra.mxu0 0.0
        %635 = vmatprep.subr.mxu0 0.0
        %636 = vmatpush1.msra.mxu0 0.0
        %637 = vmatprep.mubr.f32.mxu0 0.0
        %638 = vmatmul.mubr.f32.gmra.mrb[0].mxu0 %v489
        %v639 = vpop.f32.mrb[0].mxu0
        %v640 = vadd.f32 0.0, %v639
        %v641 = vpop.f32.mrb[0].mxu0
        %v642 = vadd.f32 0.0, %v641
        %643 = vdwg.mxu0
        %644 = vmatprep.subr.mxu0 0.0
        %645 = vmatpush1.msra.mxu0 %v500
        %646 = vmatprep.subr.mxu0 0.0
        %647 = vmatpush1.msra.mxu0 0.0
        %648 = vmatprep.subr.mxu0 0.0
        %649 = vmatpush1.msra.mxu0 0.0
        %650 = vmatprep.subr.mxu0 0.0
        %651 = vmatpush1.msra.mxu0 0.0
        %652 = vmatprep.subr.mxu0 0.0
        %653 = vmatpush1.msra.mxu0 0.0
        %654 = vmatprep.subr.mxu0 0.0
        %655 = vmatpush1.msra.mxu0 0.0
        %656 = vmatprep.subr.mxu0 0.0
        %657 = vmatpush1.msra.mxu0 0.0
        %658 = vmatprep.subr.mxu0 0.0
        %659 = vmatpush1.msra.mxu0 0.0
        %660 = vmatprep.subr.mxu0 0.0
        %661 = vmatpush1.msra.mxu0 0.0
        %662 = vmatprep.subr.mxu0 0.0
        %663 = vmatpush1.msra.mxu0 0.0
        %664 = vmatprep.subr.mxu0 0.0
        %665 = vmatpush1.msra.mxu0 0.0
        %666 = vmatprep.subr.mxu0 0.0
        %667 = vmatpush1.msra.mxu0 0.0
        %668 = vmatprep.subr.mxu0 0.0
        %669 = vmatpush1.msra.mxu0 0.0
        %670 = vmatprep.subr.mxu0 0.0
        %671 = vmatpush1.msra.mxu0 0.0
        %672 = vmatprep.subr.mxu0 0.0
        %673 = vmatpush1.msra.mxu0 0.0
        %674 = vmatprep.subr.mxu0 0.0
        %675 = vmatpush1.msra.mxu0 0.0
        %676 = vmatprep.subr.mxu0 0.0
        %677 = vmatpush1.msra.mxu0 0.0
        %678 = vmatprep.subr.mxu0 0.0
        %679 = vmatpush1.msra.mxu0 0.0
        %680 = vmatprep.subr.mxu0 0.0
        %681 = vmatpush1.msra.mxu0 0.0
        %682 = vmatprep.subr.mxu0 0.0
        %683 = vmatpush1.msra.mxu0 0.0
        %684 = vmatprep.subr.mxu0 0.0
        %685 = vmatpush1.msra.mxu0 0.0
        %686 = vmatprep.subr.mxu0 0.0
        %687 = vmatpush1.msra.mxu0 0.0
        %688 = vmatprep.subr.mxu0 0.0
        %689 = vmatpush1.msra.mxu0 0.0
        %690 = vmatprep.subr.mxu0 0.0
        %691 = vmatpush1.msra.mxu0 0.0
        %692 = vmatprep.subr.mxu0 0.0
        %693 = vmatpush1.msra.mxu0 0.0
        %694 = vmatprep.subr.mxu0 0.0
        %695 = vmatpush1.msra.mxu0 0.0
        %696 = vmatprep.subr.mxu0 0.0
        %697 = vmatpush1.msra.mxu0 0.0
        %698 = vmatprep.subr.mxu0 0.0
        %699 = vmatpush1.msra.mxu0 0.0
        %700 = vmatprep.subr.mxu0 0.0
        %701 = vmatpush1.msra.mxu0 0.0
        %702 = vmatprep.subr.mxu0 0.0
        %703 = vmatpush1.msra.mxu0 0.0
        %704 = vmatprep.subr.mxu0 0.0
        %705 = vmatpush1.msra.mxu0 0.0
        %706 = vmatprep.subr.mxu0 0.0
        %707 = vmatpush1.msra.mxu0 0.0
        %708 = vmatprep.mubr.f32.mxu0 0.0
        %709 = vmatmul.mubr.f32.gmra.mrb[0].mxu0 %v489
        %v710 = vpop.f32.mrb[0].mxu0
        %v711 = vadd.f32 0.0, %v710
        %v712 = vpop.f32.mrb[0].mxu0
        %713 = vdwg.mxu0
        %v715 = vsel %vm487, %v464, 0
        %v717 = vsel %vm491, %v379, 0
        %v719 = vsel %vm491, %v470, 0
        %v721 = vsel %vm491, %v380, 0
        %v723 = vsel %vm491, %v471, 0
        %v725 = vsel %vm491, %v381, 0
        %727 = vmatprep.subr.mxu0 %v719
        %728 = vmatpush1.msra.mxu0 %v717
        %729 = vmatprep.subr.mxu0 0.0
        %730 = vmatpush1.msra.mxu0 0.0
        %731 = vmatprep.subr.mxu0 0.0
        %732 = vmatpush1.msra.mxu0 0.0
        %733 = vmatprep.subr.mxu0 0.0
        %734 = vmatpush1.msra.mxu0 0.0
        %735 = vmatprep.subr.mxu0 0.0
        %736 = vmatpush1.msra.mxu0 0.0
        %737 = vmatprep.subr.mxu0 0.0
        %738 = vmatpush1.msra.mxu0 0.0
        %739 = vmatprep.subr.mxu0 0.0
        %740 = vmatpush1.msra.mxu0 0.0
        %741 = vmatprep.subr.mxu0 0.0
        %742 = vmatpush1.msra.mxu0 0.0
        %743 = vmatprep.subr.mxu0 0.0
        %744 = vmatpush1.msra.mxu0 0.0
        %745 = vmatprep.subr.mxu0 0.0
        %746 = vmatpush1.msra.mxu0 0.0
        %747 = vmatprep.subr.mxu0 0.0
        %748 = vmatpush1.msra.mxu0 0.0
        %749 = vmatprep.subr.mxu0 0.0
        %750 = vmatpush1.msra.mxu0 0.0
        %751 = vmatprep.subr.mxu0 0.0
        %752 = vmatpush1.msra.mxu0 0.0
        %753 = vmatprep.subr.mxu0 0.0
        %754 = vmatpush1.msra.mxu0 0.0
        %755 = vmatprep.subr.mxu0 0.0
        %756 = vmatpush1.msra.mxu0 0.0
        %757 = vmatprep.subr.mxu0 0.0
        %758 = vmatpush1.msra.mxu0 0.0
        %759 = vmatprep.subr.mxu0 0.0
        %760 = vmatpush1.msra.mxu0 0.0
        %761 = vmatprep.subr.mxu0 0.0
        %762 = vmatpush1.msra.mxu0 0.0
        %763 = vmatprep.subr.mxu0 0.0
        %764 = vmatpush1.msra.mxu0 0.0
        %765 = vmatprep.subr.mxu0 0.0
        %766 = vmatpush1.msra.mxu0 0.0
        %767 = vmatprep.subr.mxu0 0.0
        %768 = vmatpush1.msra.mxu0 0.0
        %769 = vmatprep.subr.mxu0 0.0
        %770 = vmatpush1.msra.mxu0 0.0
        %771 = vmatprep.subr.mxu0 0.0
        %772 = vmatpush1.msra.mxu0 0.0
        %773 = vmatprep.subr.mxu0 0.0
        %774 = vmatpush1.msra.mxu0 0.0
        %775 = vmatprep.subr.mxu0 0.0
        %776 = vmatpush1.msra.mxu0 0.0
        %777 = vmatprep.subr.mxu0 0.0
        %778 = vmatpush1.msra.mxu0 0.0
        %779 = vmatprep.subr.mxu0 0.0
        %780 = vmatpush1.msra.mxu0 0.0
        %781 = vmatprep.subr.mxu0 0.0
        %782 = vmatpush1.msra.mxu0 0.0
        %783 = vmatprep.subr.mxu0 0.0
        %784 = vmatpush1.msra.mxu0 0.0
        %785 = vmatprep.subr.mxu0 0.0
        %786 = vmatpush1.msra.mxu0 0.0
        %787 = vmatprep.subr.mxu0 0.0
        %788 = vmatpush1.msra.mxu0 0.0
        %789 = vmatprep.subr.mxu0 0.0
        %790 = vmatpush1.msra.mxu0 0.0
        %791 = vmatprep.mubr.f32.mxu0 0.0
        %792 = vmatmul.mubr.f32.gmra.mrb[0].mxu0 %v715
        %v793 = vpop.f32.mrb[0].mxu0
        %v794 = vadd.f32 %v569, %v793
        %v795 = vpop.f32.mrb[0].mxu0
        %v796 = vadd.f32 %v571, %v795
        %797 = vdwg.mxu0
        %798 = vmatprep.subr.mxu0 %v723
        %799 = vmatpush1.msra.mxu0 %v721
        %800 = vmatprep.subr.mxu0 0.0
        %801 = vmatpush1.msra.mxu0 0.0
        %802 = vmatprep.subr.mxu0 0.0
        %803 = vmatpush1.msra.mxu0 0.0
        %804 = vmatprep.subr.mxu0 0.0
        %805 = vmatpush1.msra.mxu0 0.0
        %806 = vmatprep.subr.mxu0 0.0
        %807 = vmatpush1.msra.mxu0 0.0
        %808 = vmatprep.subr.mxu0 0.0
        %809 = vmatpush1.msra.mxu0 0.0
        %810 = vmatprep.subr.mxu0 0.0
        %811 = vmatpush1.msra.mxu0 0.0
        %812 = vmatprep.subr.mxu0 0.0
        %813 = vmatpush1.msra.mxu0 0.0
        %814 = vmatprep.subr.mxu0 0.0
        %815 = vmatpush1.msra.mxu0 0.0
        %816 = vmatprep.subr.mxu0 0.0
        %817 = vmatpush1.msra.mxu0 0.0
        %818 = vmatprep.subr.mxu0 0.0
        %819 = vmatpush1.msra.mxu0 0.0
        %820 = vmatprep.subr.mxu0 0.0
        %821 = vmatpush1.msra.mxu0 0.0
        %822 = vmatprep.subr.mxu0 0.0
        %823 = vmatpush1.msra.mxu0 0.0
        %824 = vmatprep.subr.mxu0 0.0
        %825 = vmatpush1.msra.mxu0 0.0
        %826 = vmatprep.subr.mxu0 0.0
        %827 = vmatpush1.msra.mxu0 0.0
        %828 = vmatprep.subr.mxu0 0.0
        %829 = vmatpush1.msra.mxu0 0.0
        %830 = vmatprep.subr.mxu0 0.0
        %831 = vmatpush1.msra.mxu0 0.0
        %832 = vmatprep.subr.mxu0 0.0
        %833 = vmatpush1.msra.mxu0 0.0
        %834 = vmatprep.subr.mxu0 0.0
        %835 = vmatpush1.msra.mxu0 0.0
        %836 = vmatprep.subr.mxu0 0.0
        %837 = vmatpush1.msra.mxu0 0.0
        %838 = vmatprep.subr.mxu0 0.0
        %839 = vmatpush1.msra.mxu0 0.0
        %840 = vmatprep.subr.mxu0 0.0
        %841 = vmatpush1.msra.mxu0 0.0
        %842 = vmatprep.subr.mxu0 0.0
        %843 = vmatpush1.msra.mxu0 0.0
        %844 = vmatprep.subr.mxu0 0.0
        %845 = vmatpush1.msra.mxu0 0.0
        %846 = vmatprep.subr.mxu0 0.0
        %847 = vmatpush1.msra.mxu0 0.0
        %848 = vmatprep.subr.mxu0 0.0
        %849 = vmatpush1.msra.mxu0 0.0
        %850 = vmatprep.subr.mxu0 0.0
        %851 = vmatpush1.msra.mxu0 0.0
        %852 = vmatprep.subr.mxu0 0.0
        %853 = vmatpush1.msra.mxu0 0.0
        %854 = vmatprep.subr.mxu0 0.0
        %855 = vmatpush1.msra.mxu0 0.0
        %856 = vmatprep.subr.mxu0 0.0
        %857 = vmatpush1.msra.mxu0 0.0
        %858 = vmatprep.subr.mxu0 0.0
        %859 = vmatpush1.msra.mxu0 0.0
        %860 = vmatprep.subr.mxu0 0.0
        %861 = vmatpush1.msra.mxu0 0.0
        %862 = vmatprep.mubr.f32.mxu0 0.0
        %863 = vmatmul.mubr.f32.gmra.mrb[0].mxu0 %v715
        %v864 = vpop.f32.mrb[0].mxu0
        %v865 = vadd.f32 %v640, %v864
        %v866 = vpop.f32.mrb[0].mxu0
        %v867 = vadd.f32 %v642, %v866
        %868 = vdwg.mxu0
        %869 = vmatprep.subr.mxu0 0.0
        %870 = vmatpush1.msra.mxu0 %v725
        %871 = vmatprep.subr.mxu0 0.0
        %872 = vmatpush1.msra.mxu0 0.0
        %873 = vmatprep.subr.mxu0 0.0
        %874 = vmatpush1.msra.mxu0 0.0
        %875 = vmatprep.subr.mxu0 0.0
        %876 = vmatpush1.msra.mxu0 0.0
        %877 = vmatprep.subr.mxu0 0.0
        %878 = vmatpush1.msra.mxu0 0.0
        %879 = vmatprep.subr.mxu0 0.0
        %880 = vmatpush1.msra.mxu0 0.0
        %881 = vmatprep.subr.mxu0 0.0
        %882 = vmatpush1.msra.mxu0 0.0
        %883 = vmatprep.subr.mxu0 0.0
        %884 = vmatpush1.msra.mxu0 0.0
        %885 = vmatprep.subr.mxu0 0.0
        %886 = vmatpush1.msra.mxu0 0.0
        %887 = vmatprep.subr.mxu0 0.0
        %888 = vmatpush1.msra.mxu0 0.0
        %889 = vmatprep.subr.mxu0 0.0
        %890 = vmatpush1.msra.mxu0 0.0
        %891 = vmatprep.subr.mxu0 0.0
        %892 = vmatpush1.msra.mxu0 0.0
        %893 = vmatprep.subr.mxu0 0.0
        %894 = vmatpush1.msra.mxu0 0.0
        %895 = vmatprep.subr.mxu0 0.0
        %896 = vmatpush1.msra.mxu0 0.0
        %897 = vmatprep.subr.mxu0 0.0
        %898 = vmatpush1.msra.mxu0 0.0
        %899 = vmatprep.subr.mxu0 0.0
        %900 = vmatpush1.msra.mxu0 0.0
        %901 = vmatprep.subr.mxu0 0.0
        %902 = vmatpush1.msra.mxu0 0.0
        %903 = vmatprep.subr.mxu0 0.0
        %904 = vmatpush1.msra.mxu0 0.0
        %905 = vmatprep.subr.mxu0 0.0
        %906 = vmatpush1.msra.mxu0 0.0
        %907 = vmatprep.subr.mxu0 0.0
        %908 = vmatpush1.msra.mxu0 0.0
        %909 = vmatprep.subr.mxu0 0.0
        %910 = vmatpush1.msra.mxu0 0.0
        %911 = vmatprep.subr.mxu0 0.0
        %912 = vmatpush1.msra.mxu0 0.0
        %913 = vmatprep.subr.mxu0 0.0
        %914 = vmatpush1.msra.mxu0 0.0
        %915 = vmatprep.subr.mxu0 0.0
        %916 = vmatpush1.msra.mxu0 0.0
        %917 = vmatprep.subr.mxu0 0.0
        %918 = vmatpush1.msra.mxu0 0.0
        %919 = vmatprep.subr.mxu0 0.0
        %920 = vmatpush1.msra.mxu0 0.0
        %921 = vmatprep.subr.mxu0 0.0
        %922 = vmatpush1.msra.mxu0 0.0
        %923 = vmatprep.subr.mxu0 0.0
        %924 = vmatpush1.msra.mxu0 0.0
        %925 = vmatprep.subr.mxu0 0.0
        %926 = vmatpush1.msra.mxu0 0.0
        %927 = vmatprep.subr.mxu0 0.0
        %928 = vmatpush1.msra.mxu0 0.0
        %929 = vmatprep.subr.mxu0 0.0
        %930 = vmatpush1.msra.mxu0 0.0
        %931 = vmatprep.subr.mxu0 0.0
        %932 = vmatpush1.msra.mxu0 0.0
        %933 = vmatprep.mubr.f32.mxu0 0.0
        %934 = vmatmul.mubr.f32.gmra.mrb[0].mxu0 %v715
        %v935 = vpop.f32.mrb[0].mxu0
        %v936 = vadd.f32 %v711, %v935
        %v937 = vpop.f32.mrb[0].mxu0
        %938 = vdwg.mxu0
        %s939 = scalar_lea.vmem %s4, 8
        %v940 = vld [vmem:[%s939] sm:$0xf]
        %941 = vrot.lane.b32.xlu0 %v379, 126
        %v942 = vpop.permute.xlu0 %941
        %943 = vrot.lane.b32.xlu0 %v470, 126
        %v944 = vpop.permute.xlu0 %943
        %945 = vrot.lane.b32.xlu0 %v380, 126
        %v946 = vpop.permute.xlu0 %945
        %947 = vrot.lane.b32.xlu0 %v471, 126
        %v948 = vpop.permute.xlu0 %947
        %949 = vrot.lane.b32.xlu0 %v381, 126
        %v950 = vpop.permute.xlu0 %949
        %vm951 = vcmask 1031168
        %v952 = vsel %vm951, %v942, %v944
        %v953 = vsel %vm951, %v944, %v946
        %v954 = vsel %vm951, %v946, %v948
        %v955 = vsel %vm951, %v948, %v950
        %v957 = vsel %vm487, %v940, 0
        %v959 = vsel %vm491, %v952, 0
        %v961 = vsel %vm491, %v953, 0
        %v963 = vsel %vm491, %v954, 0
        %v965 = vsel %vm491, %v955, 0
        %v967 = vsel %vm491, %v950, 0
        %969 = vmatprep.subr.mxu0 %v961
        %970 = vmatpush1.msra.mxu0 %v959
        %971 = vmatprep.subr.mxu0 0.0
        %972 = vmatpush1.msra.mxu0 0.0
        %973 = vmatprep.subr.mxu0 0.0
        %974 = vmatpush1.msra.mxu0 0.0
        %975 = vmatprep.subr.mxu0 0.0
        %976 = vmatpush1.msra.mxu0 0.0
        %977 = vmatprep.subr.mxu0 0.0
        %978 = vmatpush1.msra.mxu0 0.0
        %979 = vmatprep.subr.mxu0 0.0
        %980 = vmatpush1.msra.mxu0 0.0
        %981 = vmatprep.subr.mxu0 0.0
        %982 = vmatpush1.msra.mxu0 0.0
        %983 = vmatprep.subr.mxu0 0.0
        %984 = vmatpush1.msra.mxu0 0.0
        %985 = vmatprep.subr.mxu0 0.0
        %986 = vmatpush1.msra.mxu0 0.0
        %987 = vmatprep.subr.mxu0 0.0
        %988 = vmatpush1.msra.mxu0 0.0
        %989 = vmatprep.subr.mxu0 0.0
        %990 = vmatpush1.msra.mxu0 0.0
        %991 = vmatprep.subr.mxu0 0.0
        %992 = vmatpush1.msra.mxu0 0.0
        %993 = vmatprep.subr.mxu0 0.0
        %994 = vmatpush1.msra.mxu0 0.0
        %995 = vmatprep.subr.mxu0 0.0
        %996 = vmatpush1.msra.mxu0 0.0
        %997 = vmatprep.subr.mxu0 0.0
        %998 = vmatpush1.msra.mxu0 0.0
        %999 = vmatprep.subr.mxu0 0.0
        %1000 = vmatpush1.msra.mxu0 0.0
        %1001 = vmatprep.subr.mxu0 0.0
        %1002 = vmatpush1.msra.mxu0 0.0
        %1003 = vmatprep.subr.mxu0 0.0
        %1004 = vmatpush1.msra.mxu0 0.0
        %1005 = vmatprep.subr.mxu0 0.0
        %1006 = vmatpush1.msra.mxu0 0.0
        %1007 = vmatprep.subr.mxu0 0.0
        %1008 = vmatpush1.msra.mxu0 0.0
        %1009 = vmatprep.subr.mxu0 0.0
        %1010 = vmatpush1.msra.mxu0 0.0
        %1011 = vmatprep.subr.mxu0 0.0
        %1012 = vmatpush1.msra.mxu0 0.0
        %1013 = vmatprep.subr.mxu0 0.0
        %1014 = vmatpush1.msra.mxu0 0.0
        %1015 = vmatprep.subr.mxu0 0.0
        %1016 = vmatpush1.msra.mxu0 0.0
        %1017 = vmatprep.subr.mxu0 0.0
        %1018 = vmatpush1.msra.mxu0 0.0
        %1019 = vmatprep.subr.mxu0 0.0
        %1020 = vmatpush1.msra.mxu0 0.0
        %1021 = vmatprep.subr.mxu0 0.0
        %1022 = vmatpush1.msra.mxu0 0.0
        %1023 = vmatprep.subr.mxu0 0.0
        %1024 = vmatpush1.msra.mxu0 0.0
        %1025 = vmatprep.subr.mxu0 0.0
        %1026 = vmatpush1.msra.mxu0 0.0
        %1027 = vmatprep.subr.mxu0 0.0
        %1028 = vmatpush1.msra.mxu0 0.0
        %1029 = vmatprep.subr.mxu0 0.0
        %1030 = vmatpush1.msra.mxu0 0.0
        %1031 = vmatprep.subr.mxu0 0.0
        %1032 = vmatpush1.msra.mxu0 0.0
        %1033 = vmatprep.mubr.f32.mxu0 0.0
        %1034 = vmatmul.mubr.f32.gmra.mrb[0].mxu0 %v957
        %v1035 = vpop.f32.mrb[0].mxu0
        %v1036 = vadd.f32 0.0, %v1035
        %v1037 = vpop.f32.mrb[0].mxu0
        %v1038 = vadd.f32 0.0, %v1037
        %1039 = vdwg.mxu0
        %1040 = vmatprep.subr.mxu0 %v965
        %1041 = vmatpush1.msra.mxu0 %v963
        %1042 = vmatprep.subr.mxu0 0.0
        %1043 = vmatpush1.msra.mxu0 0.0
        %1044 = vmatprep.subr.mxu0 0.0
        %1045 = vmatpush1.msra.mxu0 0.0
        %1046 = vmatprep.subr.mxu0 0.0
        %1047 = vmatpush1.msra.mxu0 0.0
        %1048 = vmatprep.subr.mxu0 0.0
        %1049 = vmatpush1.msra.mxu0 0.0
        %1050 = vmatprep.subr.mxu0 0.0
        %1051 = vmatpush1.msra.mxu0 0.0
        %1052 = vmatprep.subr.mxu0 0.0
        %1053 = vmatpush1.msra.mxu0 0.0
        %1054 = vmatprep.subr.mxu0 0.0
        %1055 = vmatpush1.msra.mxu0 0.0
        %1056 = vmatprep.subr.mxu0 0.0
        %1057 = vmatpush1.msra.mxu0 0.0
        %1058 = vmatprep.subr.mxu0 0.0
        %1059 = vmatpush1.msra.mxu0 0.0
        %1060 = vmatprep.subr.mxu0 0.0
        %1061 = vmatpush1.msra.mxu0 0.0
        %1062 = vmatprep.subr.mxu0 0.0
        %1063 = vmatpush1.msra.mxu0 0.0
        %1064 = vmatprep.subr.mxu0 0.0
        %1065 = vmatpush1.msra.mxu0 0.0
        %1066 = vmatprep.subr.mxu0 0.0
        %1067 = vmatpush1.msra.mxu0 0.0
        %1068 = vmatprep.subr.mxu0 0.0
        %1069 = vmatpush1.msra.mxu0 0.0
        %1070 = vmatprep.subr.mxu0 0.0
        %1071 = vmatpush1.msra.mxu0 0.0
        %1072 = vmatprep.subr.mxu0 0.0
        %1073 = vmatpush1.msra.mxu0 0.0
        %1074 = vmatprep.subr.mxu0 0.0
        %1075 = vmatpush1.msra.mxu0 0.0
        %1076 = vmatprep.subr.mxu0 0.0
        %1077 = vmatpush1.msra.mxu0 0.0
        %1078 = vmatprep.subr.mxu0 0.0
        %1079 = vmatpush1.msra.mxu0 0.0
        %1080 = vmatprep.subr.mxu0 0.0
        %1081 = vmatpush1.msra.mxu0 0.0
        %1082 = vmatprep.subr.mxu0 0.0
        %1083 = vmatpush1.msra.mxu0 0.0
        %1084 = vmatprep.subr.mxu0 0.0
        %1085 = vmatpush1.msra.mxu0 0.0
        %1086 = vmatprep.subr.mxu0 0.0
        %1087 = vmatpush1.msra.mxu0 0.0
        %1088 = vmatprep.subr.mxu0 0.0
        %1089 = vmatpush1.msra.mxu0 0.0
        %1090 = vmatprep.subr.mxu0 0.0
        %1091 = vmatpush1.msra.mxu0 0.0
        %1092 = vmatprep.subr.mxu0 0.0
        %1093 = vmatpush1.msra.mxu0 0.0
        %1094 = vmatprep.subr.mxu0 0.0
        %1095 = vmatpush1.msra.mxu0 0.0
        %1096 = vmatprep.subr.mxu0 0.0
        %1097 = vmatpush1.msra.mxu0 0.0
        %1098 = vmatprep.subr.mxu0 0.0
        %1099 = vmatpush1.msra.mxu0 0.0
        %1100 = vmatprep.subr.mxu0 0.0
        %1101 = vmatpush1.msra.mxu0 0.0
        %1102 = vmatprep.subr.mxu0 0.0
        %1103 = vmatpush1.msra.mxu0 0.0
        %1104 = vmatprep.mubr.f32.mxu0 0.0
        %1105 = vmatmul.mubr.f32.gmra.mrb[0].mxu0 %v957
        %v1106 = vpop.f32.mrb[0].mxu0
        %v1107 = vadd.f32 0.0, %v1106
        %v1108 = vpop.f32.mrb[0].mxu0
        %v1109 = vadd.f32 0.0, %v1108
        %1110 = vdwg.mxu0
        %1111 = vmatprep.subr.mxu0 0.0
        %1112 = vmatpush1.msra.mxu0 %v967
        %1113 = vmatprep.subr.mxu0 0.0
        %1114 = vmatpush1.msra.mxu0 0.0
        %1115 = vmatprep.subr.mxu0 0.0
        %1116 = vmatpush1.msra.mxu0 0.0
        %1117 = vmatprep.subr.mxu0 0.0
        %1118 = vmatpush1.msra.mxu0 0.0
        %1119 = vmatprep.subr.mxu0 0.0
        %1120 = vmatpush1.msra.mxu0 0.0
        %1121 = vmatprep.subr.mxu0 0.0
        %1122 = vmatpush1.msra.mxu0 0.0
        %1123 = vmatprep.subr.mxu0 0.0
        %1124 = vmatpush1.msra.mxu0 0.0
        %1125 = vmatprep.subr.mxu0 0.0
        %1126 = vmatpush1.msra.mxu0 0.0
        %1127 = vmatprep.subr.mxu0 0.0
        %1128 = vmatpush1.msra.mxu0 0.0
        %1129 = vmatprep.subr.mxu0 0.0
        %1130 = vmatpush1.msra.mxu0 0.0
        %1131 = vmatprep.subr.mxu0 0.0
        %1132 = vmatpush1.msra.mxu0 0.0
        %1133 = vmatprep.subr.mxu0 0.0
        %1134 = vmatpush1.msra.mxu0 0.0
        %1135 = vmatprep.subr.mxu0 0.0
        %1136 = vmatpush1.msra.mxu0 0.0
        %1137 = vmatprep.subr.mxu0 0.0
        %1138 = vmatpush1.msra.mxu0 0.0
        %1139 = vmatprep.subr.mxu0 0.0
        %1140 = vmatpush1.msra.mxu0 0.0
        %1141 = vmatprep.subr.mxu0 0.0
        %1142 = vmatpush1.msra.mxu0 0.0
        %1143 = vmatprep.subr.mxu0 0.0
        %1144 = vmatpush1.msra.mxu0 0.0
        %1145 = vmatprep.subr.mxu0 0.0
        %1146 = vmatpush1.msra.mxu0 0.0
        %1147 = vmatprep.subr.mxu0 0.0
        %1148 = vmatpush1.msra.mxu0 0.0
        %1149 = vmatprep.subr.mxu0 0.0
        %1150 = vmatpush1.msra.mxu0 0.0
        %1151 = vmatprep.subr.mxu0 0.0
        %1152 = vmatpush1.msra.mxu0 0.0
        %1153 = vmatprep.subr.mxu0 0.0
        %1154 = vmatpush1.msra.mxu0 0.0
        %1155 = vmatprep.subr.mxu0 0.0
        %1156 = vmatpush1.msra.mxu0 0.0
        %1157 = vmatprep.subr.mxu0 0.0
        %1158 = vmatpush1.msra.mxu0 0.0
        %1159 = vmatprep.subr.mxu0 0.0
        %1160 = vmatpush1.msra.mxu0 0.0
        %1161 = vmatprep.subr.mxu0 0.0
        %1162 = vmatpush1.msra.mxu0 0.0
        %1163 = vmatprep.subr.mxu0 0.0
        %1164 = vmatpush1.msra.mxu0 0.0
        %1165 = vmatprep.subr.mxu0 0.0
        %1166 = vmatpush1.msra.mxu0 0.0
        %1167 = vmatprep.subr.mxu0 0.0
        %1168 = vmatpush1.msra.mxu0 0.0
        %1169 = vmatprep.subr.mxu0 0.0
        %1170 = vmatpush1.msra.mxu0 0.0
        %1171 = vmatprep.subr.mxu0 0.0
        %1172 = vmatpush1.msra.mxu0 0.0
        %1173 = vmatprep.subr.mxu0 0.0
        %1174 = vmatpush1.msra.mxu0 0.0
        %1175 = vmatprep.mubr.f32.mxu0 0.0
        %1176 = vmatmul.mubr.f32.gmra.mrb[0].mxu0 %v957
        %v1177 = vpop.f32.mrb[0].mxu0
        %v1178 = vadd.f32 0.0, %v1177
        %v1179 = vpop.f32.mrb[0].mxu0
        %1180 = vdwg.mxu0
        %v1181 = vadd.f32 %v794, %v1036
        %v1182 = vadd.f32 %v796, %v1038
        %v1183 = vadd.f32 %v865, %v1107
        %v1184 = vadd.f32 %v867, %v1109
        %v1185 = vadd.f32 %v936, %v1178
        %s1186 = scalar_lea.vmem %s4, 12
        %v1187 = vld [vmem:[%s1186] sm:$0xf]
        %1188 = vrot.lane.b32.xlu0 %v379, 104
        %v1189 = vpop.permute.xlu0 %1188
        %1190 = vrot.lane.b32.xlu0 %v470, 104
        %v1191 = vpop.permute.xlu0 %1190
        %1192 = vrot.lane.b32.xlu0 %v380, 104
        %v1193 = vpop.permute.xlu0 %1192
        %1194 = vrot.lane.b32.xlu0 %v471, 104
        %v1195 = vpop.permute.xlu0 %1194
        %1196 = vrot.lane.b32.xlu0 %v381, 104
        %v1197 = vpop.permute.xlu0 %1196
        %vm1198 = vcmask 850944
        %v1199 = vsel %vm1198, %v1189, %v1191
        %v1200 = vsel %vm1198, %v1191, %v1193
        %v1201 = vsel %vm1198, %v1193, %v1195
        %v1202 = vsel %vm1198, %v1195, %v1197
        %v1204 = vsel %vm487, %v1187, 0
        %v1206 = vsel %vm491, %v1199, 0
        %v1208 = vsel %vm491, %v1200, 0
        %v1210 = vsel %vm491, %v1201, 0
        %v1212 = vsel %vm491, %v1202, 0
        %v1214 = vsel %vm491, %v1197, 0
        %1216 = vmatprep.subr.mxu0 %v1208
        %1217 = vmatpush1.msra.mxu0 %v1206
        %1218 = vmatprep.subr.mxu0 0.0
        %1219 = vmatpush1.msra.mxu0 0.0
        %1220 = vmatprep.subr.mxu0 0.0
        %1221 = vmatpush1.msra.mxu0 0.0
        %1222 = vmatprep.subr.mxu0 0.0
        %1223 = vmatpush1.msra.mxu0 0.0
        %1224 = vmatprep.subr.mxu0 0.0
        %1225 = vmatpush1.msra.mxu0 0.0
        %1226 = vmatprep.subr.mxu0 0.0
        %1227 = vmatpush1.msra.mxu0 0.0
        %1228 = vmatprep.subr.mxu0 0.0
        %1229 = vmatpush1.msra.mxu0 0.0
        %1230 = vmatprep.subr.mxu0 0.0
        %1231 = vmatpush1.msra.mxu0 0.0
        %1232 = vmatprep.subr.mxu0 0.0
        %1233 = vmatpush1.msra.mxu0 0.0
        %1234 = vmatprep.subr.mxu0 0.0
        %1235 = vmatpush1.msra.mxu0 0.0
        %1236 = vmatprep.subr.mxu0 0.0
        %1237 = vmatpush1.msra.mxu0 0.0
        %1238 = vmatprep.subr.mxu0 0.0
        %1239 = vmatpush1.msra.mxu0 0.0
        %1240 = vmatprep.subr.mxu0 0.0
        %1241 = vmatpush1.msra.mxu0 0.0
        %1242 = vmatprep.subr.mxu0 0.0
        %1243 = vmatpush1.msra.mxu0 0.0
        %1244 = vmatprep.subr.mxu0 0.0
        %1245 = vmatpush1.msra.mxu0 0.0
        %1246 = vmatprep.subr.mxu0 0.0
        %1247 = vmatpush1.msra.mxu0 0.0
        %1248 = vmatprep.subr.mxu0 0.0
        %1249 = vmatpush1.msra.mxu0 0.0
        %1250 = vmatprep.subr.mxu0 0.0
        %1251 = vmatpush1.msra.mxu0 0.0
        %1252 = vmatprep.subr.mxu0 0.0
        %1253 = vmatpush1.msra.mxu0 0.0
        %1254 = vmatprep.subr.mxu0 0.0
        %1255 = vmatpush1.msra.mxu0 0.0
        %1256 = vmatprep.subr.mxu0 0.0
        %1257 = vmatpush1.msra.mxu0 0.0
        %1258 = vmatprep.subr.mxu0 0.0
        %1259 = vmatpush1.msra.mxu0 0.0
        %1260 = vmatprep.subr.mxu0 0.0
        %1261 = vmatpush1.msra.mxu0 0.0
        %1262 = vmatprep.subr.mxu0 0.0
        %1263 = vmatpush1.msra.mxu0 0.0
        %1264 = vmatprep.subr.mxu0 0.0
        %1265 = vmatpush1.msra.mxu0 0.0
        %1266 = vmatprep.subr.mxu0 0.0
        %1267 = vmatpush1.msra.mxu0 0.0
        %1268 = vmatprep.subr.mxu0 0.0
        %1269 = vmatpush1.msra.mxu0 0.0
        %1270 = vmatprep.subr.mxu0 0.0
        %1271 = vmatpush1.msra.mxu0 0.0
        %1272 = vmatprep.subr.mxu0 0.0
        %1273 = vmatpush1.msra.mxu0 0.0
        %1274 = vmatprep.subr.mxu0 0.0
        %1275 = vmatpush1.msra.mxu0 0.0
        %1276 = vmatprep.subr.mxu0 0.0
        %1277 = vmatpush1.msra.mxu0 0.0
        %1278 = vmatprep.subr.mxu0 0.0
        %1279 = vmatpush1.msra.mxu0 0.0
        %1280 = vmatprep.mubr.f32.mxu0 0.0
        %1281 = vmatmul.mubr.f32.gmra.mrb[0].mxu0 %v1204
        %v1282 = vpop.f32.mrb[0].mxu0
        %v1283 = vadd.f32 0.0, %v1282
        %v1284 = vpop.f32.mrb[0].mxu0
        %v1285 = vadd.f32 0.0, %v1284
        %1286 = vdwg.mxu0
        %1287 = vmatprep.subr.mxu0 %v1212
        %1288 = vmatpush1.msra.mxu0 %v1210
        %1289 = vmatprep.subr.mxu0 0.0
        %1290 = vmatpush1.msra.mxu0 0.0
        %1291 = vmatprep.subr.mxu0 0.0
        %1292 = vmatpush1.msra.mxu0 0.0
        %1293 = vmatprep.subr.mxu0 0.0
        %1294 = vmatpush1.msra.mxu0 0.0
        %1295 = vmatprep.subr.mxu0 0.0
        %1296 = vmatpush1.msra.mxu0 0.0
        %1297 = vmatprep.subr.mxu0 0.0
        %1298 = vmatpush1.msra.mxu0 0.0
        %1299 = vmatprep.subr.mxu0 0.0
        %1300 = vmatpush1.msra.mxu0 0.0
        %1301 = vmatprep.subr.mxu0 0.0
        %1302 = vmatpush1.msra.mxu0 0.0
        %1303 = vmatprep.subr.mxu0 0.0
        %1304 = vmatpush1.msra.mxu0 0.0
        %1305 = vmatprep.subr.mxu0 0.0
        %1306 = vmatpush1.msra.mxu0 0.0
        %1307 = vmatprep.subr.mxu0 0.0
        %1308 = vmatpush1.msra.mxu0 0.0
        %1309 = vmatprep.subr.mxu0 0.0
        %1310 = vmatpush1.msra.mxu0 0.0
        %1311 = vmatprep.subr.mxu0 0.0
        %1312 = vmatpush1.msra.mxu0 0.0
        %1313 = vmatprep.subr.mxu0 0.0
        %1314 = vmatpush1.msra.mxu0 0.0
        %1315 = vmatprep.subr.mxu0 0.0
        %1316 = vmatpush1.msra.mxu0 0.0
        %1317 = vmatprep.subr.mxu0 0.0
        %1318 = vmatpush1.msra.mxu0 0.0
        %1319 = vmatprep.subr.mxu0 0.0
        %1320 = vmatpush1.msra.mxu0 0.0
        %1321 = vmatprep.subr.mxu0 0.0
        %1322 = vmatpush1.msra.mxu0 0.0
        %1323 = vmatprep.subr.mxu0 0.0
        %1324 = vmatpush1.msra.mxu0 0.0
        %1325 = vmatprep.subr.mxu0 0.0
        %1326 = vmatpush1.msra.mxu0 0.0
        %1327 = vmatprep.subr.mxu0 0.0
        %1328 = vmatpush1.msra.mxu0 0.0
        %1329 = vmatprep.subr.mxu0 0.0
        %1330 = vmatpush1.msra.mxu0 0.0
        %1331 = vmatprep.subr.mxu0 0.0
        %1332 = vmatpush1.msra.mxu0 0.0
        %1333 = vmatprep.subr.mxu0 0.0
        %1334 = vmatpush1.msra.mxu0 0.0
        %1335 = vmatprep.subr.mxu0 0.0
        %1336 = vmatpush1.msra.mxu0 0.0
        %1337 = vmatprep.subr.mxu0 0.0
        %1338 = vmatpush1.msra.mxu0 0.0
        %1339 = vmatprep.subr.mxu0 0.0
        %1340 = vmatpush1.msra.mxu0 0.0
        %1341 = vmatprep.subr.mxu0 0.0
        %1342 = vmatpush1.msra.mxu0 0.0
        %1343 = vmatprep.subr.mxu0 0.0
        %1344 = vmatpush1.msra.mxu0 0.0
        %1345 = vmatprep.subr.mxu0 0.0
        %1346 = vmatpush1.msra.mxu0 0.0
        %1347 = vmatprep.subr.mxu0 0.0
        %1348 = vmatpush1.msra.mxu0 0.0
        %1349 = vmatprep.subr.mxu0 0.0
        %1350 = vmatpush1.msra.mxu0 0.0
        %1351 = vmatprep.mubr.f32.mxu0 0.0
        %1352 = vmatmul.mubr.f32.gmra.mrb[0].mxu0 %v1204
        %v1353 = vpop.f32.mrb[0].mxu0
        %v1354 = vadd.f32 0.0, %v1353
        %v1355 = vpop.f32.mrb[0].mxu0
        %v1356 = vadd.f32 0.0, %v1355
        %1357 = vdwg.mxu0
        %1358 = vmatprep.subr.mxu0 0.0
        %1359 = vmatpush1.msra.mxu0 %v1214
        %1360 = vmatprep.subr.mxu0 0.0
        %1361 = vmatpush1.msra.mxu0 0.0
        %1362 = vmatprep.subr.mxu0 0.0
        %1363 = vmatpush1.msra.mxu0 0.0
        %1364 = vmatprep.subr.mxu0 0.0
        %1365 = vmatpush1.msra.mxu0 0.0
        %1366 = vmatprep.subr.mxu0 0.0
        %1367 = vmatpush1.msra.mxu0 0.0
        %1368 = vmatprep.subr.mxu0 0.0
        %1369 = vmatpush1.msra.mxu0 0.0
        %1370 = vmatprep.subr.mxu0 0.0
        %1371 = vmatpush1.msra.mxu0 0.0
        %1372 = vmatprep.subr.mxu0 0.0
        %1373 = vmatpush1.msra.mxu0 0.0
        %1374 = vmatprep.subr.mxu0 0.0
        %1375 = vmatpush1.msra.mxu0 0.0
        %1376 = vmatprep.subr.mxu0 0.0
        %1377 = vmatpush1.msra.mxu0 0.0
        %1378 = vmatprep.subr.mxu0 0.0
        %1379 = vmatpush1.msra.mxu0 0.0
        %1380 = vmatprep.subr.mxu0 0.0
        %1381 = vmatpush1.msra.mxu0 0.0
        %1382 = vmatprep.subr.mxu0 0.0
        %1383 = vmatpush1.msra.mxu0 0.0
        %1384 = vmatprep.subr.mxu0 0.0
        %1385 = vmatpush1.msra.mxu0 0.0
        %1386 = vmatprep.subr.mxu0 0.0
        %1387 = vmatpush1.msra.mxu0 0.0
        %1388 = vmatprep.subr.mxu0 0.0
        %1389 = vmatpush1.msra.mxu0 0.0
        %1390 = vmatprep.subr.mxu0 0.0
        %1391 = vmatpush1.msra.mxu0 0.0
        %1392 = vmatprep.subr.mxu0 0.0
        %1393 = vmatpush1.msra.mxu0 0.0
        %1394 = vmatprep.subr.mxu0 0.0
        %1395 = vmatpush1.msra.mxu0 0.0
        %1396 = vmatprep.subr.mxu0 0.0
        %1397 = vmatpush1.msra.mxu0 0.0
        %1398 = vmatprep.subr.mxu0 0.0
        %1399 = vmatpush1.msra.mxu0 0.0
        %1400 = vmatprep.subr.mxu0 0.0
        %1401 = vmatpush1.msra.mxu0 0.0
        %1402 = vmatprep.subr.mxu0 0.0
        %1403 = vmatpush1.msra.mxu0 0.0
        %1404 = vmatprep.subr.mxu0 0.0
        %1405 = vmatpush1.msra.mxu0 0.0
        %1406 = vmatprep.subr.mxu0 0.0
        %1407 = vmatpush1.msra.mxu0 0.0
        %1408 = vmatprep.subr.mxu0 0.0
        %1409 = vmatpush1.msra.mxu0 0.0
        %1410 = vmatprep.subr.mxu0 0.0
        %1411 = vmatpush1.msra.mxu0 0.0
        %1412 = vmatprep.subr.mxu0 0.0
        %1413 = vmatpush1.msra.mxu0 0.0
        %1414 = vmatprep.subr.mxu0 0.0
        %1415 = vmatpush1.msra.mxu0 0.0
        %1416 = vmatprep.subr.mxu0 0.0
        %1417 = vmatpush1.msra.mxu0 0.0
        %1418 = vmatprep.subr.mxu0 0.0
        %1419 = vmatpush1.msra.mxu0 0.0
        %1420 = vmatprep.subr.mxu0 0.0
        %1421 = vmatpush1.msra.mxu0 0.0
        %1422 = vmatprep.mubr.f32.mxu0 0.0
        %1423 = vmatmul.mubr.f32.gmra.mrb[0].mxu0 %v1204
        %v1424 = vpop.f32.mrb[0].mxu0
        %v1425 = vadd.f32 0.0, %v1424
        %v1426 = vpop.f32.mrb[0].mxu0
        %1427 = vdwg.mxu0
        %v1428 = vadd.f32 %v1181, %v1283
        %v1429 = vadd.f32 %v1182, %v1285
        %v1430 = vadd.f32 %v1183, %v1354
        %v1431 = vadd.f32 %v1184, %v1356
        %v1432 = vadd.f32 %v1185, %v1425
        %s1433 = scalar_lea.vmem %s4, 16
        %v1434 = vld [vmem:[%s1433] sm:$0xf]
        %1435 = vrot.lane.b32.xlu0 %v379, 103
        %v1436 = vpop.permute.xlu0 %1435
        %1437 = vrot.lane.b32.xlu0 %v470, 103
        %v1438 = vpop.permute.xlu0 %1437
        %1439 = vrot.lane.b32.xlu0 %v380, 103
        %v1440 = vpop.permute.xlu0 %1439
        %1441 = vrot.lane.b32.xlu0 %v471, 103
        %v1442 = vpop.permute.xlu0 %1441
        %1443 = vrot.lane.b32.xlu0 %v381, 103
        %v1444 = vpop.permute.xlu0 %1443
        %vm1445 = vcmask 842752
        %v1446 = vsel %vm1445, %v1436, %v1438
        %v1447 = vsel %vm1445, %v1438, %v1440
        %v1448 = vsel %vm1445, %v1440, %v1442
        %v1449 = vsel %vm1445, %v1442, %v1444
        %v1451 = vsel %vm487, %v1434, 0
        %v1453 = vsel %vm491, %v1446, 0
        %v1455 = vsel %vm491, %v1447, 0
        %v1457 = vsel %vm491, %v1448, 0
        %v1459 = vsel %vm491, %v1449, 0
        %v1461 = vsel %vm491, %v1444, 0
        %1463 = vmatprep.subr.mxu0 %v1455
        %1464 = vmatpush1.msra.mxu0 %v1453
        %1465 = vmatprep.subr.mxu0 0.0
        %1466 = vmatpush1.msra.mxu0 0.0
        %1467 = vmatprep.subr.mxu0 0.0
        %1468 = vmatpush1.msra.mxu0 0.0
        %1469 = vmatprep.subr.mxu0 0.0
        %1470 = vmatpush1.msra.mxu0 0.0
        %1471 = vmatprep.subr.mxu0 0.0
        %1472 = vmatpush1.msra.mxu0 0.0
        %1473 = vmatprep.subr.mxu0 0.0
        %1474 = vmatpush1.msra.mxu0 0.0
        %1475 = vmatprep.subr.mxu0 0.0
        %1476 = vmatpush1.msra.mxu0 0.0
        %1477 = vmatprep.subr.mxu0 0.0
        %1478 = vmatpush1.msra.mxu0 0.0
        %1479 = vmatprep.subr.mxu0 0.0
        %1480 = vmatpush1.msra.mxu0 0.0
        %1481 = vmatprep.subr.mxu0 0.0
        %1482 = vmatpush1.msra.mxu0 0.0
        %1483 = vmatprep.subr.mxu0 0.0
        %1484 = vmatpush1.msra.mxu0 0.0
        %1485 = vmatprep.subr.mxu0 0.0
        %1486 = vmatpush1.msra.mxu0 0.0
        %1487 = vmatprep.subr.mxu0 0.0
        %1488 = vmatpush1.msra.mxu0 0.0
        %1489 = vmatprep.subr.mxu0 0.0
        %1490 = vmatpush1.msra.mxu0 0.0
        %1491 = vmatprep.subr.mxu0 0.0
        %1492 = vmatpush1.msra.mxu0 0.0
        %1493 = vmatprep.subr.mxu0 0.0
        %1494 = vmatpush1.msra.mxu0 0.0
        %1495 = vmatprep.subr.mxu0 0.0
        %1496 = vmatpush1.msra.mxu0 0.0
        %1497 = vmatprep.subr.mxu0 0.0
        %1498 = vmatpush1.msra.mxu0 0.0
        %1499 = vmatprep.subr.mxu0 0.0
        %1500 = vmatpush1.msra.mxu0 0.0
        %1501 = vmatprep.subr.mxu0 0.0
        %1502 = vmatpush1.msra.mxu0 0.0
        %1503 = vmatprep.subr.mxu0 0.0
        %1504 = vmatpush1.msra.mxu0 0.0
        %1505 = vmatprep.subr.mxu0 0.0
        %1506 = vmatpush1.msra.mxu0 0.0
        %1507 = vmatprep.subr.mxu0 0.0
        %1508 = vmatpush1.msra.mxu0 0.0
        %1509 = vmatprep.subr.mxu0 0.0
        %1510 = vmatpush1.msra.mxu0 0.0
        %1511 = vmatprep.subr.mxu0 0.0
        %1512 = vmatpush1.msra.mxu0 0.0
        %1513 = vmatprep.subr.mxu0 0.0
        %1514 = vmatpush1.msra.mxu0 0.0
        %1515 = vmatprep.subr.mxu0 0.0
        %1516 = vmatpush1.msra.mxu0 0.0
        %1517 = vmatprep.subr.mxu0 0.0
        %1518 = vmatpush1.msra.mxu0 0.0
        %1519 = vmatprep.subr.mxu0 0.0
        %1520 = vmatpush1.msra.mxu0 0.0
        %1521 = vmatprep.subr.mxu0 0.0
        %1522 = vmatpush1.msra.mxu0 0.0
        %1523 = vmatprep.subr.mxu0 0.0
        %1524 = vmatpush1.msra.mxu0 0.0
        %1525 = vmatprep.subr.mxu0 0.0
        %1526 = vmatpush1.msra.mxu0 0.0
        %1527 = vmatprep.mubr.f32.mxu0 0.0
        %1528 = vmatmul.mubr.f32.gmra.mrb[0].mxu0 %v1451
        %v1529 = vpop.f32.mrb[0].mxu0
        %v1530 = vadd.f32 0.0, %v1529
        %v1531 = vpop.f32.mrb[0].mxu0
        %v1532 = vadd.f32 0.0, %v1531
        %1533 = vdwg.mxu0
        %1534 = vmatprep.subr.mxu0 %v1459
        %1535 = vmatpush1.msra.mxu0 %v1457
        %1536 = vmatprep.subr.mxu0 0.0
        %1537 = vmatpush1.msra.mxu0 0.0
        %1538 = vmatprep.subr.mxu0 0.0
        %1539 = vmatpush1.msra.mxu0 0.0
        %1540 = vmatprep.subr.mxu0 0.0
        %1541 = vmatpush1.msra.mxu0 0.0
        %1542 = vmatprep.subr.mxu0 0.0
        %1543 = vmatpush1.msra.mxu0 0.0
        %1544 = vmatprep.subr.mxu0 0.0
        %1545 = vmatpush1.msra.mxu0 0.0
        %1546 = vmatprep.subr.mxu0 0.0
        %1547 = vmatpush1.msra.mxu0 0.0
        %1548 = vmatprep.subr.mxu0 0.0
        %1549 = vmatpush1.msra.mxu0 0.0
        %1550 = vmatprep.subr.mxu0 0.0
        %1551 = vmatpush1.msra.mxu0 0.0
        %1552 = vmatprep.subr.mxu0 0.0
        %1553 = vmatpush1.msra.mxu0 0.0
        %1554 = vmatprep.subr.mxu0 0.0
        %1555 = vmatpush1.msra.mxu0 0.0
        %1556 = vmatprep.subr.mxu0 0.0
        %1557 = vmatpush1.msra.mxu0 0.0
        %1558 = vmatprep.subr.mxu0 0.0
        %1559 = vmatpush1.msra.mxu0 0.0
        %1560 = vmatprep.subr.mxu0 0.0
        %1561 = vmatpush1.msra.mxu0 0.0
        %1562 = vmatprep.subr.mxu0 0.0
        %1563 = vmatpush1.msra.mxu0 0.0
        %1564 = vmatprep.subr.mxu0 0.0
        %1565 = vmatpush1.msra.mxu0 0.0
        %1566 = vmatprep.subr.mxu0 0.0
        %1567 = vmatpush1.msra.mxu0 0.0
        %1568 = vmatprep.subr.mxu0 0.0
        %1569 = vmatpush1.msra.mxu0 0.0
        %1570 = vmatprep.subr.mxu0 0.0
        %1571 = vmatpush1.msra.mxu0 0.0
        %1572 = vmatprep.subr.mxu0 0.0
        %1573 = vmatpush1.msra.mxu0 0.0
        %1574 = vmatprep.subr.mxu0 0.0
        %1575 = vmatpush1.msra.mxu0 0.0
        %1576 = vmatprep.subr.mxu0 0.0
        %1577 = vmatpush1.msra.mxu0 0.0
        %1578 = vmatprep.subr.mxu0 0.0
        %1579 = vmatpush1.msra.mxu0 0.0
        %1580 = vmatprep.subr.mxu0 0.0
        %1581 = vmatpush1.msra.mxu0 0.0
        %1582 = vmatprep.subr.mxu0 0.0
        %1583 = vmatpush1.msra.mxu0 0.0
        %1584 = vmatprep.subr.mxu0 0.0
        %1585 = vmatpush1.msra.mxu0 0.0
        %1586 = vmatprep.subr.mxu0 0.0
        %1587 = vmatpush1.msra.mxu0 0.0
        %1588 = vmatprep.subr.mxu0 0.0
        %1589 = vmatpush1.msra.mxu0 0.0
        %1590 = vmatprep.subr.mxu0 0.0
        %1591 = vmatpush1.msra.mxu0 0.0
        %1592 = vmatprep.subr.mxu0 0.0
        %1593 = vmatpush1.msra.mxu0 0.0
        %1594 = vmatprep.subr.mxu0 0.0
        %1595 = vmatpush1.msra.mxu0 0.0
        %1596 = vmatprep.subr.mxu0 0.0
        %1597 = vmatpush1.msra.mxu0 0.0
        %1598 = vmatprep.mubr.f32.mxu0 0.0
        %1599 = vmatmul.mubr.f32.gmra.mrb[0].mxu0 %v1451
        %v1600 = vpop.f32.mrb[0].mxu0
        %v1601 = vadd.f32 0.0, %v1600
        %v1602 = vpop.f32.mrb[0].mxu0
        %v1603 = vadd.f32 0.0, %v1602
        %1604 = vdwg.mxu0
        %1605 = vmatprep.subr.mxu0 0.0
        %1606 = vmatpush1.msra.mxu0 %v1461
        %1607 = vmatprep.subr.mxu0 0.0
        %1608 = vmatpush1.msra.mxu0 0.0
        %1609 = vmatprep.subr.mxu0 0.0
        %1610 = vmatpush1.msra.mxu0 0.0
        %1611 = vmatprep.subr.mxu0 0.0
        %1612 = vmatpush1.msra.mxu0 0.0
        %1613 = vmatprep.subr.mxu0 0.0
        %1614 = vmatpush1.msra.mxu0 0.0
        %1615 = vmatprep.subr.mxu0 0.0
        %1616 = vmatpush1.msra.mxu0 0.0
        %1617 = vmatprep.subr.mxu0 0.0
        %1618 = vmatpush1.msra.mxu0 0.0
        %1619 = vmatprep.subr.mxu0 0.0
        %1620 = vmatpush1.msra.mxu0 0.0
        %1621 = vmatprep.subr.mxu0 0.0
        %1622 = vmatpush1.msra.mxu0 0.0
        %1623 = vmatprep.subr.mxu0 0.0
        %1624 = vmatpush1.msra.mxu0 0.0
        %1625 = vmatprep.subr.mxu0 0.0
        %1626 = vmatpush1.msra.mxu0 0.0
        %1627 = vmatprep.subr.mxu0 0.0
        %1628 = vmatpush1.msra.mxu0 0.0
        %1629 = vmatprep.subr.mxu0 0.0
        %1630 = vmatpush1.msra.mxu0 0.0
        %1631 = vmatprep.subr.mxu0 0.0
        %1632 = vmatpush1.msra.mxu0 0.0
        %1633 = vmatprep.subr.mxu0 0.0
        %1634 = vmatpush1.msra.mxu0 0.0
        %1635 = vmatprep.subr.mxu0 0.0
        %1636 = vmatpush1.msra.mxu0 0.0
        %1637 = vmatprep.subr.mxu0 0.0
        %1638 = vmatpush1.msra.mxu0 0.0
        %1639 = vmatprep.subr.mxu0 0.0
        %1640 = vmatpush1.msra.mxu0 0.0
        %1641 = vmatprep.subr.mxu0 0.0
        %1642 = vmatpush1.msra.mxu0 0.0
        %1643 = vmatprep.subr.mxu0 0.0
        %1644 = vmatpush1.msra.mxu0 0.0
        %1645 = vmatprep.subr.mxu0 0.0
        %1646 = vmatpush1.msra.mxu0 0.0
        %1647 = vmatprep.subr.mxu0 0.0
        %1648 = vmatpush1.msra.mxu0 0.0
        %1649 = vmatprep.subr.mxu0 0.0
        %1650 = vmatpush1.msra.mxu0 0.0
        %1651 = vmatprep.subr.mxu0 0.0
        %1652 = vmatpush1.msra.mxu0 0.0
        %1653 = vmatprep.subr.mxu0 0.0
        %1654 = vmatpush1.msra.mxu0 0.0
        %1655 = vmatprep.subr.mxu0 0.0
        %1656 = vmatpush1.msra.mxu0 0.0
        %1657 = vmatprep.subr.mxu0 0.0
        %1658 = vmatpush1.msra.mxu0 0.0
        %1659 = vmatprep.subr.mxu0 0.0
        %1660 = vmatpush1.msra.mxu0 0.0
        %1661 = vmatprep.subr.mxu0 0.0
        %1662 = vmatpush1.msra.mxu0 0.0
        %1663 = vmatprep.subr.mxu0 0.0
        %1664 = vmatpush1.msra.mxu0 0.0
        %1665 = vmatprep.subr.mxu0 0.0
        %1666 = vmatpush1.msra.mxu0 0.0
        %1667 = vmatprep.subr.mxu0 0.0
        %1668 = vmatpush1.msra.mxu0 0.0
        %1669 = vmatprep.mubr.f32.mxu0 0.0
        %1670 = vmatmul.mubr.f32.gmra.mrb[0].mxu0 %v1451
        %v1671 = vpop.f32.mrb[0].mxu0
        %v1672 = vadd.f32 0.0, %v1671
        %v1673 = vpop.f32.mrb[0].mxu0
        %1674 = vdwg.mxu0
        %v1675 = vadd.f32 %v1428, %v1530
        %v1676 = vadd.f32 %v1429, %v1532
        %v1677 = vadd.f32 %v1430, %v1601
        %v1678 = vadd.f32 %v1431, %v1603
        %v1679 = vadd.f32 %v1432, %v1672
        %s1680 = scalar_lea.vmem %s4, 20
        %v1681 = vld [vmem:[%s1680] sm:$0xf]
        %1682 = vrot.lane.b32.xlu0 %v379, 102
        %v1683 = vpop.permute.xlu0 %1682
        %1684 = vrot.lane.b32.xlu0 %v470, 102
        %v1685 = vpop.permute.xlu0 %1684
        %1686 = vrot.lane.b32.xlu0 %v380, 102
        %v1687 = vpop.permute.xlu0 %1686
        %1688 = vrot.lane.b32.xlu0 %v471, 102
        %v1689 = vpop.permute.xlu0 %1688
        %1690 = vrot.lane.b32.xlu0 %v381, 102
        %v1691 = vpop.permute.xlu0 %1690
        %vm1692 = vcmask 834560
        %v1693 = vsel %vm1692, %v1683, %v1685
        %v1694 = vsel %vm1692, %v1685, %v1687
        %v1695 = vsel %vm1692, %v1687, %v1689
        %v1696 = vsel %vm1692, %v1689, %v1691
        %v1698 = vsel %vm487, %v1681, 0
        %v1700 = vsel %vm491, %v1693, 0
        %v1702 = vsel %vm491, %v1694, 0
        %v1704 = vsel %vm491, %v1695, 0
        %v1706 = vsel %vm491, %v1696, 0
        %v1708 = vsel %vm491, %v1691, 0
        %1710 = vmatprep.subr.mxu0 %v1702
        %1711 = vmatpush1.msra.mxu0 %v1700
        %1712 = vmatprep.subr.mxu0 0.0
        %1713 = vmatpush1.msra.mxu0 0.0
        %1714 = vmatprep.subr.mxu0 0.0
        %1715 = vmatpush1.msra.mxu0 0.0
        %1716 = vmatprep.subr.mxu0 0.0
        %1717 = vmatpush1.msra.mxu0 0.0
        %1718 = vmatprep.subr.mxu0 0.0
        %1719 = vmatpush1.msra.mxu0 0.0
        %1720 = vmatprep.subr.mxu0 0.0
        %1721 = vmatpush1.msra.mxu0 0.0
        %1722 = vmatprep.subr.mxu0 0.0
        %1723 = vmatpush1.msra.mxu0 0.0
        %1724 = vmatprep.subr.mxu0 0.0
        %1725 = vmatpush1.msra.mxu0 0.0
        %1726 = vmatprep.subr.mxu0 0.0
        %1727 = vmatpush1.msra.mxu0 0.0
        %1728 = vmatprep.subr.mxu0 0.0
        %1729 = vmatpush1.msra.mxu0 0.0
        %1730 = vmatprep.subr.mxu0 0.0
        %1731 = vmatpush1.msra.mxu0 0.0
        %1732 = vmatprep.subr.mxu0 0.0
        %1733 = vmatpush1.msra.mxu0 0.0
        %1734 = vmatprep.subr.mxu0 0.0
        %1735 = vmatpush1.msra.mxu0 0.0
        %1736 = vmatprep.subr.mxu0 0.0
        %1737 = vmatpush1.msra.mxu0 0.0
        %1738 = vmatprep.subr.mxu0 0.0
        %1739 = vmatpush1.msra.mxu0 0.0
        %1740 = vmatprep.subr.mxu0 0.0
        %1741 = vmatpush1.msra.mxu0 0.0
        %1742 = vmatprep.subr.mxu0 0.0
        %1743 = vmatpush1.msra.mxu0 0.0
        %1744 = vmatprep.subr.mxu0 0.0
        %1745 = vmatpush1.msra.mxu0 0.0
        %1746 = vmatprep.subr.mxu0 0.0
        %1747 = vmatpush1.msra.mxu0 0.0
        %1748 = vmatprep.subr.mxu0 0.0
        %1749 = vmatpush1.msra.mxu0 0.0
        %1750 = vmatprep.subr.mxu0 0.0
        %1751 = vmatpush1.msra.mxu0 0.0
        %1752 = vmatprep.subr.mxu0 0.0
        %1753 = vmatpush1.msra.mxu0 0.0
        %1754 = vmatprep.subr.mxu0 0.0
        %1755 = vmatpush1.msra.mxu0 0.0
        %1756 = vmatprep.subr.mxu0 0.0
        %1757 = vmatpush1.msra.mxu0 0.0
        %1758 = vmatprep.subr.mxu0 0.0
        %1759 = vmatpush1.msra.mxu0 0.0
        %1760 = vmatprep.subr.mxu0 0.0
        %1761 = vmatpush1.msra.mxu0 0.0
        %1762 = vmatprep.subr.mxu0 0.0
        %1763 = vmatpush1.msra.mxu0 0.0
        %1764 = vmatprep.subr.mxu0 0.0
        %1765 = vmatpush1.msra.mxu0 0.0
        %1766 = vmatprep.subr.mxu0 0.0
        %1767 = vmatpush1.msra.mxu0 0.0
        %1768 = vmatprep.subr.mxu0 0.0
        %1769 = vmatpush1.msra.mxu0 0.0
        %1770 = vmatprep.subr.mxu0 0.0
        %1771 = vmatpush1.msra.mxu0 0.0
        %1772 = vmatprep.subr.mxu0 0.0
        %1773 = vmatpush1.msra.mxu0 0.0
        %1774 = vmatprep.mubr.f32.mxu0 0.0
        %1775 = vmatmul.mubr.f32.gmra.mrb[0].mxu0 %v1698
        %v1776 = vpop.f32.mrb[0].mxu0
        %v1777 = vadd.f32 0.0, %v1776
        %v1778 = vpop.f32.mrb[0].mxu0
        %v1779 = vadd.f32 0.0, %v1778
        %1780 = vdwg.mxu0
        %1781 = vmatprep.subr.mxu0 %v1706
        %1782 = vmatpush1.msra.mxu0 %v1704
        %1783 = vmatprep.subr.mxu0 0.0
        %1784 = vmatpush1.msra.mxu0 0.0
        %1785 = vmatprep.subr.mxu0 0.0
        %1786 = vmatpush1.msra.mxu0 0.0
        %1787 = vmatprep.subr.mxu0 0.0
        %1788 = vmatpush1.msra.mxu0 0.0
        %1789 = vmatprep.subr.mxu0 0.0
        %1790 = vmatpush1.msra.mxu0 0.0
        %1791 = vmatprep.subr.mxu0 0.0
        %1792 = vmatpush1.msra.mxu0 0.0
        %1793 = vmatprep.subr.mxu0 0.0
        %1794 = vmatpush1.msra.mxu0 0.0
        %1795 = vmatprep.subr.mxu0 0.0
        %1796 = vmatpush1.msra.mxu0 0.0
        %1797 = vmatprep.subr.mxu0 0.0
        %1798 = vmatpush1.msra.mxu0 0.0
        %1799 = vmatprep.subr.mxu0 0.0
        %1800 = vmatpush1.msra.mxu0 0.0
        %1801 = vmatprep.subr.mxu0 0.0
        %1802 = vmatpush1.msra.mxu0 0.0
        %1803 = vmatprep.subr.mxu0 0.0
        %1804 = vmatpush1.msra.mxu0 0.0
        %1805 = vmatprep.subr.mxu0 0.0
        %1806 = vmatpush1.msra.mxu0 0.0
        %1807 = vmatprep.subr.mxu0 0.0
        %1808 = vmatpush1.msra.mxu0 0.0
        %1809 = vmatprep.subr.mxu0 0.0
        %1810 = vmatpush1.msra.mxu0 0.0
        %1811 = vmatprep.subr.mxu0 0.0
        %1812 = vmatpush1.msra.mxu0 0.0
        %1813 = vmatprep.subr.mxu0 0.0
        %1814 = vmatpush1.msra.mxu0 0.0
        %1815 = vmatprep.subr.mxu0 0.0
        %1816 = vmatpush1.msra.mxu0 0.0
        %1817 = vmatprep.subr.mxu0 0.0
        %1818 = vmatpush1.msra.mxu0 0.0
        %1819 = vmatprep.subr.mxu0 0.0
        %1820 = vmatpush1.msra.mxu0 0.0
        %1821 = vmatprep.subr.mxu0 0.0
        %1822 = vmatpush1.msra.mxu0 0.0
        %1823 = vmatprep.subr.mxu0 0.0
        %1824 = vmatpush1.msra.mxu0 0.0
        %1825 = vmatprep.subr.mxu0 0.0
        %1826 = vmatpush1.msra.mxu0 0.0
        %1827 = vmatprep.subr.mxu0 0.0
        %1828 = vmatpush1.msra.mxu0 0.0
        %1829 = vmatprep.subr.mxu0 0.0
        %1830 = vmatpush1.msra.mxu0 0.0
        %1831 = vmatprep.subr.mxu0 0.0
        %1832 = vmatpush1.msra.mxu0 0.0
        %1833 = vmatprep.subr.mxu0 0.0
        %1834 = vmatpush1.msra.mxu0 0.0
        %1835 = vmatprep.subr.mxu0 0.0
        %1836 = vmatpush1.msra.mxu0 0.0
        %1837 = vmatprep.subr.mxu0 0.0
        %1838 = vmatpush1.msra.mxu0 0.0
        %1839 = vmatprep.subr.mxu0 0.0
        %1840 = vmatpush1.msra.mxu0 0.0
        %1841 = vmatprep.subr.mxu0 0.0
        %1842 = vmatpush1.msra.mxu0 0.0
        %1843 = vmatprep.subr.mxu0 0.0
        %1844 = vmatpush1.msra.mxu0 0.0
        %1845 = vmatprep.mubr.f32.mxu0 0.0
        %1846 = vmatmul.mubr.f32.gmra.mrb[0].mxu0 %v1698
        %v1847 = vpop.f32.mrb[0].mxu0
        %v1848 = vadd.f32 0.0, %v1847
        %v1849 = vpop.f32.mrb[0].mxu0
        %v1850 = vadd.f32 0.0, %v1849
        %1851 = vdwg.mxu0
        %1852 = vmatprep.subr.mxu0 0.0
        %1853 = vmatpush1.msra.mxu0 %v1708
        %1854 = vmatprep.subr.mxu0 0.0
        %1855 = vmatpush1.msra.mxu0 0.0
        %1856 = vmatprep.subr.mxu0 0.0
        %1857 = vmatpush1.msra.mxu0 0.0
        %1858 = vmatprep.subr.mxu0 0.0
        %1859 = vmatpush1.msra.mxu0 0.0
        %1860 = vmatprep.subr.mxu0 0.0
        %1861 = vmatpush1.msra.mxu0 0.0
        %1862 = vmatprep.subr.mxu0 0.0
        %1863 = vmatpush1.msra.mxu0 0.0
        %1864 = vmatprep.subr.mxu0 0.0
        %1865 = vmatpush1.msra.mxu0 0.0
        %1866 = vmatprep.subr.mxu0 0.0
        %1867 = vmatpush1.msra.mxu0 0.0
        %1868 = vmatprep.subr.mxu0 0.0
        %1869 = vmatpush1.msra.mxu0 0.0
        %1870 = vmatprep.subr.mxu0 0.0
        %1871 = vmatpush1.msra.mxu0 0.0
        %1872 = vmatprep.subr.mxu0 0.0
        %1873 = vmatpush1.msra.mxu0 0.0
        %1874 = vmatprep.subr.mxu0 0.0
        %1875 = vmatpush1.msra.mxu0 0.0
        %1876 = vmatprep.subr.mxu0 0.0
        %1877 = vmatpush1.msra.mxu0 0.0
        %1878 = vmatprep.subr.mxu0 0.0
        %1879 = vmatpush1.msra.mxu0 0.0
        %1880 = vmatprep.subr.mxu0 0.0
        %1881 = vmatpush1.msra.mxu0 0.0
        %1882 = vmatprep.subr.mxu0 0.0
        %1883 = vmatpush1.msra.mxu0 0.0
        %1884 = vmatprep.subr.mxu0 0.0
        %1885 = vmatpush1.msra.mxu0 0.0
        %1886 = vmatprep.subr.mxu0 0.0
        %1887 = vmatpush1.msra.mxu0 0.0
        %1888 = vmatprep.subr.mxu0 0.0
        %1889 = vmatpush1.msra.mxu0 0.0
        %1890 = vmatprep.subr.mxu0 0.0
        %1891 = vmatpush1.msra.mxu0 0.0
        %1892 = vmatprep.subr.mxu0 0.0
        %1893 = vmatpush1.msra.mxu0 0.0
        %1894 = vmatprep.subr.mxu0 0.0
        %1895 = vmatpush1.msra.mxu0 0.0
        %1896 = vmatprep.subr.mxu0 0.0
        %1897 = vmatpush1.msra.mxu0 0.0
        %1898 = vmatprep.subr.mxu0 0.0
        %1899 = vmatpush1.msra.mxu0 0.0
        %1900 = vmatprep.subr.mxu0 0.0
        %1901 = vmatpush1.msra.mxu0 0.0
        %1902 = vmatprep.subr.mxu0 0.0
        %1903 = vmatpush1.msra.mxu0 0.0
        %1904 = vmatprep.subr.mxu0 0.0
        %1905 = vmatpush1.msra.mxu0 0.0
        %1906 = vmatprep.subr.mxu0 0.0
        %1907 = vmatpush1.msra.mxu0 0.0
        %1908 = vmatprep.subr.mxu0 0.0
        %1909 = vmatpush1.msra.mxu0 0.0
        %1910 = vmatprep.subr.mxu0 0.0
        %1911 = vmatpush1.msra.mxu0 0.0
        %1912 = vmatprep.subr.mxu0 0.0
        %1913 = vmatpush1.msra.mxu0 0.0
        %1914 = vmatprep.subr.mxu0 0.0
        %1915 = vmatpush1.msra.mxu0 0.0
        %1916 = vmatprep.mubr.f32.mxu0 0.0
        %1917 = vmatmul.mubr.f32.gmra.mrb[0].mxu0 %v1698
        %v1918 = vpop.f32.mrb[0].mxu0
        %v1919 = vadd.f32 0.0, %v1918
        %v1920 = vpop.f32.mrb[0].mxu0
        %1921 = vdwg.mxu0
        %v1922 = vadd.f32 %v1675, %v1777
        %v1923 = vadd.f32 %v1676, %v1779
        %v1924 = vadd.f32 %v1677, %v1848
        %v1925 = vadd.f32 %v1678, %v1850
        %v1926 = vadd.f32 %v1679, %v1919
        %s1927 = scalar_lea.vmem %s4, 24
        %v1928 = vld [vmem:[%s1927] sm:$0xf]
        %1929 = vrot.lane.b32.xlu0 %v379, 80
        %v1930 = vpop.permute.xlu0 %1929
        %1931 = vrot.lane.b32.xlu0 %v470, 80
        %v1932 = vpop.permute.xlu0 %1931
        %1933 = vrot.lane.b32.xlu0 %v380, 80
        %v1934 = vpop.permute.xlu0 %1933
        %1935 = vrot.lane.b32.xlu0 %v471, 80
        %v1936 = vpop.permute.xlu0 %1935
        %1937 = vrot.lane.b32.xlu0 %v381, 80
        %v1938 = vpop.permute.xlu0 %1937
        %vm1939 = vcmask 654336
        %v1940 = vsel %vm1939, %v1930, %v1932
        %v1941 = vsel %vm1939, %v1932, %v1934
        %v1942 = vsel %vm1939, %v1934, %v1936
        %v1943 = vsel %vm1939, %v1936, %v1938
        %v1945 = vsel %vm487, %v1928, 0
        %v1947 = vsel %vm491, %v1940, 0
        %v1949 = vsel %vm491, %v1941, 0
        %v1951 = vsel %vm491, %v1942, 0
        %v1953 = vsel %vm491, %v1943, 0
        %v1955 = vsel %vm491, %v1938, 0
        %1957 = vmatprep.subr.mxu0 %v1949
        %1958 = vmatpush1.msra.mxu0 %v1947
        %1959 = vmatprep.subr.mxu0 0.0
        %1960 = vmatpush1.msra.mxu0 0.0
        %1961 = vmatprep.subr.mxu0 0.0
        %1962 = vmatpush1.msra.mxu0 0.0
        %1963 = vmatprep.subr.mxu0 0.0
        %1964 = vmatpush1.msra.mxu0 0.0
        %1965 = vmatprep.subr.mxu0 0.0
        %1966 = vmatpush1.msra.mxu0 0.0
        %1967 = vmatprep.subr.mxu0 0.0
        %1968 = vmatpush1.msra.mxu0 0.0
        %1969 = vmatprep.subr.mxu0 0.0
        %1970 = vmatpush1.msra.mxu0 0.0
        %1971 = vmatprep.subr.mxu0 0.0
        %1972 = vmatpush1.msra.mxu0 0.0
        %1973 = vmatprep.subr.mxu0 0.0
        %1974 = vmatpush1.msra.mxu0 0.0
        %1975 = vmatprep.subr.mxu0 0.0
        %1976 = vmatpush1.msra.mxu0 0.0
        %1977 = vmatprep.subr.mxu0 0.0
        %1978 = vmatpush1.msra.mxu0 0.0
        %1979 = vmatprep.subr.mxu0 0.0
        %1980 = vmatpush1.msra.mxu0 0.0
        %1981 = vmatprep.subr.mxu0 0.0
        %1982 = vmatpush1.msra.mxu0 0.0
        %1983 = vmatprep.subr.mxu0 0.0
        %1984 = vmatpush1.msra.mxu0 0.0
        %1985 = vmatprep.subr.mxu0 0.0
        %1986 = vmatpush1.msra.mxu0 0.0
        %1987 = vmatprep.subr.mxu0 0.0
        %1988 = vmatpush1.msra.mxu0 0.0
        %1989 = vmatprep.subr.mxu0 0.0
        %1990 = vmatpush1.msra.mxu0 0.0
        %1991 = vmatprep.subr.mxu0 0.0
        %1992 = vmatpush1.msra.mxu0 0.0
        %1993 = vmatprep.subr.mxu0 0.0
        %1994 = vmatpush1.msra.mxu0 0.0
        %1995 = vmatprep.subr.mxu0 0.0
        %1996 = vmatpush1.msra.mxu0 0.0
        %1997 = vmatprep.subr.mxu0 0.0
        %1998 = vmatpush1.msra.mxu0 0.0
        %1999 = vmatprep.subr.mxu0 0.0
        %2000 = vmatpush1.msra.mxu0 0.0
        %2001 = vmatprep.subr.mxu0 0.0
        %2002 = vmatpush1.msra.mxu0 0.0
        %2003 = vmatprep.subr.mxu0 0.0
        %2004 = vmatpush1.msra.mxu0 0.0
        %2005 = vmatprep.subr.mxu0 0.0
        %2006 = vmatpush1.msra.mxu0 0.0
        %2007 = vmatprep.subr.mxu0 0.0
        %2008 = vmatpush1.msra.mxu0 0.0
        %2009 = vmatprep.subr.mxu0 0.0
        %2010 = vmatpush1.msra.mxu0 0.0
        %2011 = vmatprep.subr.mxu0 0.0
        %2012 = vmatpush1.msra.mxu0 0.0
        %2013 = vmatprep.subr.mxu0 0.0
        %2014 = vmatpush1.msra.mxu0 0.0
        %2015 = vmatprep.subr.mxu0 0.0
        %2016 = vmatpush1.msra.mxu0 0.0
        %2017 = vmatprep.subr.mxu0 0.0
        %2018 = vmatpush1.msra.mxu0 0.0
        %2019 = vmatprep.subr.mxu0 0.0
        %2020 = vmatpush1.msra.mxu0 0.0
        %2021 = vmatprep.mubr.f32.mxu0 0.0
        %2022 = vmatmul.mubr.f32.gmra.mrb[0].mxu0 %v1945
        %v2023 = vpop.f32.mrb[0].mxu0
        %v2024 = vadd.f32 0.0, %v2023
        %v2025 = vpop.f32.mrb[0].mxu0
        %v2026 = vadd.f32 0.0, %v2025
        %2027 = vdwg.mxu0
        %2028 = vmatprep.subr.mxu0 %v1953
        %2029 = vmatpush1.msra.mxu0 %v1951
        %2030 = vmatprep.subr.mxu0 0.0
        %2031 = vmatpush1.msra.mxu0 0.0
        %2032 = vmatprep.subr.mxu0 0.0
        %2033 = vmatpush1.msra.mxu0 0.0
        %2034 = vmatprep.subr.mxu0 0.0
        %2035 = vmatpush1.msra.mxu0 0.0
        %2036 = vmatprep.subr.mxu0 0.0
        %2037 = vmatpush1.msra.mxu0 0.0
        %2038 = vmatprep.subr.mxu0 0.0
        %2039 = vmatpush1.msra.mxu0 0.0
        %2040 = vmatprep.subr.mxu0 0.0
        %2041 = vmatpush1.msra.mxu0 0.0
        %2042 = vmatprep.subr.mxu0 0.0
        %2043 = vmatpush1.msra.mxu0 0.0
        %2044 = vmatprep.subr.mxu0 0.0
        %2045 = vmatpush1.msra.mxu0 0.0
        %2046 = vmatprep.subr.mxu0 0.0
        %2047 = vmatpush1.msra.mxu0 0.0
        %2048 = vmatprep.subr.mxu0 0.0
        %2049 = vmatpush1.msra.mxu0 0.0
        %2050 = vmatprep.subr.mxu0 0.0
        %2051 = vmatpush1.msra.mxu0 0.0
        %2052 = vmatprep.subr.mxu0 0.0
        %2053 = vmatpush1.msra.mxu0 0.0
        %2054 = vmatprep.subr.mxu0 0.0
        %2055 = vmatpush1.msra.mxu0 0.0
        %2056 = vmatprep.subr.mxu0 0.0
        %2057 = vmatpush1.msra.mxu0 0.0
        %2058 = vmatprep.subr.mxu0 0.0
        %2059 = vmatpush1.msra.mxu0 0.0
        %2060 = vmatprep.subr.mxu0 0.0
        %2061 = vmatpush1.msra.mxu0 0.0
        %2062 = vmatprep.subr.mxu0 0.0
        %2063 = vmatpush1.msra.mxu0 0.0
        %2064 = vmatprep.subr.mxu0 0.0
        %2065 = vmatpush1.msra.mxu0 0.0
        %2066 = vmatprep.subr.mxu0 0.0
        %2067 = vmatpush1.msra.mxu0 0.0
        %2068 = vmatprep.subr.mxu0 0.0
        %2069 = vmatpush1.msra.mxu0 0.0
        %2070 = vmatprep.subr.mxu0 0.0
        %2071 = vmatpush1.msra.mxu0 0.0
        %2072 = vmatprep.subr.mxu0 0.0
        %2073 = vmatpush1.msra.mxu0 0.0
        %2074 = vmatprep.subr.mxu0 0.0
        %2075 = vmatpush1.msra.mxu0 0.0
        %2076 = vmatprep.subr.mxu0 0.0
        %2077 = vmatpush1.msra.mxu0 0.0
        %2078 = vmatprep.subr.mxu0 0.0
        %2079 = vmatpush1.msra.mxu0 0.0
        %2080 = vmatprep.subr.mxu0 0.0
        %2081 = vmatpush1.msra.mxu0 0.0
        %2082 = vmatprep.subr.mxu0 0.0
        %2083 = vmatpush1.msra.mxu0 0.0
        %2084 = vmatprep.subr.mxu0 0.0
        %2085 = vmatpush1.msra.mxu0 0.0
        %2086 = vmatprep.subr.mxu0 0.0
        %2087 = vmatpush1.msra.mxu0 0.0
        %2088 = vmatprep.subr.mxu0 0.0
        %2089 = vmatpush1.msra.mxu0 0.0
        %2090 = vmatprep.subr.mxu0 0.0
        %2091 = vmatpush1.msra.mxu0 0.0
        %2092 = vmatprep.mubr.f32.mxu0 0.0
        %2093 = vmatmul.mubr.f32.gmra.mrb[0].mxu0 %v1945
        %v2094 = vpop.f32.mrb[0].mxu0
        %v2095 = vadd.f32 0.0, %v2094
        %v2096 = vpop.f32.mrb[0].mxu0
        %v2097 = vadd.f32 0.0, %v2096
        %2098 = vdwg.mxu0
        %2099 = vmatprep.subr.mxu0 0.0
        %2100 = vmatpush1.msra.mxu0 %v1955
        %2101 = vmatprep.subr.mxu0 0.0
        %2102 = vmatpush1.msra.mxu0 0.0
        %2103 = vmatprep.subr.mxu0 0.0
        %2104 = vmatpush1.msra.mxu0 0.0
        %2105 = vmatprep.subr.mxu0 0.0
        %2106 = vmatpush1.msra.mxu0 0.0
        %2107 = vmatprep.subr.mxu0 0.0
        %2108 = vmatpush1.msra.mxu0 0.0
        %2109 = vmatprep.subr.mxu0 0.0
        %2110 = vmatpush1.msra.mxu0 0.0
        %2111 = vmatprep.subr.mxu0 0.0
        %2112 = vmatpush1.msra.mxu0 0.0
        %2113 = vmatprep.subr.mxu0 0.0
        %2114 = vmatpush1.msra.mxu0 0.0
        %2115 = vmatprep.subr.mxu0 0.0
        %2116 = vmatpush1.msra.mxu0 0.0
        %2117 = vmatprep.subr.mxu0 0.0
        %2118 = vmatpush1.msra.mxu0 0.0
        %2119 = vmatprep.subr.mxu0 0.0
        %2120 = vmatpush1.msra.mxu0 0.0
        %2121 = vmatprep.subr.mxu0 0.0
        %2122 = vmatpush1.msra.mxu0 0.0
        %2123 = vmatprep.subr.mxu0 0.0
        %2124 = vmatpush1.msra.mxu0 0.0
        %2125 = vmatprep.subr.mxu0 0.0
        %2126 = vmatpush1.msra.mxu0 0.0
        %2127 = vmatprep.subr.mxu0 0.0
        %2128 = vmatpush1.msra.mxu0 0.0
        %2129 = vmatprep.subr.mxu0 0.0
        %2130 = vmatpush1.msra.mxu0 0.0
        %2131 = vmatprep.subr.mxu0 0.0
        %2132 = vmatpush1.msra.mxu0 0.0
        %2133 = vmatprep.subr.mxu0 0.0
        %2134 = vmatpush1.msra.mxu0 0.0
        %2135 = vmatprep.subr.mxu0 0.0
        %2136 = vmatpush1.msra.mxu0 0.0
        %2137 = vmatprep.subr.mxu0 0.0
        %2138 = vmatpush1.msra.mxu0 0.0
        %2139 = vmatprep.subr.mxu0 0.0
        %2140 = vmatpush1.msra.mxu0 0.0
        %2141 = vmatprep.subr.mxu0 0.0
        %2142 = vmatpush1.msra.mxu0 0.0
        %2143 = vmatprep.subr.mxu0 0.0
        %2144 = vmatpush1.msra.mxu0 0.0
        %2145 = vmatprep.subr.mxu0 0.0
        %2146 = vmatpush1.msra.mxu0 0.0
        %2147 = vmatprep.subr.mxu0 0.0
        %2148 = vmatpush1.msra.mxu0 0.0
        %2149 = vmatprep.subr.mxu0 0.0
        %2150 = vmatpush1.msra.mxu0 0.0
        %2151 = vmatprep.subr.mxu0 0.0
        %2152 = vmatpush1.msra.mxu0 0.0
        %2153 = vmatprep.subr.mxu0 0.0
        %2154 = vmatpush1.msra.mxu0 0.0
        %2155 = vmatprep.subr.mxu0 0.0
        %2156 = vmatpush1.msra.mxu0 0.0
        %2157 = vmatprep.subr.mxu0 0.0
        %2158 = vmatpush1.msra.mxu0 0.0
        %2159 = vmatprep.subr.mxu0 0.0
        %2160 = vmatpush1.msra.mxu0 0.0
        %2161 = vmatprep.subr.mxu0 0.0
        %2162 = vmatpush1.msra.mxu0 0.0
        %2163 = vmatprep.mubr.f32.mxu0 0.0
        %2164 = vmatmul.mubr.f32.gmra.mrb[0].mxu0 %v1945
        %v2165 = vpop.f32.mrb[0].mxu0
        %v2166 = vadd.f32 0.0, %v2165
        %v2167 = vpop.f32.mrb[0].mxu0
        %2168 = vdwg.mxu0
        %v2169 = vadd.f32 %v1922, %v2024
        %v2170 = vadd.f32 %v1923, %v2026
        %v2171 = vadd.f32 %v1924, %v2095
        %v2172 = vadd.f32 %v1925, %v2097
        %v2173 = vadd.f32 %v1926, %v2166
        %s2174 = scalar_lea.vmem %s4, 28
        %v2175 = vld [vmem:[%s2174] sm:$0xf]
        %2176 = vrot.lane.b32.xlu0 %v379, 79
        %v2177 = vpop.permute.xlu0 %2176
        %2178 = vrot.lane.b32.xlu0 %v470, 79
        %v2179 = vpop.permute.xlu0 %2178
        %2180 = vrot.lane.b32.xlu0 %v380, 79
        %v2181 = vpop.permute.xlu0 %2180
        %2182 = vrot.lane.b32.xlu0 %v471, 79
        %v2183 = vpop.permute.xlu0 %2182
        %2184 = vrot.lane.b32.xlu0 %v381, 79
        %v2185 = vpop.permute.xlu0 %2184
        %vm2186 = vcmask 646144
        %v2187 = vsel %vm2186, %v2177, %v2179
        %v2188 = vsel %vm2186, %v2179, %v2181
        %v2189 = vsel %vm2186, %v2181, %v2183
        %v2190 = vsel %vm2186, %v2183, %v2185
        %v2192 = vsel %vm487, %v2175, 0
        %v2194 = vsel %vm491, %v2187, 0
        %v2196 = vsel %vm491, %v2188, 0
        %v2198 = vsel %vm491, %v2189, 0
        %v2200 = vsel %vm491, %v2190, 0
        %v2202 = vsel %vm491, %v2185, 0
        %2204 = vmatprep.subr.mxu0 %v2196
        %2205 = vmatpush1.msra.mxu0 %v2194
        %2206 = vmatprep.subr.mxu0 0.0
        %2207 = vmatpush1.msra.mxu0 0.0
        %2208 = vmatprep.subr.mxu0 0.0
        %2209 = vmatpush1.msra.mxu0 0.0
        %2210 = vmatprep.subr.mxu0 0.0
        %2211 = vmatpush1.msra.mxu0 0.0
        %2212 = vmatprep.subr.mxu0 0.0
        %2213 = vmatpush1.msra.mxu0 0.0
        %2214 = vmatprep.subr.mxu0 0.0
        %2215 = vmatpush1.msra.mxu0 0.0
        %2216 = vmatprep.subr.mxu0 0.0
        %2217 = vmatpush1.msra.mxu0 0.0
        %2218 = vmatprep.subr.mxu0 0.0
        %2219 = vmatpush1.msra.mxu0 0.0
        %2220 = vmatprep.subr.mxu0 0.0
        %2221 = vmatpush1.msra.mxu0 0.0
        %2222 = vmatprep.subr.mxu0 0.0
        %2223 = vmatpush1.msra.mxu0 0.0
        %2224 = vmatprep.subr.mxu0 0.0
        %2225 = vmatpush1.msra.mxu0 0.0
        %2226 = vmatprep.subr.mxu0 0.0
        %2227 = vmatpush1.msra.mxu0 0.0
        %2228 = vmatprep.subr.mxu0 0.0
        %2229 = vmatpush1.msra.mxu0 0.0
        %2230 = vmatprep.subr.mxu0 0.0
        %2231 = vmatpush1.msra.mxu0 0.0
        %2232 = vmatprep.subr.mxu0 0.0
        %2233 = vmatpush1.msra.mxu0 0.0
        %2234 = vmatprep.subr.mxu0 0.0
        %2235 = vmatpush1.msra.mxu0 0.0
        %2236 = vmatprep.subr.mxu0 0.0
        %2237 = vmatpush1.msra.mxu0 0.0
        %2238 = vmatprep.subr.mxu0 0.0
        %2239 = vmatpush1.msra.mxu0 0.0
        %2240 = vmatprep.subr.mxu0 0.0
        %2241 = vmatpush1.msra.mxu0 0.0
        %2242 = vmatprep.subr.mxu0 0.0
        %2243 = vmatpush1.msra.mxu0 0.0
        %2244 = vmatprep.subr.mxu0 0.0
        %2245 = vmatpush1.msra.mxu0 0.0
        %2246 = vmatprep.subr.mxu0 0.0
        %2247 = vmatpush1.msra.mxu0 0.0
        %2248 = vmatprep.subr.mxu0 0.0
        %2249 = vmatpush1.msra.mxu0 0.0
        %2250 = vmatprep.subr.mxu0 0.0
        %2251 = vmatpush1.msra.mxu0 0.0
        %2252 = vmatprep.subr.mxu0 0.0
        %2253 = vmatpush1.msra.mxu0 0.0
        %2254 = vmatprep.subr.mxu0 0.0
        %2255 = vmatpush1.msra.mxu0 0.0
        %2256 = vmatprep.subr.mxu0 0.0
        %2257 = vmatpush1.msra.mxu0 0.0
        %2258 = vmatprep.subr.mxu0 0.0
        %2259 = vmatpush1.msra.mxu0 0.0
        %2260 = vmatprep.subr.mxu0 0.0
        %2261 = vmatpush1.msra.mxu0 0.0
        %2262 = vmatprep.subr.mxu0 0.0
        %2263 = vmatpush1.msra.mxu0 0.0
        %2264 = vmatprep.subr.mxu0 0.0
        %2265 = vmatpush1.msra.mxu0 0.0
        %2266 = vmatprep.subr.mxu0 0.0
        %2267 = vmatpush1.msra.mxu0 0.0
        %2268 = vmatprep.mubr.f32.mxu0 0.0
        %2269 = vmatmul.mubr.f32.gmra.mrb[0].mxu0 %v2192
        %v2270 = vpop.f32.mrb[0].mxu0
        %v2271 = vadd.f32 0.0, %v2270
        %v2272 = vpop.f32.mrb[0].mxu0
        %v2273 = vadd.f32 0.0, %v2272
        %2274 = vdwg.mxu0
        %2275 = vmatprep.subr.mxu0 %v2200
        %2276 = vmatpush1.msra.mxu0 %v2198
        %2277 = vmatprep.subr.mxu0 0.0
        %2278 = vmatpush1.msra.mxu0 0.0
        %2279 = vmatprep.subr.mxu0 0.0
        %2280 = vmatpush1.msra.mxu0 0.0
        %2281 = vmatprep.subr.mxu0 0.0
        %2282 = vmatpush1.msra.mxu0 0.0
        %2283 = vmatprep.subr.mxu0 0.0
        %2284 = vmatpush1.msra.mxu0 0.0
        %2285 = vmatprep.subr.mxu0 0.0
        %2286 = vmatpush1.msra.mxu0 0.0
        %2287 = vmatprep.subr.mxu0 0.0
        %2288 = vmatpush1.msra.mxu0 0.0
        %2289 = vmatprep.subr.mxu0 0.0
        %2290 = vmatpush1.msra.mxu0 0.0
        %2291 = vmatprep.subr.mxu0 0.0
        %2292 = vmatpush1.msra.mxu0 0.0
        %2293 = vmatprep.subr.mxu0 0.0
        %2294 = vmatpush1.msra.mxu0 0.0
        %2295 = vmatprep.subr.mxu0 0.0
        %2296 = vmatpush1.msra.mxu0 0.0
        %2297 = vmatprep.subr.mxu0 0.0
        %2298 = vmatpush1.msra.mxu0 0.0
        %2299 = vmatprep.subr.mxu0 0.0
        %2300 = vmatpush1.msra.mxu0 0.0
        %2301 = vmatprep.subr.mxu0 0.0
        %2302 = vmatpush1.msra.mxu0 0.0
        %2303 = vmatprep.subr.mxu0 0.0
        %2304 = vmatpush1.msra.mxu0 0.0
        %2305 = vmatprep.subr.mxu0 0.0
        %2306 = vmatpush1.msra.mxu0 0.0
        %2307 = vmatprep.subr.mxu0 0.0
        %2308 = vmatpush1.msra.mxu0 0.0
        %2309 = vmatprep.subr.mxu0 0.0
        %2310 = vmatpush1.msra.mxu0 0.0
        %2311 = vmatprep.subr.mxu0 0.0
        %2312 = vmatpush1.msra.mxu0 0.0
        %2313 = vmatprep.subr.mxu0 0.0
        %2314 = vmatpush1.msra.mxu0 0.0
        %2315 = vmatprep.subr.mxu0 0.0
        %2316 = vmatpush1.msra.mxu0 0.0
        %2317 = vmatprep.subr.mxu0 0.0
        %2318 = vmatpush1.msra.mxu0 0.0
        %2319 = vmatprep.subr.mxu0 0.0
        %2320 = vmatpush1.msra.mxu0 0.0
        %2321 = vmatprep.subr.mxu0 0.0
        %2322 = vmatpush1.msra.mxu0 0.0
        %2323 = vmatprep.subr.mxu0 0.0
        %2324 = vmatpush1.msra.mxu0 0.0
        %2325 = vmatprep.subr.mxu0 0.0
        %2326 = vmatpush1.msra.mxu0 0.0
        %2327 = vmatprep.subr.mxu0 0.0
        %2328 = vmatpush1.msra.mxu0 0.0
        %2329 = vmatprep.subr.mxu0 0.0
        %2330 = vmatpush1.msra.mxu0 0.0
        %2331 = vmatprep.subr.mxu0 0.0
        %2332 = vmatpush1.msra.mxu0 0.0
        %2333 = vmatprep.subr.mxu0 0.0
        %2334 = vmatpush1.msra.mxu0 0.0
        %2335 = vmatprep.subr.mxu0 0.0
        %2336 = vmatpush1.msra.mxu0 0.0
        %2337 = vmatprep.subr.mxu0 0.0
        %2338 = vmatpush1.msra.mxu0 0.0
        %2339 = vmatprep.mubr.f32.mxu0 0.0
        %2340 = vmatmul.mubr.f32.gmra.mrb[0].mxu0 %v2192
        %v2341 = vpop.f32.mrb[0].mxu0
        %v2342 = vadd.f32 0.0, %v2341
        %v2343 = vpop.f32.mrb[0].mxu0
        %v2344 = vadd.f32 0.0, %v2343
        %2345 = vdwg.mxu0
        %2346 = vmatprep.subr.mxu0 0.0
        %2347 = vmatpush1.msra.mxu0 %v2202
        %2348 = vmatprep.subr.mxu0 0.0
        %2349 = vmatpush1.msra.mxu0 0.0
        %2350 = vmatprep.subr.mxu0 0.0
        %2351 = vmatpush1.msra.mxu0 0.0
        %2352 = vmatprep.subr.mxu0 0.0
        %2353 = vmatpush1.msra.mxu0 0.0
        %2354 = vmatprep.subr.mxu0 0.0
        %2355 = vmatpush1.msra.mxu0 0.0
        %2356 = vmatprep.subr.mxu0 0.0
        %2357 = vmatpush1.msra.mxu0 0.0
        %2358 = vmatprep.subr.mxu0 0.0
        %2359 = vmatpush1.msra.mxu0 0.0
        %2360 = vmatprep.subr.mxu0 0.0
        %2361 = vmatpush1.msra.mxu0 0.0
        %2362 = vmatprep.subr.mxu0 0.0
        %2363 = vmatpush1.msra.mxu0 0.0
        %2364 = vmatprep.subr.mxu0 0.0
        %2365 = vmatpush1.msra.mxu0 0.0
        %2366 = vmatprep.subr.mxu0 0.0
        %2367 = vmatpush1.msra.mxu0 0.0
        %2368 = vmatprep.subr.mxu0 0.0
        %2369 = vmatpush1.msra.mxu0 0.0
        %2370 = vmatprep.subr.mxu0 0.0
        %2371 = vmatpush1.msra.mxu0 0.0
        %2372 = vmatprep.subr.mxu0 0.0
        %2373 = vmatpush1.msra.mxu0 0.0
        %2374 = vmatprep.subr.mxu0 0.0
        %2375 = vmatpush1.msra.mxu0 0.0
        %2376 = vmatprep.subr.mxu0 0.0
        %2377 = vmatpush1.msra.mxu0 0.0
        %2378 = vmatprep.subr.mxu0 0.0
        %2379 = vmatpush1.msra.mxu0 0.0
        %2380 = vmatprep.subr.mxu0 0.0
        %2381 = vmatpush1.msra.mxu0 0.0
        %2382 = vmatprep.subr.mxu0 0.0
        %2383 = vmatpush1.msra.mxu0 0.0
        %2384 = vmatprep.subr.mxu0 0.0
        %2385 = vmatpush1.msra.mxu0 0.0
        %2386 = vmatprep.subr.mxu0 0.0
        %2387 = vmatpush1.msra.mxu0 0.0
        %2388 = vmatprep.subr.mxu0 0.0
        %2389 = vmatpush1.msra.mxu0 0.0
        %2390 = vmatprep.subr.mxu0 0.0
        %2391 = vmatpush1.msra.mxu0 0.0
        %2392 = vmatprep.subr.mxu0 0.0
        %2393 = vmatpush1.msra.mxu0 0.0
        %2394 = vmatprep.subr.mxu0 0.0
        %2395 = vmatpush1.msra.mxu0 0.0
        %2396 = vmatprep.subr.mxu0 0.0
        %2397 = vmatpush1.msra.mxu0 0.0
        %2398 = vmatprep.subr.mxu0 0.0
        %2399 = vmatpush1.msra.mxu0 0.0
        %2400 = vmatprep.subr.mxu0 0.0
        %2401 = vmatpush1.msra.mxu0 0.0
        %2402 = vmatprep.subr.mxu0 0.0
        %2403 = vmatpush1.msra.mxu0 0.0
        %2404 = vmatprep.subr.mxu0 0.0
        %2405 = vmatpush1.msra.mxu0 0.0
        %2406 = vmatprep.subr.mxu0 0.0
        %2407 = vmatpush1.msra.mxu0 0.0
        %2408 = vmatprep.subr.mxu0 0.0
        %2409 = vmatpush1.msra.mxu0 0.0
        %2410 = vmatprep.mubr.f32.mxu0 0.0
        %2411 = vmatmul.mubr.f32.gmra.mrb[0].mxu0 %v2192
        %v2412 = vpop.f32.mrb[0].mxu0
        %v2413 = vadd.f32 0.0, %v2412
        %v2414 = vpop.f32.mrb[0].mxu0
        %2415 = vdwg.mxu0
        %v2416 = vadd.f32 %v2169, %v2271
        %v2417 = vadd.f32 %v2170, %v2273
        %v2418 = vadd.f32 %v2171, %v2342
        %v2419 = vadd.f32 %v2172, %v2344
        %v2420 = vadd.f32 %v2173, %v2413
        %s2421 = scalar_lea.vmem %s4, 32
        %v2422 = vld [vmem:[%s2421] sm:$0xf]
        %2423 = vrot.lane.b32.xlu0 %v379, 78
        %v2424 = vpop.permute.xlu0 %2423
        %2425 = vrot.lane.b32.xlu0 %v470, 78
        %v2426 = vpop.permute.xlu0 %2425
        %2427 = vrot.lane.b32.xlu0 %v380, 78
        %v2428 = vpop.permute.xlu0 %2427
        %2429 = vrot.lane.b32.xlu0 %v471, 78
        %v2430 = vpop.permute.xlu0 %2429
        %2431 = vrot.lane.b32.xlu0 %v381, 78
        %v2432 = vpop.permute.xlu0 %2431
        %vm2433 = vcmask 637952
        %v2434 = vsel %vm2433, %v2424, %v2426
        %v2435 = vsel %vm2433, %v2426, %v2428
        %v2436 = vsel %vm2433, %v2428, %v2430
        %v2437 = vsel %vm2433, %v2430, %v2432
        %v2439 = vsel %vm487, %v2422, 0
        %v2441 = vsel %vm491, %v2434, 0
        %v2443 = vsel %vm491, %v2435, 0
        %v2445 = vsel %vm491, %v2436, 0
        %v2447 = vsel %vm491, %v2437, 0
        %v2449 = vsel %vm491, %v2432, 0
        %2451 = vmatprep.subr.mxu0 %v2443
        %2452 = vmatpush1.msra.mxu0 %v2441
        %2453 = vmatprep.subr.mxu0 0.0
        %2454 = vmatpush1.msra.mxu0 0.0
        %2455 = vmatprep.subr.mxu0 0.0
        %2456 = vmatpush1.msra.mxu0 0.0
        %2457 = vmatprep.subr.mxu0 0.0
        %2458 = vmatpush1.msra.mxu0 0.0
        %2459 = vmatprep.subr.mxu0 0.0
        %2460 = vmatpush1.msra.mxu0 0.0
        %2461 = vmatprep.subr.mxu0 0.0
        %2462 = vmatpush1.msra.mxu0 0.0
        %2463 = vmatprep.subr.mxu0 0.0
        %2464 = vmatpush1.msra.mxu0 0.0
        %2465 = vmatprep.subr.mxu0 0.0
        %2466 = vmatpush1.msra.mxu0 0.0
        %2467 = vmatprep.subr.mxu0 0.0
        %2468 = vmatpush1.msra.mxu0 0.0
        %2469 = vmatprep.subr.mxu0 0.0
        %2470 = vmatpush1.msra.mxu0 0.0
        %2471 = vmatprep.subr.mxu0 0.0
        %2472 = vmatpush1.msra.mxu0 0.0
        %2473 = vmatprep.subr.mxu0 0.0
        %2474 = vmatpush1.msra.mxu0 0.0
        %2475 = vmatprep.subr.mxu0 0.0
        %2476 = vmatpush1.msra.mxu0 0.0
        %2477 = vmatprep.subr.mxu0 0.0
        %2478 = vmatpush1.msra.mxu0 0.0
        %2479 = vmatprep.subr.mxu0 0.0
        %2480 = vmatpush1.msra.mxu0 0.0
        %2481 = vmatprep.subr.mxu0 0.0
        %2482 = vmatpush1.msra.mxu0 0.0
        %2483 = vmatprep.subr.mxu0 0.0
        %2484 = vmatpush1.msra.mxu0 0.0
        %2485 = vmatprep.subr.mxu0 0.0
        %2486 = vmatpush1.msra.mxu0 0.0
        %2487 = vmatprep.subr.mxu0 0.0
        %2488 = vmatpush1.msra.mxu0 0.0
        %2489 = vmatprep.subr.mxu0 0.0
        %2490 = vmatpush1.msra.mxu0 0.0
        %2491 = vmatprep.subr.mxu0 0.0
        %2492 = vmatpush1.msra.mxu0 0.0
        %2493 = vmatprep.subr.mxu0 0.0
        %2494 = vmatpush1.msra.mxu0 0.0
        %2495 = vmatprep.subr.mxu0 0.0
        %2496 = vmatpush1.msra.mxu0 0.0
        %2497 = vmatprep.subr.mxu0 0.0
        %2498 = vmatpush1.msra.mxu0 0.0
        %2499 = vmatprep.subr.mxu0 0.0
        %2500 = vmatpush1.msra.mxu0 0.0
        %2501 = vmatprep.subr.mxu0 0.0
        %2502 = vmatpush1.msra.mxu0 0.0
        %2503 = vmatprep.subr.mxu0 0.0
        %2504 = vmatpush1.msra.mxu0 0.0
        %2505 = vmatprep.subr.mxu0 0.0
        %2506 = vmatpush1.msra.mxu0 0.0
        %2507 = vmatprep.subr.mxu0 0.0
        %2508 = vmatpush1.msra.mxu0 0.0
        %2509 = vmatprep.subr.mxu0 0.0
        %2510 = vmatpush1.msra.mxu0 0.0
        %2511 = vmatprep.subr.mxu0 0.0
        %2512 = vmatpush1.msra.mxu0 0.0
        %2513 = vmatprep.subr.mxu0 0.0
        %2514 = vmatpush1.msra.mxu0 0.0
        %2515 = vmatprep.mubr.f32.mxu0 0.0
        %2516 = vmatmul.mubr.f32.gmra.mrb[0].mxu0 %v2439
        %v2517 = vpop.f32.mrb[0].mxu0
        %v2518 = vadd.f32 0.0, %v2517
        %v2519 = vpop.f32.mrb[0].mxu0
        %v2520 = vadd.f32 0.0, %v2519
        %2521 = vdwg.mxu0
        %2522 = vmatprep.subr.mxu0 %v2447
        %2523 = vmatpush1.msra.mxu0 %v2445
        %2524 = vmatprep.subr.mxu0 0.0
        %2525 = vmatpush1.msra.mxu0 0.0
        %2526 = vmatprep.subr.mxu0 0.0
        %2527 = vmatpush1.msra.mxu0 0.0
        %2528 = vmatprep.subr.mxu0 0.0
        %2529 = vmatpush1.msra.mxu0 0.0
        %2530 = vmatprep.subr.mxu0 0.0
        %2531 = vmatpush1.msra.mxu0 0.0
        %2532 = vmatprep.subr.mxu0 0.0
        %2533 = vmatpush1.msra.mxu0 0.0
        %2534 = vmatprep.subr.mxu0 0.0
        %2535 = vmatpush1.msra.mxu0 0.0
        %2536 = vmatprep.subr.mxu0 0.0
        %2537 = vmatpush1.msra.mxu0 0.0
        %2538 = vmatprep.subr.mxu0 0.0
        %2539 = vmatpush1.msra.mxu0 0.0
        %2540 = vmatprep.subr.mxu0 0.0
        %2541 = vmatpush1.msra.mxu0 0.0
        %2542 = vmatprep.subr.mxu0 0.0
        %2543 = vmatpush1.msra.mxu0 0.0
        %2544 = vmatprep.subr.mxu0 0.0
        %2545 = vmatpush1.msra.mxu0 0.0
        %2546 = vmatprep.subr.mxu0 0.0
        %2547 = vmatpush1.msra.mxu0 0.0
        %2548 = vmatprep.subr.mxu0 0.0
        %2549 = vmatpush1.msra.mxu0 0.0
        %2550 = vmatprep.subr.mxu0 0.0
        %2551 = vmatpush1.msra.mxu0 0.0
        %2552 = vmatprep.subr.mxu0 0.0
        %2553 = vmatpush1.msra.mxu0 0.0
        %2554 = vmatprep.subr.mxu0 0.0
        %2555 = vmatpush1.msra.mxu0 0.0
        %2556 = vmatprep.subr.mxu0 0.0
        %2557 = vmatpush1.msra.mxu0 0.0
        %2558 = vmatprep.subr.mxu0 0.0
        %2559 = vmatpush1.msra.mxu0 0.0
        %2560 = vmatprep.subr.mxu0 0.0
        %2561 = vmatpush1.msra.mxu0 0.0
        %2562 = vmatprep.subr.mxu0 0.0
        %2563 = vmatpush1.msra.mxu0 0.0
        %2564 = vmatprep.subr.mxu0 0.0
        %2565 = vmatpush1.msra.mxu0 0.0
        %2566 = vmatprep.subr.mxu0 0.0
        %2567 = vmatpush1.msra.mxu0 0.0
        %2568 = vmatprep.subr.mxu0 0.0
        %2569 = vmatpush1.msra.mxu0 0.0
        %2570 = vmatprep.subr.mxu0 0.0
        %2571 = vmatpush1.msra.mxu0 0.0
        %2572 = vmatprep.subr.mxu0 0.0
        %2573 = vmatpush1.msra.mxu0 0.0
        %2574 = vmatprep.subr.mxu0 0.0
        %2575 = vmatpush1.msra.mxu0 0.0
        %2576 = vmatprep.subr.mxu0 0.0
        %2577 = vmatpush1.msra.mxu0 0.0
        %2578 = vmatprep.subr.mxu0 0.0
        %2579 = vmatpush1.msra.mxu0 0.0
        %2580 = vmatprep.subr.mxu0 0.0
        %2581 = vmatpush1.msra.mxu0 0.0
        %2582 = vmatprep.subr.mxu0 0.0
        %2583 = vmatpush1.msra.mxu0 0.0
        %2584 = vmatprep.subr.mxu0 0.0
        %2585 = vmatpush1.msra.mxu0 0.0
        %2586 = vmatprep.mubr.f32.mxu0 0.0
        %2587 = vmatmul.mubr.f32.gmra.mrb[0].mxu0 %v2439
        %v2588 = vpop.f32.mrb[0].mxu0
        %v2589 = vadd.f32 0.0, %v2588
        %v2590 = vpop.f32.mrb[0].mxu0
        %v2591 = vadd.f32 0.0, %v2590
        %2592 = vdwg.mxu0
        %2593 = vmatprep.subr.mxu0 0.0
        %2594 = vmatpush1.msra.mxu0 %v2449
        %2595 = vmatprep.subr.mxu0 0.0
        %2596 = vmatpush1.msra.mxu0 0.0
        %2597 = vmatprep.subr.mxu0 0.0
        %2598 = vmatpush1.msra.mxu0 0.0
        %2599 = vmatprep.subr.mxu0 0.0
        %2600 = vmatpush1.msra.mxu0 0.0
        %2601 = vmatprep.subr.mxu0 0.0
        %2602 = vmatpush1.msra.mxu0 0.0
        %2603 = vmatprep.subr.mxu0 0.0
        %2604 = vmatpush1.msra.mxu0 0.0
        %2605 = vmatprep.subr.mxu0 0.0
        %2606 = vmatpush1.msra.mxu0 0.0
        %2607 = vmatprep.subr.mxu0 0.0
        %2608 = vmatpush1.msra.mxu0 0.0
        %2609 = vmatprep.subr.mxu0 0.0
        %2610 = vmatpush1.msra.mxu0 0.0
        %2611 = vmatprep.subr.mxu0 0.0
        %2612 = vmatpush1.msra.mxu0 0.0
        %2613 = vmatprep.subr.mxu0 0.0
        %2614 = vmatpush1.msra.mxu0 0.0
        %2615 = vmatprep.subr.mxu0 0.0
        %2616 = vmatpush1.msra.mxu0 0.0
        %2617 = vmatprep.subr.mxu0 0.0
        %2618 = vmatpush1.msra.mxu0 0.0
        %2619 = vmatprep.subr.mxu0 0.0
        %2620 = vmatpush1.msra.mxu0 0.0
        %2621 = vmatprep.subr.mxu0 0.0
        %2622 = vmatpush1.msra.mxu0 0.0
        %2623 = vmatprep.subr.mxu0 0.0
        %2624 = vmatpush1.msra.mxu0 0.0
        %2625 = vmatprep.subr.mxu0 0.0
        %2626 = vmatpush1.msra.mxu0 0.0
        %2627 = vmatprep.subr.mxu0 0.0
        %2628 = vmatpush1.msra.mxu0 0.0
        %2629 = vmatprep.subr.mxu0 0.0
        %2630 = vmatpush1.msra.mxu0 0.0
        %2631 = vmatprep.subr.mxu0 0.0
        %2632 = vmatpush1.msra.mxu0 0.0
        %2633 = vmatprep.subr.mxu0 0.0
        %2634 = vmatpush1.msra.mxu0 0.0
        %2635 = vmatprep.subr.mxu0 0.0
        %2636 = vmatpush1.msra.mxu0 0.0
        %2637 = vmatprep.subr.mxu0 0.0
        %2638 = vmatpush1.msra.mxu0 0.0
        %2639 = vmatprep.subr.mxu0 0.0
        %2640 = vmatpush1.msra.mxu0 0.0
        %2641 = vmatprep.subr.mxu0 0.0
        %2642 = vmatpush1.msra.mxu0 0.0
        %2643 = vmatprep.subr.mxu0 0.0
        %2644 = vmatpush1.msra.mxu0 0.0
        %2645 = vmatprep.subr.mxu0 0.0
        %2646 = vmatpush1.msra.mxu0 0.0
        %2647 = vmatprep.subr.mxu0 0.0
        %2648 = vmatpush1.msra.mxu0 0.0
        %2649 = vmatprep.subr.mxu0 0.0
        %2650 = vmatpush1.msra.mxu0 0.0
        %2651 = vmatprep.subr.mxu0 0.0
        %2652 = vmatpush1.msra.mxu0 0.0
        %2653 = vmatprep.subr.mxu0 0.0
        %2654 = vmatpush1.msra.mxu0 0.0
        %2655 = vmatprep.subr.mxu0 0.0
        %2656 = vmatpush1.msra.mxu0 0.0
        %2657 = vmatprep.mubr.f32.mxu0 0.0
        %2658 = vmatmul.mubr.f32.gmra.mrb[0].mxu0 %v2439
        %v2659 = vpop.f32.mrb[0].mxu0
        %v2660 = vadd.f32 0.0, %v2659
        %v2661 = vpop.f32.mrb[0].mxu0
        %2662 = vdwg.mxu0
        %v2663 = vadd.f32 %v2416, %v2518
        %v2664 = vadd.f32 %v2417, %v2520
        %v2665 = vadd.f32 %v2418, %v2589
        %v2666 = vadd.f32 %v2419, %v2591
        %v2667 = vadd.f32 %v2420, %v2660
        %v2668 = vld [vmem:[%s6] sm:$0xf]
        %2670 = vset.pattern.permute.xlu0 0
        %2671 = vperm.xlu0 %2670, %v2668
        %v2672 = vpop.permute.xlu0 %2671
        %v2674 = vadd.f32 %v2663, %v2672
        %v2675 = vadd.f32 %v2664, %v2672
        %v2676 = vadd.f32 %v2665, %v2672
        %v2677 = vadd.f32 %v2666, %v2672
        %v2678 = vadd.f32 %v2667, %v2672
        %v2679 = vld [vmem:[%s371] sm:$0xf]
        %2681 = vset.pattern.permute.xlu0 0
        %2682 = vperm.xlu0 %2681, %v2679
        %v2683 = vpop.permute.xlu0 %2682
        %v2685 = vmul.f32 %v2674, %v2683
        %v2686 = vmul.f32 %v2675, %v2683
        %v2687 = vmul.f32 %v2676, %v2683
        %v2688 = vmul.f32 %v2677, %v2683
        %v2689 = vmul.f32 %v2678, %v2683
        %v2690 = vmul.f32 %v2685, %v455
        %v2691 = vmul.f32 %v2686, %v456
        %v2692 = vmul.f32 %v2687, %v457
        %v2693 = vmul.f32 %v2688, %v458
        %v2694 = vmul.f32 %v2689, %v459
        %v2695 = vsel %vm491, %v2690, 0.0
        %v2696 = vsel %vm491, %v2691, 0.0
        %v2697 = vadd.f32 %v2695, %v2696
        %v2698 = vsel %vm491, %v2692, 0.0
        %v2699 = vadd.f32 %v2697, %v2698
        %v2700 = vsel %vm491, %v2693, 0.0
        %v2701 = vadd.f32 %v2699, %v2700
        %vm2702 = vcmask 142336
        %v2703 = vsel %vm2702, %v2694, 0.0
        %v2704 = vadd.f32 %v2701, %v2703
        %2705 = vadd.xlane.f32.xlu0 %v2704
        %v2706 = vpop.xlane.xlu0 %2705
        %v2707 = vrot.slane %v2706, 4
        %v2708 = vadd.f32 %v2706, %v2707
        %v2709 = vrot.slane %v2708, 2
        %v2710 = vadd.f32 %v2708, %v2709
        %v2711 = vrot.slane %v2710, 1
        %v2712 = vadd.f32 %v2710, %v2711
        %s2713 = vtos %v2712
        %v2714 = vstv %s2713
        %v2715 = vrcp.pop 1296.0
        %v2716 = vmul.f32 %v2714, %v2715
        %v2717 = vsub.f32 %v2690, %v2716
        %v2718 = vsub.f32 %v2691, %v2716
        %v2719 = vsub.f32 %v2692, %v2716
        %v2720 = vsub.f32 %v2693, %v2716
        %v2721 = vsub.f32 %v2694, %v2716
        %v2722 = vmul.f32 %v2717, %v455
        %v2723 = vmul.f32 %v2718, %v456
        %v2724 = vmul.f32 %v2719, %v457
        %v2725 = vmul.f32 %v2720, %v458
        %v2726 = vmul.f32 %v2721, %v459
        %v2727 = vmul.f32 %v2722, %v2722
        %v2728 = vmul.f32 %v2723, %v2723
        %v2729 = vmul.f32 %v2724, %v2724
        %v2730 = vmul.f32 %v2725, %v2725
        %v2731 = vmul.f32 %v2726, %v2726
        %v2732 = vsel %vm491, %v2727, 0.0
        %v2733 = vsel %vm491, %v2728, 0.0
        %v2734 = vadd.f32 %v2732, %v2733
        %v2735 = vsel %vm491, %v2729, 0.0
        %v2736 = vadd.f32 %v2734, %v2735
        %v2737 = vsel %vm491, %v2730, 0.0
        %v2738 = vadd.f32 %v2736, %v2737
        %v2739 = vsel %vm2702, %v2731, 0.0
        %v2740 = vadd.f32 %v2738, %v2739
        %2741 = vadd.xlane.f32.xlu0 %v2740
        %v2742 = vpop.xlane.xlu0 %2741
        %v2743 = vrot.slane %v2742, 4
        %v2744 = vadd.f32 %v2742, %v2743
        %v2745 = vrot.slane %v2744, 2
        %v2746 = vadd.f32 %v2744, %v2745
        %v2747 = vrot.slane %v2746, 1
        %v2748 = vadd.f32 %v2746, %v2747
        %s2749 = vtos %v2748
        %v2750 = vstv %s2749
        %v2751 = vrcp.pop 1295.0
        %v2752 = vmul.f32 %v2750, %v2751
        %v2753 = vrsqrt.pop %v2752
        %v2754 = vmul.f32 %v382, %v383
        %vm2755 = vcmask 73728
        %v2756 = vsel %vm2755, %v2754, 0.0
        %2757 = vadd.xlane.f32.xlu0 %v2756
        %v2758 = vpop.xlane.xlu0 %2757
        %v2759 = vrot.slane %v2758, 4
        %v2760 = vadd.f32 %v2758, %v2759
        %v2761 = vrot.slane %v2760, 2
        %v2762 = vadd.f32 %v2760, %v2761
        %v2763 = vrot.slane %v2762, 1
        %v2764 = vadd.f32 %v2762, %v2763
        %s2765 = vtos %v2764
        %v2766 = vstv %s2765
        %v2767 = vtanh.pop %v2766
        %v2768 = vmul.f32 %v2722, %v2753
        %v2769 = vmul.f32 %v2723, %v2753
        %v2770 = vmul.f32 %v2724, %v2753
        %v2771 = vmul.f32 %v2725, %v2753
        %v2772 = vmul.f32 %v2726, %v2753
        %v2773 = vadd.f32 %v2768, %v2767
        %v2774 = vadd.f32 %v2769, %v2767
        %v2775 = vadd.f32 %v2770, %v2767
        %v2776 = vadd.f32 %v2771, %v2767
        %v2777 = vadd.f32 %v2772, %v2767
        %v2778 = vmax.f32 %v2773, 0.0
        %v2779 = vmax.f32 %v2774, 0.0
        %v2780 = vmax.f32 %v2775, 0.0
        %v2781 = vmax.f32 %v2776, 0.0
        %v2782 = vmax.f32 %v2777, 0.0
        %v2783 = vmul.f32 %v2778, %v455
        %v2784 = vmul.f32 %v2779, %v456
        %v2785 = vmul.f32 %v2780, %v457
        %v2786 = vmul.f32 %v2781, %v458
        %v2787 = vmul.f32 %v2782, %v459
        %v2788 = vld [vmem:[%s5] sm:$0xf]
        %s2789 = scalar_lea.vmem %s5, 4
        %v2790 = vld [vmem:[%s2789] sm:$0xf]
        %2795 = vrot.lane.b32.xlu0 %v2783, 127
        %v2796 = vpop.permute.xlu0 %2795
        %2797 = vrot.lane.b32.xlu0 %v2784, 127
        %v2798 = vpop.permute.xlu0 %2797
        %2799 = vrot.lane.b32.xlu0 %v2785, 127
        %v2800 = vpop.permute.xlu0 %2799
        %2801 = vrot.lane.b32.xlu0 %v2786, 127
        %v2802 = vpop.permute.xlu0 %2801
        %v2803 = vsel %vm482, %v2796, %v2798
        %v2804 = vsel %vm482, %v2798, %v2800
        %v2805 = vsel %vm482, %v2800, %v2802
        %v2807 = vsel %vm487, %v2790, 0
        %v2809 = vsel %vm491, %v2803, 0
        %v2811 = vsel %vm491, %v2804, 0
        %v2813 = vsel %vm491, %v2805, 0
        %v2815 = vsel %vm491, %v2802, 0
        %2817 = vmatprep.subr.mxu0 %v2811
        %2818 = vmatpush1.msra.mxu0 %v2809
        %2819 = vmatprep.subr.mxu0 0.0
        %2820 = vmatpush1.msra.mxu0 0.0
        %2821 = vmatprep.subr.mxu0 0.0
        %2822 = vmatpush1.msra.mxu0 0.0
        %2823 = vmatprep.subr.mxu0 0.0
        %2824 = vmatpush1.msra.mxu0 0.0
        %2825 = vmatprep.subr.mxu0 0.0
        %2826 = vmatpush1.msra.mxu0 0.0
        %2827 = vmatprep.subr.mxu0 0.0
        %2828 = vmatpush1.msra.mxu0 0.0
        %2829 = vmatprep.subr.mxu0 0.0
        %2830 = vmatpush1.msra.mxu0 0.0
        %2831 = vmatprep.subr.mxu0 0.0
        %2832 = vmatpush1.msra.mxu0 0.0
        %2833 = vmatprep.subr.mxu0 0.0
        %2834 = vmatpush1.msra.mxu0 0.0
        %2835 = vmatprep.subr.mxu0 0.0
        %2836 = vmatpush1.msra.mxu0 0.0
        %2837 = vmatprep.subr.mxu0 0.0
        %2838 = vmatpush1.msra.mxu0 0.0
        %2839 = vmatprep.subr.mxu0 0.0
        %2840 = vmatpush1.msra.mxu0 0.0
        %2841 = vmatprep.subr.mxu0 0.0
        %2842 = vmatpush1.msra.mxu0 0.0
        %2843 = vmatprep.subr.mxu0 0.0
        %2844 = vmatpush1.msra.mxu0 0.0
        %2845 = vmatprep.subr.mxu0 0.0
        %2846 = vmatpush1.msra.mxu0 0.0
        %2847 = vmatprep.subr.mxu0 0.0
        %2848 = vmatpush1.msra.mxu0 0.0
        %2849 = vmatprep.subr.mxu0 0.0
        %2850 = vmatpush1.msra.mxu0 0.0
        %2851 = vmatprep.subr.mxu0 0.0
        %2852 = vmatpush1.msra.mxu0 0.0
        %2853 = vmatprep.subr.mxu0 0.0
        %2854 = vmatpush1.msra.mxu0 0.0
        %2855 = vmatprep.subr.mxu0 0.0
        %2856 = vmatpush1.msra.mxu0 0.0
        %2857 = vmatprep.subr.mxu0 0.0
        %2858 = vmatpush1.msra.mxu0 0.0
        %2859 = vmatprep.subr.mxu0 0.0
        %2860 = vmatpush1.msra.mxu0 0.0
        %2861 = vmatprep.subr.mxu0 0.0
        %2862 = vmatpush1.msra.mxu0 0.0
        %2863 = vmatprep.subr.mxu0 0.0
        %2864 = vmatpush1.msra.mxu0 0.0
        %2865 = vmatprep.subr.mxu0 0.0
        %2866 = vmatpush1.msra.mxu0 0.0
        %2867 = vmatprep.subr.mxu0 0.0
        %2868 = vmatpush1.msra.mxu0 0.0
        %2869 = vmatprep.subr.mxu0 0.0
        %2870 = vmatpush1.msra.mxu0 0.0
        %2871 = vmatprep.subr.mxu0 0.0
        %2872 = vmatpush1.msra.mxu0 0.0
        %2873 = vmatprep.subr.mxu0 0.0
        %2874 = vmatpush1.msra.mxu0 0.0
        %2875 = vmatprep.subr.mxu0 0.0
        %2876 = vmatpush1.msra.mxu0 0.0
        %2877 = vmatprep.subr.mxu0 0.0
        %2878 = vmatpush1.msra.mxu0 0.0
        %2879 = vmatprep.subr.mxu0 0.0
        %2880 = vmatpush1.msra.mxu0 0.0
        %2881 = vmatprep.mubr.f32.mxu0 0.0
        %2882 = vmatmul.mubr.f32.gmra.mrb[0].mxu0 %v2807
        %v2883 = vpop.f32.mrb[0].mxu0
        %v2884 = vadd.f32 0.0, %v2883
        %v2885 = vpop.f32.mrb[0].mxu0
        %v2886 = vadd.f32 0.0, %v2885
        %2887 = vdwg.mxu0
        %2888 = vmatprep.subr.mxu0 %v2815
        %2889 = vmatpush1.msra.mxu0 %v2813
        %2890 = vmatprep.subr.mxu0 0.0
        %2891 = vmatpush1.msra.mxu0 0.0
        %2892 = vmatprep.subr.mxu0 0.0
        %2893 = vmatpush1.msra.mxu0 0.0
        %2894 = vmatprep.subr.mxu0 0.0
        %2895 = vmatpush1.msra.mxu0 0.0
        %2896 = vmatprep.subr.mxu0 0.0
        %2897 = vmatpush1.msra.mxu0 0.0
        %2898 = vmatprep.subr.mxu0 0.0
        %2899 = vmatpush1.msra.mxu0 0.0
        %2900 = vmatprep.subr.mxu0 0.0
        %2901 = vmatpush1.msra.mxu0 0.0
        %2902 = vmatprep.subr.mxu0 0.0
        %2903 = vmatpush1.msra.mxu0 0.0
        %2904 = vmatprep.subr.mxu0 0.0
        %2905 = vmatpush1.msra.mxu0 0.0
        %2906 = vmatprep.subr.mxu0 0.0
        %2907 = vmatpush1.msra.mxu0 0.0
        %2908 = vmatprep.subr.mxu0 0.0
        %2909 = vmatpush1.msra.mxu0 0.0
        %2910 = vmatprep.subr.mxu0 0.0
        %2911 = vmatpush1.msra.mxu0 0.0
        %2912 = vmatprep.subr.mxu0 0.0
        %2913 = vmatpush1.msra.mxu0 0.0
        %2914 = vmatprep.subr.mxu0 0.0
        %2915 = vmatpush1.msra.mxu0 0.0
        %2916 = vmatprep.subr.mxu0 0.0
        %2917 = vmatpush1.msra.mxu0 0.0
        %2918 = vmatprep.subr.mxu0 0.0
        %2919 = vmatpush1.msra.mxu0 0.0
        %2920 = vmatprep.subr.mxu0 0.0
        %2921 = vmatpush1.msra.mxu0 0.0
        %2922 = vmatprep.subr.mxu0 0.0
        %2923 = vmatpush1.msra.mxu0 0.0
        %2924 = vmatprep.subr.mxu0 0.0
        %2925 = vmatpush1.msra.mxu0 0.0
        %2926 = vmatprep.subr.mxu0 0.0
        %2927 = vmatpush1.msra.mxu0 0.0
        %2928 = vmatprep.subr.mxu0 0.0
        %2929 = vmatpush1.msra.mxu0 0.0
        %2930 = vmatprep.subr.mxu0 0.0
        %2931 = vmatpush1.msra.mxu0 0.0
        %2932 = vmatprep.subr.mxu0 0.0
        %2933 = vmatpush1.msra.mxu0 0.0
        %2934 = vmatprep.subr.mxu0 0.0
        %2935 = vmatpush1.msra.mxu0 0.0
        %2936 = vmatprep.subr.mxu0 0.0
        %2937 = vmatpush1.msra.mxu0 0.0
        %2938 = vmatprep.subr.mxu0 0.0
        %2939 = vmatpush1.msra.mxu0 0.0
        %2940 = vmatprep.subr.mxu0 0.0
        %2941 = vmatpush1.msra.mxu0 0.0
        %2942 = vmatprep.subr.mxu0 0.0
        %2943 = vmatpush1.msra.mxu0 0.0
        %2944 = vmatprep.subr.mxu0 0.0
        %2945 = vmatpush1.msra.mxu0 0.0
        %2946 = vmatprep.subr.mxu0 0.0
        %2947 = vmatpush1.msra.mxu0 0.0
        %2948 = vmatprep.subr.mxu0 0.0
        %2949 = vmatpush1.msra.mxu0 0.0
        %2950 = vmatprep.subr.mxu0 0.0
        %2951 = vmatpush1.msra.mxu0 0.0
        %2952 = vmatprep.mubr.f32.mxu0 0.0
        %2953 = vmatmul.mubr.f32.gmra.mrb[0].mxu0 %v2807
        %v2954 = vpop.f32.mrb[0].mxu0
        %v2955 = vadd.f32 0.0, %v2954
        %v2956 = vpop.f32.mrb[0].mxu0
        %v2957 = vadd.f32 0.0, %v2956
        %2958 = vdwg.mxu0
        %v2960 = vsel %vm487, %v2788, 0
        %v2962 = vsel %vm491, %v2783, 0
        %v2964 = vsel %vm491, %v2784, 0
        %v2966 = vsel %vm491, %v2785, 0
        %v2968 = vsel %vm491, %v2786, 0
        %2970 = vmatprep.subr.mxu0 %v2964
        %2971 = vmatpush1.msra.mxu0 %v2962
        %2972 = vmatprep.subr.mxu0 0.0
        %2973 = vmatpush1.msra.mxu0 0.0
        %2974 = vmatprep.subr.mxu0 0.0
        %2975 = vmatpush1.msra.mxu0 0.0
        %2976 = vmatprep.subr.mxu0 0.0
        %2977 = vmatpush1.msra.mxu0 0.0
        %2978 = vmatprep.subr.mxu0 0.0
        %2979 = vmatpush1.msra.mxu0 0.0
        %2980 = vmatprep.subr.mxu0 0.0
        %2981 = vmatpush1.msra.mxu0 0.0
        %2982 = vmatprep.subr.mxu0 0.0
        %2983 = vmatpush1.msra.mxu0 0.0
        %2984 = vmatprep.subr.mxu0 0.0
        %2985 = vmatpush1.msra.mxu0 0.0
        %2986 = vmatprep.subr.mxu0 0.0
        %2987 = vmatpush1.msra.mxu0 0.0
        %2988 = vmatprep.subr.mxu0 0.0
        %2989 = vmatpush1.msra.mxu0 0.0
        %2990 = vmatprep.subr.mxu0 0.0
        %2991 = vmatpush1.msra.mxu0 0.0
        %2992 = vmatprep.subr.mxu0 0.0
        %2993 = vmatpush1.msra.mxu0 0.0
        %2994 = vmatprep.subr.mxu0 0.0
        %2995 = vmatpush1.msra.mxu0 0.0
        %2996 = vmatprep.subr.mxu0 0.0
        %2997 = vmatpush1.msra.mxu0 0.0
        %2998 = vmatprep.subr.mxu0 0.0
        %2999 = vmatpush1.msra.mxu0 0.0
        %3000 = vmatprep.subr.mxu0 0.0
        %3001 = vmatpush1.msra.mxu0 0.0
        %3002 = vmatprep.subr.mxu0 0.0
        %3003 = vmatpush1.msra.mxu0 0.0
        %3004 = vmatprep.subr.mxu0 0.0
        %3005 = vmatpush1.msra.mxu0 0.0
        %3006 = vmatprep.subr.mxu0 0.0
        %3007 = vmatpush1.msra.mxu0 0.0
        %3008 = vmatprep.subr.mxu0 0.0
        %3009 = vmatpush1.msra.mxu0 0.0
        %3010 = vmatprep.subr.mxu0 0.0
        %3011 = vmatpush1.msra.mxu0 0.0
        %3012 = vmatprep.subr.mxu0 0.0
        %3013 = vmatpush1.msra.mxu0 0.0
        %3014 = vmatprep.subr.mxu0 0.0
        %3015 = vmatpush1.msra.mxu0 0.0
        %3016 = vmatprep.subr.mxu0 0.0
        %3017 = vmatpush1.msra.mxu0 0.0
        %3018 = vmatprep.subr.mxu0 0.0
        %3019 = vmatpush1.msra.mxu0 0.0
        %3020 = vmatprep.subr.mxu0 0.0
        %3021 = vmatpush1.msra.mxu0 0.0
        %3022 = vmatprep.subr.mxu0 0.0
        %3023 = vmatpush1.msra.mxu0 0.0
        %3024 = vmatprep.subr.mxu0 0.0
        %3025 = vmatpush1.msra.mxu0 0.0
        %3026 = vmatprep.subr.mxu0 0.0
        %3027 = vmatpush1.msra.mxu0 0.0
        %3028 = vmatprep.subr.mxu0 0.0
        %3029 = vmatpush1.msra.mxu0 0.0
        %3030 = vmatprep.subr.mxu0 0.0
        %3031 = vmatpush1.msra.mxu0 0.0
        %3032 = vmatprep.subr.mxu0 0.0
        %3033 = vmatpush1.msra.mxu0 0.0
        %3034 = vmatprep.mubr.f32.mxu0 0.0
        %3035 = vmatmul.mubr.f32.gmra.mrb[0].mxu0 %v2960
        %v3036 = vpop.f32.mrb[0].mxu0
        %v3037 = vadd.f32 %v2884, %v3036
        %v3038 = vpop.f32.mrb[0].mxu0
        %v3039 = vadd.f32 %v2886, %v3038
        %3040 = vdwg.mxu0
        %3041 = vmatprep.subr.mxu0 %v2968
        %3042 = vmatpush1.msra.mxu0 %v2966
        %3043 = vmatprep.subr.mxu0 0.0
        %3044 = vmatpush1.msra.mxu0 0.0
        %3045 = vmatprep.subr.mxu0 0.0
        %3046 = vmatpush1.msra.mxu0 0.0
        %3047 = vmatprep.subr.mxu0 0.0
        %3048 = vmatpush1.msra.mxu0 0.0
        %3049 = vmatprep.subr.mxu0 0.0
        %3050 = vmatpush1.msra.mxu0 0.0
        %3051 = vmatprep.subr.mxu0 0.0
        %3052 = vmatpush1.msra.mxu0 0.0
        %3053 = vmatprep.subr.mxu0 0.0
        %3054 = vmatpush1.msra.mxu0 0.0
        %3055 = vmatprep.subr.mxu0 0.0
        %3056 = vmatpush1.msra.mxu0 0.0
        %3057 = vmatprep.subr.mxu0 0.0
        %3058 = vmatpush1.msra.mxu0 0.0
        %3059 = vmatprep.subr.mxu0 0.0
        %3060 = vmatpush1.msra.mxu0 0.0
        %3061 = vmatprep.subr.mxu0 0.0
        %3062 = vmatpush1.msra.mxu0 0.0
        %3063 = vmatprep.subr.mxu0 0.0
        %3064 = vmatpush1.msra.mxu0 0.0
        %3065 = vmatprep.subr.mxu0 0.0
        %3066 = vmatpush1.msra.mxu0 0.0
        %3067 = vmatprep.subr.mxu0 0.0
        %3068 = vmatpush1.msra.mxu0 0.0
        %3069 = vmatprep.subr.mxu0 0.0
        %3070 = vmatpush1.msra.mxu0 0.0
        %3071 = vmatprep.subr.mxu0 0.0
        %3072 = vmatpush1.msra.mxu0 0.0
        %3073 = vmatprep.subr.mxu0 0.0
        %3074 = vmatpush1.msra.mxu0 0.0
        %3075 = vmatprep.subr.mxu0 0.0
        %3076 = vmatpush1.msra.mxu0 0.0
        %3077 = vmatprep.subr.mxu0 0.0
        %3078 = vmatpush1.msra.mxu0 0.0
        %3079 = vmatprep.subr.mxu0 0.0
        %3080 = vmatpush1.msra.mxu0 0.0
        %3081 = vmatprep.subr.mxu0 0.0
        %3082 = vmatpush1.msra.mxu0 0.0
        %3083 = vmatprep.subr.mxu0 0.0
        %3084 = vmatpush1.msra.mxu0 0.0
        %3085 = vmatprep.subr.mxu0 0.0
        %3086 = vmatpush1.msra.mxu0 0.0
        %3087 = vmatprep.subr.mxu0 0.0
        %3088 = vmatpush1.msra.mxu0 0.0
        %3089 = vmatprep.subr.mxu0 0.0
        %3090 = vmatpush1.msra.mxu0 0.0
        %3091 = vmatprep.subr.mxu0 0.0
        %3092 = vmatpush1.msra.mxu0 0.0
        %3093 = vmatprep.subr.mxu0 0.0
        %3094 = vmatpush1.msra.mxu0 0.0
        %3095 = vmatprep.subr.mxu0 0.0
        %3096 = vmatpush1.msra.mxu0 0.0
        %3097 = vmatprep.subr.mxu0 0.0
        %3098 = vmatpush1.msra.mxu0 0.0
        %3099 = vmatprep.subr.mxu0 0.0
        %3100 = vmatpush1.msra.mxu0 0.0
        %3101 = vmatprep.subr.mxu0 0.0
        %3102 = vmatpush1.msra.mxu0 0.0
        %3103 = vmatprep.subr.mxu0 0.0
        %3104 = vmatpush1.msra.mxu0 0.0
        %3105 = vmatprep.mubr.f32.mxu0 0.0
        %3106 = vmatmul.mubr.f32.gmra.mrb[0].mxu0 %v2960
        %v3107 = vpop.f32.mrb[0].mxu0
        %v3108 = vadd.f32 %v2955, %v3107
        %v3109 = vpop.f32.mrb[0].mxu0
        %v3110 = vadd.f32 %v2957, %v3109
        %3111 = vdwg.mxu0
        %s3112 = scalar_lea.vmem %s5, 8
        %v3113 = vld [vmem:[%s3112] sm:$0xf]
        %3114 = vrot.lane.b32.xlu0 %v2783, 126
        %v3115 = vpop.permute.xlu0 %3114
        %3116 = vrot.lane.b32.xlu0 %v2784, 126
        %v3117 = vpop.permute.xlu0 %3116
        %3118 = vrot.lane.b32.xlu0 %v2785, 126
        %v3119 = vpop.permute.xlu0 %3118
        %3120 = vrot.lane.b32.xlu0 %v2786, 126
        %v3121 = vpop.permute.xlu0 %3120
        %v3122 = vsel %vm951, %v3115, %v3117
        %v3123 = vsel %vm951, %v3117, %v3119
        %v3124 = vsel %vm951, %v3119, %v3121
        %v3126 = vsel %vm487, %v3113, 0
        %v3128 = vsel %vm491, %v3122, 0
        %v3130 = vsel %vm491, %v3123, 0
        %v3132 = vsel %vm491, %v3124, 0
        %v3134 = vsel %vm491, %v3121, 0
        %3136 = vmatprep.subr.mxu0 %v3130
        %3137 = vmatpush1.msra.mxu0 %v3128
        %3138 = vmatprep.subr.mxu0 0.0
        %3139 = vmatpush1.msra.mxu0 0.0
        %3140 = vmatprep.subr.mxu0 0.0
        %3141 = vmatpush1.msra.mxu0 0.0
        %3142 = vmatprep.subr.mxu0 0.0
        %3143 = vmatpush1.msra.mxu0 0.0
        %3144 = vmatprep.subr.mxu0 0.0
        %3145 = vmatpush1.msra.mxu0 0.0
        %3146 = vmatprep.subr.mxu0 0.0
        %3147 = vmatpush1.msra.mxu0 0.0
        %3148 = vmatprep.subr.mxu0 0.0
        %3149 = vmatpush1.msra.mxu0 0.0
        %3150 = vmatprep.subr.mxu0 0.0
        %3151 = vmatpush1.msra.mxu0 0.0
        %3152 = vmatprep.subr.mxu0 0.0
        %3153 = vmatpush1.msra.mxu0 0.0
        %3154 = vmatprep.subr.mxu0 0.0
        %3155 = vmatpush1.msra.mxu0 0.0
        %3156 = vmatprep.subr.mxu0 0.0
        %3157 = vmatpush1.msra.mxu0 0.0
        %3158 = vmatprep.subr.mxu0 0.0
        %3159 = vmatpush1.msra.mxu0 0.0
        %3160 = vmatprep.subr.mxu0 0.0
        %3161 = vmatpush1.msra.mxu0 0.0
        %3162 = vmatprep.subr.mxu0 0.0
        %3163 = vmatpush1.msra.mxu0 0.0
        %3164 = vmatprep.subr.mxu0 0.0
        %3165 = vmatpush1.msra.mxu0 0.0
        %3166 = vmatprep.subr.mxu0 0.0
        %3167 = vmatpush1.msra.mxu0 0.0
        %3168 = vmatprep.subr.mxu0 0.0
        %3169 = vmatpush1.msra.mxu0 0.0
        %3170 = vmatprep.subr.mxu0 0.0
        %3171 = vmatpush1.msra.mxu0 0.0
        %3172 = vmatprep.subr.mxu0 0.0
        %3173 = vmatpush1.msra.mxu0 0.0
        %3174 = vmatprep.subr.mxu0 0.0
        %3175 = vmatpush1.msra.mxu0 0.0
        %3176 = vmatprep.subr.mxu0 0.0
        %3177 = vmatpush1.msra.mxu0 0.0
        %3178 = vmatprep.subr.mxu0 0.0
        %3179 = vmatpush1.msra.mxu0 0.0
        %3180 = vmatprep.subr.mxu0 0.0
        %3181 = vmatpush1.msra.mxu0 0.0
        %3182 = vmatprep.subr.mxu0 0.0
        %3183 = vmatpush1.msra.mxu0 0.0
        %3184 = vmatprep.subr.mxu0 0.0
        %3185 = vmatpush1.msra.mxu0 0.0
        %3186 = vmatprep.subr.mxu0 0.0
        %3187 = vmatpush1.msra.mxu0 0.0
        %3188 = vmatprep.subr.mxu0 0.0
        %3189 = vmatpush1.msra.mxu0 0.0
        %3190 = vmatprep.subr.mxu0 0.0
        %3191 = vmatpush1.msra.mxu0 0.0
        %3192 = vmatprep.subr.mxu0 0.0
        %3193 = vmatpush1.msra.mxu0 0.0
        %3194 = vmatprep.subr.mxu0 0.0
        %3195 = vmatpush1.msra.mxu0 0.0
        %3196 = vmatprep.subr.mxu0 0.0
        %3197 = vmatpush1.msra.mxu0 0.0
        %3198 = vmatprep.subr.mxu0 0.0
        %3199 = vmatpush1.msra.mxu0 0.0
        %3200 = vmatprep.mubr.f32.mxu0 0.0
        %3201 = vmatmul.mubr.f32.gmra.mrb[0].mxu0 %v3126
        %v3202 = vpop.f32.mrb[0].mxu0
        %v3203 = vadd.f32 0.0, %v3202
        %v3204 = vpop.f32.mrb[0].mxu0
        %v3205 = vadd.f32 0.0, %v3204
        %3206 = vdwg.mxu0
        %3207 = vmatprep.subr.mxu0 %v3134
        %3208 = vmatpush1.msra.mxu0 %v3132
        %3209 = vmatprep.subr.mxu0 0.0
        %3210 = vmatpush1.msra.mxu0 0.0
        %3211 = vmatprep.subr.mxu0 0.0
        %3212 = vmatpush1.msra.mxu0 0.0
        %3213 = vmatprep.subr.mxu0 0.0
        %3214 = vmatpush1.msra.mxu0 0.0
        %3215 = vmatprep.subr.mxu0 0.0
        %3216 = vmatpush1.msra.mxu0 0.0
        %3217 = vmatprep.subr.mxu0 0.0
        %3218 = vmatpush1.msra.mxu0 0.0
        %3219 = vmatprep.subr.mxu0 0.0
        %3220 = vmatpush1.msra.mxu0 0.0
        %3221 = vmatprep.subr.mxu0 0.0
        %3222 = vmatpush1.msra.mxu0 0.0
        %3223 = vmatprep.subr.mxu0 0.0
        %3224 = vmatpush1.msra.mxu0 0.0
        %3225 = vmatprep.subr.mxu0 0.0
        %3226 = vmatpush1.msra.mxu0 0.0
        %3227 = vmatprep.subr.mxu0 0.0
        %3228 = vmatpush1.msra.mxu0 0.0
        %3229 = vmatprep.subr.mxu0 0.0
        %3230 = vmatpush1.msra.mxu0 0.0
        %3231 = vmatprep.subr.mxu0 0.0
        %3232 = vmatpush1.msra.mxu0 0.0
        %3233 = vmatprep.subr.mxu0 0.0
        %3234 = vmatpush1.msra.mxu0 0.0
        %3235 = vmatprep.subr.mxu0 0.0
        %3236 = vmatpush1.msra.mxu0 0.0
        %3237 = vmatprep.subr.mxu0 0.0
        %3238 = vmatpush1.msra.mxu0 0.0
        %3239 = vmatprep.subr.mxu0 0.0
        %3240 = vmatpush1.msra.mxu0 0.0
        %3241 = vmatprep.subr.mxu0 0.0
        %3242 = vmatpush1.msra.mxu0 0.0
        %3243 = vmatprep.subr.mxu0 0.0
        %3244 = vmatpush1.msra.mxu0 0.0
        %3245 = vmatprep.subr.mxu0 0.0
        %3246 = vmatpush1.msra.mxu0 0.0
        %3247 = vmatprep.subr.mxu0 0.0
        %3248 = vmatpush1.msra.mxu0 0.0
        %3249 = vmatprep.subr.mxu0 0.0
        %3250 = vmatpush1.msra.mxu0 0.0
        %3251 = vmatprep.subr.mxu0 0.0
        %3252 = vmatpush1.msra.mxu0 0.0
        %3253 = vmatprep.subr.mxu0 0.0
        %3254 = vmatpush1.msra.mxu0 0.0
        %3255 = vmatprep.subr.mxu0 0.0
        %3256 = vmatpush1.msra.mxu0 0.0
        %3257 = vmatprep.subr.mxu0 0.0
        %3258 = vmatpush1.msra.mxu0 0.0
        %3259 = vmatprep.subr.mxu0 0.0
        %3260 = vmatpush1.msra.mxu0 0.0
        %3261 = vmatprep.subr.mxu0 0.0
        %3262 = vmatpush1.msra.mxu0 0.0
        %3263 = vmatprep.subr.mxu0 0.0
        %3264 = vmatpush1.msra.mxu0 0.0
        %3265 = vmatprep.subr.mxu0 0.0
        %3266 = vmatpush1.msra.mxu0 0.0
        %3267 = vmatprep.subr.mxu0 0.0
        %3268 = vmatpush1.msra.mxu0 0.0
        %3269 = vmatprep.subr.mxu0 0.0
        %3270 = vmatpush1.msra.mxu0 0.0
        %3271 = vmatprep.mubr.f32.mxu0 0.0
        %3272 = vmatmul.mubr.f32.gmra.mrb[0].mxu0 %v3126
        %v3273 = vpop.f32.mrb[0].mxu0
        %v3274 = vadd.f32 0.0, %v3273
        %v3275 = vpop.f32.mrb[0].mxu0
        %v3276 = vadd.f32 0.0, %v3275
        %3277 = vdwg.mxu0
        %v3278 = vadd.f32 %v3037, %v3203
        %v3279 = vadd.f32 %v3039, %v3205
        %v3280 = vadd.f32 %v3108, %v3274
        %v3281 = vadd.f32 %v3110, %v3276
        %s3282 = scalar_lea.vmem %s5, 12
        %v3283 = vld [vmem:[%s3282] sm:$0xf]
        %3284 = vrot.lane.b32.xlu0 %v2783, 104
        %v3285 = vpop.permute.xlu0 %3284
        %3286 = vrot.lane.b32.xlu0 %v2784, 104
        %v3287 = vpop.permute.xlu0 %3286
        %3288 = vrot.lane.b32.xlu0 %v2785, 104
        %v3289 = vpop.permute.xlu0 %3288
        %3290 = vrot.lane.b32.xlu0 %v2786, 104
        %v3291 = vpop.permute.xlu0 %3290
        %v3292 = vsel %vm1198, %v3285, %v3287
        %v3293 = vsel %vm1198, %v3287, %v3289
        %v3294 = vsel %vm1198, %v3289, %v3291
        %v3296 = vsel %vm487, %v3283, 0
        %v3298 = vsel %vm491, %v3292, 0
        %v3300 = vsel %vm491, %v3293, 0
        %v3302 = vsel %vm491, %v3294, 0
        %v3304 = vsel %vm491, %v3291, 0
        %3306 = vmatprep.subr.mxu0 %v3300
        %3307 = vmatpush1.msra.mxu0 %v3298
        %3308 = vmatprep.subr.mxu0 0.0
        %3309 = vmatpush1.msra.mxu0 0.0
        %3310 = vmatprep.subr.mxu0 0.0
        %3311 = vmatpush1.msra.mxu0 0.0
        %3312 = vmatprep.subr.mxu0 0.0
        %3313 = vmatpush1.msra.mxu0 0.0
        %3314 = vmatprep.subr.mxu0 0.0
        %3315 = vmatpush1.msra.mxu0 0.0
        %3316 = vmatprep.subr.mxu0 0.0
        %3317 = vmatpush1.msra.mxu0 0.0
        %3318 = vmatprep.subr.mxu0 0.0
        %3319 = vmatpush1.msra.mxu0 0.0
        %3320 = vmatprep.subr.mxu0 0.0
        %3321 = vmatpush1.msra.mxu0 0.0
        %3322 = vmatprep.subr.mxu0 0.0
        %3323 = vmatpush1.msra.mxu0 0.0
        %3324 = vmatprep.subr.mxu0 0.0
        %3325 = vmatpush1.msra.mxu0 0.0
        %3326 = vmatprep.subr.mxu0 0.0
        %3327 = vmatpush1.msra.mxu0 0.0
        %3328 = vmatprep.subr.mxu0 0.0
        %3329 = vmatpush1.msra.mxu0 0.0
        %3330 = vmatprep.subr.mxu0 0.0
        %3331 = vmatpush1.msra.mxu0 0.0
        %3332 = vmatprep.subr.mxu0 0.0
        %3333 = vmatpush1.msra.mxu0 0.0
        %3334 = vmatprep.subr.mxu0 0.0
        %3335 = vmatpush1.msra.mxu0 0.0
        %3336 = vmatprep.subr.mxu0 0.0
        %3337 = vmatpush1.msra.mxu0 0.0
        %3338 = vmatprep.subr.mxu0 0.0
        %3339 = vmatpush1.msra.mxu0 0.0
        %3340 = vmatprep.subr.mxu0 0.0
        %3341 = vmatpush1.msra.mxu0 0.0
        %3342 = vmatprep.subr.mxu0 0.0
        %3343 = vmatpush1.msra.mxu0 0.0
        %3344 = vmatprep.subr.mxu0 0.0
        %3345 = vmatpush1.msra.mxu0 0.0
        %3346 = vmatprep.subr.mxu0 0.0
        %3347 = vmatpush1.msra.mxu0 0.0
        %3348 = vmatprep.subr.mxu0 0.0
        %3349 = vmatpush1.msra.mxu0 0.0
        %3350 = vmatprep.subr.mxu0 0.0
        %3351 = vmatpush1.msra.mxu0 0.0
        %3352 = vmatprep.subr.mxu0 0.0
        %3353 = vmatpush1.msra.mxu0 0.0
        %3354 = vmatprep.subr.mxu0 0.0
        %3355 = vmatpush1.msra.mxu0 0.0
        %3356 = vmatprep.subr.mxu0 0.0
        %3357 = vmatpush1.msra.mxu0 0.0
        %3358 = vmatprep.subr.mxu0 0.0
        %3359 = vmatpush1.msra.mxu0 0.0
        %3360 = vmatprep.subr.mxu0 0.0
        %3361 = vmatpush1.msra.mxu0 0.0
        %3362 = vmatprep.subr.mxu0 0.0
        %3363 = vmatpush1.msra.mxu0 0.0
        %3364 = vmatprep.subr.mxu0 0.0
        %3365 = vmatpush1.msra.mxu0 0.0
        %3366 = vmatprep.subr.mxu0 0.0
        %3367 = vmatpush1.msra.mxu0 0.0
        %3368 = vmatprep.subr.mxu0 0.0
        %3369 = vmatpush1.msra.mxu0 0.0
        %3370 = vmatprep.mubr.f32.mxu0 0.0
        %3371 = vmatmul.mubr.f32.gmra.mrb[0].mxu0 %v3296
        %v3372 = vpop.f32.mrb[0].mxu0
        %v3373 = vadd.f32 0.0, %v3372
        %v3374 = vpop.f32.mrb[0].mxu0
        %v3375 = vadd.f32 0.0, %v3374
        %3376 = vdwg.mxu0
        %3377 = vmatprep.subr.mxu0 %v3304
        %3378 = vmatpush1.msra.mxu0 %v3302
        %3379 = vmatprep.subr.mxu0 0.0
        %3380 = vmatpush1.msra.mxu0 0.0
        %3381 = vmatprep.subr.mxu0 0.0
        %3382 = vmatpush1.msra.mxu0 0.0
        %3383 = vmatprep.subr.mxu0 0.0
        %3384 = vmatpush1.msra.mxu0 0.0
        %3385 = vmatprep.subr.mxu0 0.0
        %3386 = vmatpush1.msra.mxu0 0.0
        %3387 = vmatprep.subr.mxu0 0.0
        %3388 = vmatpush1.msra.mxu0 0.0
        %3389 = vmatprep.subr.mxu0 0.0
        %3390 = vmatpush1.msra.mxu0 0.0
        %3391 = vmatprep.subr.mxu0 0.0
        %3392 = vmatpush1.msra.mxu0 0.0
        %3393 = vmatprep.subr.mxu0 0.0
        %3394 = vmatpush1.msra.mxu0 0.0
        %3395 = vmatprep.subr.mxu0 0.0
        %3396 = vmatpush1.msra.mxu0 0.0
        %3397 = vmatprep.subr.mxu0 0.0
        %3398 = vmatpush1.msra.mxu0 0.0
        %3399 = vmatprep.subr.mxu0 0.0
        %3400 = vmatpush1.msra.mxu0 0.0
        %3401 = vmatprep.subr.mxu0 0.0
        %3402 = vmatpush1.msra.mxu0 0.0
        %3403 = vmatprep.subr.mxu0 0.0
        %3404 = vmatpush1.msra.mxu0 0.0
        %3405 = vmatprep.subr.mxu0 0.0
        %3406 = vmatpush1.msra.mxu0 0.0
        %3407 = vmatprep.subr.mxu0 0.0
        %3408 = vmatpush1.msra.mxu0 0.0
        %3409 = vmatprep.subr.mxu0 0.0
        %3410 = vmatpush1.msra.mxu0 0.0
        %3411 = vmatprep.subr.mxu0 0.0
        %3412 = vmatpush1.msra.mxu0 0.0
        %3413 = vmatprep.subr.mxu0 0.0
        %3414 = vmatpush1.msra.mxu0 0.0
        %3415 = vmatprep.subr.mxu0 0.0
        %3416 = vmatpush1.msra.mxu0 0.0
        %3417 = vmatprep.subr.mxu0 0.0
        %3418 = vmatpush1.msra.mxu0 0.0
        %3419 = vmatprep.subr.mxu0 0.0
        %3420 = vmatpush1.msra.mxu0 0.0
        %3421 = vmatprep.subr.mxu0 0.0
        %3422 = vmatpush1.msra.mxu0 0.0
        %3423 = vmatprep.subr.mxu0 0.0
        %3424 = vmatpush1.msra.mxu0 0.0
        %3425 = vmatprep.subr.mxu0 0.0
        %3426 = vmatpush1.msra.mxu0 0.0
        %3427 = vmatprep.subr.mxu0 0.0
        %3428 = vmatpush1.msra.mxu0 0.0
        %3429 = vmatprep.subr.mxu0 0.0
        %3430 = vmatpush1.msra.mxu0 0.0
        %3431 = vmatprep.subr.mxu0 0.0
        %3432 = vmatpush1.msra.mxu0 0.0
        %3433 = vmatprep.subr.mxu0 0.0
        %3434 = vmatpush1.msra.mxu0 0.0
        %3435 = vmatprep.subr.mxu0 0.0
        %3436 = vmatpush1.msra.mxu0 0.0
        %3437 = vmatprep.subr.mxu0 0.0
        %3438 = vmatpush1.msra.mxu0 0.0
        %3439 = vmatprep.subr.mxu0 0.0
        %3440 = vmatpush1.msra.mxu0 0.0
        %3441 = vmatprep.mubr.f32.mxu0 0.0
        %3442 = vmatmul.mubr.f32.gmra.mrb[0].mxu0 %v3296
        %v3443 = vpop.f32.mrb[0].mxu0
        %v3444 = vadd.f32 0.0, %v3443
        %v3445 = vpop.f32.mrb[0].mxu0
        %v3446 = vadd.f32 0.0, %v3445
        %3447 = vdwg.mxu0
        %v3448 = vadd.f32 %v3278, %v3373
        %v3449 = vadd.f32 %v3279, %v3375
        %v3450 = vadd.f32 %v3280, %v3444
        %v3451 = vadd.f32 %v3281, %v3446
        %s3452 = scalar_lea.vmem %s5, 16
        %v3453 = vld [vmem:[%s3452] sm:$0xf]
        %3454 = vrot.lane.b32.xlu0 %v2783, 103
        %v3455 = vpop.permute.xlu0 %3454
        %3456 = vrot.lane.b32.xlu0 %v2784, 103
        %v3457 = vpop.permute.xlu0 %3456
        %3458 = vrot.lane.b32.xlu0 %v2785, 103
        %v3459 = vpop.permute.xlu0 %3458
        %3460 = vrot.lane.b32.xlu0 %v2786, 103
        %v3461 = vpop.permute.xlu0 %3460
        %v3462 = vsel %vm1445, %v3455, %v3457
        %v3463 = vsel %vm1445, %v3457, %v3459
        %v3464 = vsel %vm1445, %v3459, %v3461
        %v3466 = vsel %vm487, %v3453, 0
        %v3468 = vsel %vm491, %v3462, 0
        %v3470 = vsel %vm491, %v3463, 0
        %v3472 = vsel %vm491, %v3464, 0
        %v3474 = vsel %vm491, %v3461, 0
        %3476 = vmatprep.subr.mxu0 %v3470
        %3477 = vmatpush1.msra.mxu0 %v3468
        %3478 = vmatprep.subr.mxu0 0.0
        %3479 = vmatpush1.msra.mxu0 0.0
        %3480 = vmatprep.subr.mxu0 0.0
        %3481 = vmatpush1.msra.mxu0 0.0
        %3482 = vmatprep.subr.mxu0 0.0
        %3483 = vmatpush1.msra.mxu0 0.0
        %3484 = vmatprep.subr.mxu0 0.0
        %3485 = vmatpush1.msra.mxu0 0.0
        %3486 = vmatprep.subr.mxu0 0.0
        %3487 = vmatpush1.msra.mxu0 0.0
        %3488 = vmatprep.subr.mxu0 0.0
        %3489 = vmatpush1.msra.mxu0 0.0
        %3490 = vmatprep.subr.mxu0 0.0
        %3491 = vmatpush1.msra.mxu0 0.0
        %3492 = vmatprep.subr.mxu0 0.0
        %3493 = vmatpush1.msra.mxu0 0.0
        %3494 = vmatprep.subr.mxu0 0.0
        %3495 = vmatpush1.msra.mxu0 0.0
        %3496 = vmatprep.subr.mxu0 0.0
        %3497 = vmatpush1.msra.mxu0 0.0
        %3498 = vmatprep.subr.mxu0 0.0
        %3499 = vmatpush1.msra.mxu0 0.0
        %3500 = vmatprep.subr.mxu0 0.0
        %3501 = vmatpush1.msra.mxu0 0.0
        %3502 = vmatprep.subr.mxu0 0.0
        %3503 = vmatpush1.msra.mxu0 0.0
        %3504 = vmatprep.subr.mxu0 0.0
        %3505 = vmatpush1.msra.mxu0 0.0
        %3506 = vmatprep.subr.mxu0 0.0
        %3507 = vmatpush1.msra.mxu0 0.0
        %3508 = vmatprep.subr.mxu0 0.0
        %3509 = vmatpush1.msra.mxu0 0.0
        %3510 = vmatprep.subr.mxu0 0.0
        %3511 = vmatpush1.msra.mxu0 0.0
        %3512 = vmatprep.subr.mxu0 0.0
        %3513 = vmatpush1.msra.mxu0 0.0
        %3514 = vmatprep.subr.mxu0 0.0
        %3515 = vmatpush1.msra.mxu0 0.0
        %3516 = vmatprep.subr.mxu0 0.0
        %3517 = vmatpush1.msra.mxu0 0.0
        %3518 = vmatprep.subr.mxu0 0.0
        %3519 = vmatpush1.msra.mxu0 0.0
        %3520 = vmatprep.subr.mxu0 0.0
        %3521 = vmatpush1.msra.mxu0 0.0
        %3522 = vmatprep.subr.mxu0 0.0
        %3523 = vmatpush1.msra.mxu0 0.0
        %3524 = vmatprep.subr.mxu0 0.0
        %3525 = vmatpush1.msra.mxu0 0.0
        %3526 = vmatprep.subr.mxu0 0.0
        %3527 = vmatpush1.msra.mxu0 0.0
        %3528 = vmatprep.subr.mxu0 0.0
        %3529 = vmatpush1.msra.mxu0 0.0
        %3530 = vmatprep.subr.mxu0 0.0
        %3531 = vmatpush1.msra.mxu0 0.0
        %3532 = vmatprep.subr.mxu0 0.0
        %3533 = vmatpush1.msra.mxu0 0.0
        %3534 = vmatprep.subr.mxu0 0.0
        %3535 = vmatpush1.msra.mxu0 0.0
        %3536 = vmatprep.subr.mxu0 0.0
        %3537 = vmatpush1.msra.mxu0 0.0
        %3538 = vmatprep.subr.mxu0 0.0
        %3539 = vmatpush1.msra.mxu0 0.0
        %3540 = vmatprep.mubr.f32.mxu0 0.0
        %3541 = vmatmul.mubr.f32.gmra.mrb[0].mxu0 %v3466
        %v3542 = vpop.f32.mrb[0].mxu0
        %v3543 = vadd.f32 0.0, %v3542
        %v3544 = vpop.f32.mrb[0].mxu0
        %v3545 = vadd.f32 0.0, %v3544
        %3546 = vdwg.mxu0
        %3547 = vmatprep.subr.mxu0 %v3474
        %3548 = vmatpush1.msra.mxu0 %v3472
        %3549 = vmatprep.subr.mxu0 0.0
        %3550 = vmatpush1.msra.mxu0 0.0
        %3551 = vmatprep.subr.mxu0 0.0
        %3552 = vmatpush1.msra.mxu0 0.0
        %3553 = vmatprep.subr.mxu0 0.0
        %3554 = vmatpush1.msra.mxu0 0.0
        %3555 = vmatprep.subr.mxu0 0.0
        %3556 = vmatpush1.msra.mxu0 0.0
        %3557 = vmatprep.subr.mxu0 0.0
        %3558 = vmatpush1.msra.mxu0 0.0
        %3559 = vmatprep.subr.mxu0 0.0
        %3560 = vmatpush1.msra.mxu0 0.0
        %3561 = vmatprep.subr.mxu0 0.0
        %3562 = vmatpush1.msra.mxu0 0.0
        %3563 = vmatprep.subr.mxu0 0.0
        %3564 = vmatpush1.msra.mxu0 0.0
        %3565 = vmatprep.subr.mxu0 0.0
        %3566 = vmatpush1.msra.mxu0 0.0
        %3567 = vmatprep.subr.mxu0 0.0
        %3568 = vmatpush1.msra.mxu0 0.0
        %3569 = vmatprep.subr.mxu0 0.0
        %3570 = vmatpush1.msra.mxu0 0.0
        %3571 = vmatprep.subr.mxu0 0.0
        %3572 = vmatpush1.msra.mxu0 0.0
        %3573 = vmatprep.subr.mxu0 0.0
        %3574 = vmatpush1.msra.mxu0 0.0
        %3575 = vmatprep.subr.mxu0 0.0
        %3576 = vmatpush1.msra.mxu0 0.0
        %3577 = vmatprep.subr.mxu0 0.0
        %3578 = vmatpush1.msra.mxu0 0.0
        %3579 = vmatprep.subr.mxu0 0.0
        %3580 = vmatpush1.msra.mxu0 0.0
        %3581 = vmatprep.subr.mxu0 0.0
        %3582 = vmatpush1.msra.mxu0 0.0
        %3583 = vmatprep.subr.mxu0 0.0
        %3584 = vmatpush1.msra.mxu0 0.0
        %3585 = vmatprep.subr.mxu0 0.0
        %3586 = vmatpush1.msra.mxu0 0.0
        %3587 = vmatprep.subr.mxu0 0.0
        %3588 = vmatpush1.msra.mxu0 0.0
        %3589 = vmatprep.subr.mxu0 0.0
        %3590 = vmatpush1.msra.mxu0 0.0
        %3591 = vmatprep.subr.mxu0 0.0
        %3592 = vmatpush1.msra.mxu0 0.0
        %3593 = vmatprep.subr.mxu0 0.0
        %3594 = vmatpush1.msra.mxu0 0.0
        %3595 = vmatprep.subr.mxu0 0.0
        %3596 = vmatpush1.msra.mxu0 0.0
        %3597 = vmatprep.subr.mxu0 0.0
        %3598 = vmatpush1.msra.mxu0 0.0
        %3599 = vmatprep.subr.mxu0 0.0
        %3600 = vmatpush1.msra.mxu0 0.0
        %3601 = vmatprep.subr.mxu0 0.0
        %3602 = vmatpush1.msra.mxu0 0.0
        %3603 = vmatprep.subr.mxu0 0.0
        %3604 = vmatpush1.msra.mxu0 0.0
        %3605 = vmatprep.subr.mxu0 0.0
        %3606 = vmatpush1.msra.mxu0 0.0
        %3607 = vmatprep.subr.mxu0 0.0
        %3608 = vmatpush1.msra.mxu0 0.0
        %3609 = vmatprep.subr.mxu0 0.0
        %3610 = vmatpush1.msra.mxu0 0.0
        %3611 = vmatprep.mubr.f32.mxu0 0.0
        %3612 = vmatmul.mubr.f32.gmra.mrb[0].mxu0 %v3466
        %v3613 = vpop.f32.mrb[0].mxu0
        %v3614 = vadd.f32 0.0, %v3613
        %v3615 = vpop.f32.mrb[0].mxu0
        %v3616 = vadd.f32 0.0, %v3615
        %3617 = vdwg.mxu0
        %v3618 = vadd.f32 %v3448, %v3543
        %v3619 = vadd.f32 %v3449, %v3545
        %v3620 = vadd.f32 %v3450, %v3614
        %v3621 = vadd.f32 %v3451, %v3616
        %s3622 = scalar_lea.vmem %s5, 20
        %v3623 = vld [vmem:[%s3622] sm:$0xf]
        %3624 = vrot.lane.b32.xlu0 %v2783, 102
        %v3625 = vpop.permute.xlu0 %3624
        %3626 = vrot.lane.b32.xlu0 %v2784, 102
        %v3627 = vpop.permute.xlu0 %3626
        %3628 = vrot.lane.b32.xlu0 %v2785, 102
        %v3629 = vpop.permute.xlu0 %3628
        %3630 = vrot.lane.b32.xlu0 %v2786, 102
        %v3631 = vpop.permute.xlu0 %3630
        %v3632 = vsel %vm1692, %v3625, %v3627
        %v3633 = vsel %vm1692, %v3627, %v3629
        %v3634 = vsel %vm1692, %v3629, %v3631
        %v3636 = vsel %vm487, %v3623, 0
        %v3638 = vsel %vm491, %v3632, 0
        %v3640 = vsel %vm491, %v3633, 0
        %v3642 = vsel %vm491, %v3634, 0
        %v3644 = vsel %vm491, %v3631, 0
        %3646 = vmatprep.subr.mxu0 %v3640
        %3647 = vmatpush1.msra.mxu0 %v3638
        %3648 = vmatprep.subr.mxu0 0.0
        %3649 = vmatpush1.msra.mxu0 0.0
        %3650 = vmatprep.subr.mxu0 0.0
        %3651 = vmatpush1.msra.mxu0 0.0
        %3652 = vmatprep.subr.mxu0 0.0
        %3653 = vmatpush1.msra.mxu0 0.0
        %3654 = vmatprep.subr.mxu0 0.0
        %3655 = vmatpush1.msra.mxu0 0.0
        %3656 = vmatprep.subr.mxu0 0.0
        %3657 = vmatpush1.msra.mxu0 0.0
        %3658 = vmatprep.subr.mxu0 0.0
        %3659 = vmatpush1.msra.mxu0 0.0
        %3660 = vmatprep.subr.mxu0 0.0
        %3661 = vmatpush1.msra.mxu0 0.0
        %3662 = vmatprep.subr.mxu0 0.0
        %3663 = vmatpush1.msra.mxu0 0.0
        %3664 = vmatprep.subr.mxu0 0.0
        %3665 = vmatpush1.msra.mxu0 0.0
        %3666 = vmatprep.subr.mxu0 0.0
        %3667 = vmatpush1.msra.mxu0 0.0
        %3668 = vmatprep.subr.mxu0 0.0
        %3669 = vmatpush1.msra.mxu0 0.0
        %3670 = vmatprep.subr.mxu0 0.0
        %3671 = vmatpush1.msra.mxu0 0.0
        %3672 = vmatprep.subr.mxu0 0.0
        %3673 = vmatpush1.msra.mxu0 0.0
        %3674 = vmatprep.subr.mxu0 0.0
        %3675 = vmatpush1.msra.mxu0 0.0
        %3676 = vmatprep.subr.mxu0 0.0
        %3677 = vmatpush1.msra.mxu0 0.0
        %3678 = vmatprep.subr.mxu0 0.0
        %3679 = vmatpush1.msra.mxu0 0.0
        %3680 = vmatprep.subr.mxu0 0.0
        %3681 = vmatpush1.msra.mxu0 0.0
        %3682 = vmatprep.subr.mxu0 0.0
        %3683 = vmatpush1.msra.mxu0 0.0
        %3684 = vmatprep.subr.mxu0 0.0
        %3685 = vmatpush1.msra.mxu0 0.0
        %3686 = vmatprep.subr.mxu0 0.0
        %3687 = vmatpush1.msra.mxu0 0.0
        %3688 = vmatprep.subr.mxu0 0.0
        %3689 = vmatpush1.msra.mxu0 0.0
        %3690 = vmatprep.subr.mxu0 0.0
        %3691 = vmatpush1.msra.mxu0 0.0
        %3692 = vmatprep.subr.mxu0 0.0
        %3693 = vmatpush1.msra.mxu0 0.0
        %3694 = vmatprep.subr.mxu0 0.0
        %3695 = vmatpush1.msra.mxu0 0.0
        %3696 = vmatprep.subr.mxu0 0.0
        %3697 = vmatpush1.msra.mxu0 0.0
        %3698 = vmatprep.subr.mxu0 0.0
        %3699 = vmatpush1.msra.mxu0 0.0
        %3700 = vmatprep.subr.mxu0 0.0
        %3701 = vmatpush1.msra.mxu0 0.0
        %3702 = vmatprep.subr.mxu0 0.0
        %3703 = vmatpush1.msra.mxu0 0.0
        %3704 = vmatprep.subr.mxu0 0.0
        %3705 = vmatpush1.msra.mxu0 0.0
        %3706 = vmatprep.subr.mxu0 0.0
        %3707 = vmatpush1.msra.mxu0 0.0
        %3708 = vmatprep.subr.mxu0 0.0
        %3709 = vmatpush1.msra.mxu0 0.0
        %3710 = vmatprep.mubr.f32.mxu0 0.0
        %3711 = vmatmul.mubr.f32.gmra.mrb[0].mxu0 %v3636
        %v3712 = vpop.f32.mrb[0].mxu0
        %v3713 = vadd.f32 0.0, %v3712
        %v3714 = vpop.f32.mrb[0].mxu0
        %v3715 = vadd.f32 0.0, %v3714
        %3716 = vdwg.mxu0
        %3717 = vmatprep.subr.mxu0 %v3644
        %3718 = vmatpush1.msra.mxu0 %v3642
        %3719 = vmatprep.subr.mxu0 0.0
        %3720 = vmatpush1.msra.mxu0 0.0
        %3721 = vmatprep.subr.mxu0 0.0
        %3722 = vmatpush1.msra.mxu0 0.0
        %3723 = vmatprep.subr.mxu0 0.0
        %3724 = vmatpush1.msra.mxu0 0.0
        %3725 = vmatprep.subr.mxu0 0.0
        %3726 = vmatpush1.msra.mxu0 0.0
        %3727 = vmatprep.subr.mxu0 0.0
        %3728 = vmatpush1.msra.mxu0 0.0
        %3729 = vmatprep.subr.mxu0 0.0
        %3730 = vmatpush1.msra.mxu0 0.0
        %3731 = vmatprep.subr.mxu0 0.0
        %3732 = vmatpush1.msra.mxu0 0.0
        %3733 = vmatprep.subr.mxu0 0.0
        %3734 = vmatpush1.msra.mxu0 0.0
        %3735 = vmatprep.subr.mxu0 0.0
        %3736 = vmatpush1.msra.mxu0 0.0
        %3737 = vmatprep.subr.mxu0 0.0
        %3738 = vmatpush1.msra.mxu0 0.0
        %3739 = vmatprep.subr.mxu0 0.0
        %3740 = vmatpush1.msra.mxu0 0.0
        %3741 = vmatprep.subr.mxu0 0.0
        %3742 = vmatpush1.msra.mxu0 0.0
        %3743 = vmatprep.subr.mxu0 0.0
        %3744 = vmatpush1.msra.mxu0 0.0
        %3745 = vmatprep.subr.mxu0 0.0
        %3746 = vmatpush1.msra.mxu0 0.0
        %3747 = vmatprep.subr.mxu0 0.0
        %3748 = vmatpush1.msra.mxu0 0.0
        %3749 = vmatprep.subr.mxu0 0.0
        %3750 = vmatpush1.msra.mxu0 0.0
        %3751 = vmatprep.subr.mxu0 0.0
        %3752 = vmatpush1.msra.mxu0 0.0
        %3753 = vmatprep.subr.mxu0 0.0
        %3754 = vmatpush1.msra.mxu0 0.0
        %3755 = vmatprep.subr.mxu0 0.0
        %3756 = vmatpush1.msra.mxu0 0.0
        %3757 = vmatprep.subr.mxu0 0.0
        %3758 = vmatpush1.msra.mxu0 0.0
        %3759 = vmatprep.subr.mxu0 0.0
        %3760 = vmatpush1.msra.mxu0 0.0
        %3761 = vmatprep.subr.mxu0 0.0
        %3762 = vmatpush1.msra.mxu0 0.0
        %3763 = vmatprep.subr.mxu0 0.0
        %3764 = vmatpush1.msra.mxu0 0.0
        %3765 = vmatprep.subr.mxu0 0.0
        %3766 = vmatpush1.msra.mxu0 0.0
        %3767 = vmatprep.subr.mxu0 0.0
        %3768 = vmatpush1.msra.mxu0 0.0
        %3769 = vmatprep.subr.mxu0 0.0
        %3770 = vmatpush1.msra.mxu0 0.0
        %3771 = vmatprep.subr.mxu0 0.0
        %3772 = vmatpush1.msra.mxu0 0.0
        %3773 = vmatprep.subr.mxu0 0.0
        %3774 = vmatpush1.msra.mxu0 0.0
        %3775 = vmatprep.subr.mxu0 0.0
        %3776 = vmatpush1.msra.mxu0 0.0
        %3777 = vmatprep.subr.mxu0 0.0
        %3778 = vmatpush1.msra.mxu0 0.0
        %3779 = vmatprep.subr.mxu0 0.0
        %3780 = vmatpush1.msra.mxu0 0.0
        %3781 = vmatprep.mubr.f32.mxu0 0.0
        %3782 = vmatmul.mubr.f32.gmra.mrb[0].mxu0 %v3636
        %v3783 = vpop.f32.mrb[0].mxu0
        %v3784 = vadd.f32 0.0, %v3783
        %v3785 = vpop.f32.mrb[0].mxu0
        %v3786 = vadd.f32 0.0, %v3785
        %3787 = vdwg.mxu0
        %v3788 = vadd.f32 %v3618, %v3713
        %v3789 = vadd.f32 %v3619, %v3715
        %v3790 = vadd.f32 %v3620, %v3784
        %v3791 = vadd.f32 %v3621, %v3786
        %s3792 = scalar_lea.vmem %s5, 24
        %v3793 = vld [vmem:[%s3792] sm:$0xf]
        %3795 = vrot.lane.b32.xlu0 %v2783, 80
        %v3796 = vpop.permute.xlu0 %3795
        %3797 = vrot.lane.b32.xlu0 %v2784, 80
        %v3798 = vpop.permute.xlu0 %3797
        %3799 = vrot.lane.b32.xlu0 %v2785, 80
        %v3800 = vpop.permute.xlu0 %3799
        %3801 = vrot.lane.b32.xlu0 %v2786, 80
        %v3802 = vpop.permute.xlu0 %3801
        %3803 = vrot.lane.b32.xlu0 %v2787, 80
        %v3804 = vpop.permute.xlu0 %3803
        %v3805 = vsel %vm1939, %v3796, %v3798
        %v3806 = vsel %vm1939, %v3798, %v3800
        %v3807 = vsel %vm1939, %v3800, %v3802
        %v3808 = vsel %vm1939, %v3802, %v3804
        %v3810 = vsel %vm487, %v3793, 0
        %v3812 = vsel %vm491, %v3805, 0
        %v3814 = vsel %vm491, %v3806, 0
        %v3816 = vsel %vm491, %v3807, 0
        %v3818 = vsel %vm491, %v3808, 0
        %3820 = vmatprep.subr.mxu0 %v3814
        %3821 = vmatpush1.msra.mxu0 %v3812
        %3822 = vmatprep.subr.mxu0 0.0
        %3823 = vmatpush1.msra.mxu0 0.0
        %3824 = vmatprep.subr.mxu0 0.0
        %3825 = vmatpush1.msra.mxu0 0.0
        %3826 = vmatprep.subr.mxu0 0.0
        %3827 = vmatpush1.msra.mxu0 0.0
        %3828 = vmatprep.subr.mxu0 0.0
        %3829 = vmatpush1.msra.mxu0 0.0
        %3830 = vmatprep.subr.mxu0 0.0
        %3831 = vmatpush1.msra.mxu0 0.0
        %3832 = vmatprep.subr.mxu0 0.0
        %3833 = vmatpush1.msra.mxu0 0.0
        %3834 = vmatprep.subr.mxu0 0.0
        %3835 = vmatpush1.msra.mxu0 0.0
        %3836 = vmatprep.subr.mxu0 0.0
        %3837 = vmatpush1.msra.mxu0 0.0
        %3838 = vmatprep.subr.mxu0 0.0
        %3839 = vmatpush1.msra.mxu0 0.0
        %3840 = vmatprep.subr.mxu0 0.0
        %3841 = vmatpush1.msra.mxu0 0.0
        %3842 = vmatprep.subr.mxu0 0.0
        %3843 = vmatpush1.msra.mxu0 0.0
        %3844 = vmatprep.subr.mxu0 0.0
        %3845 = vmatpush1.msra.mxu0 0.0
        %3846 = vmatprep.subr.mxu0 0.0
        %3847 = vmatpush1.msra.mxu0 0.0
        %3848 = vmatprep.subr.mxu0 0.0
        %3849 = vmatpush1.msra.mxu0 0.0
        %3850 = vmatprep.subr.mxu0 0.0
        %3851 = vmatpush1.msra.mxu0 0.0
        %3852 = vmatprep.subr.mxu0 0.0
        %3853 = vmatpush1.msra.mxu0 0.0
        %3854 = vmatprep.subr.mxu0 0.0
        %3855 = vmatpush1.msra.mxu0 0.0
        %3856 = vmatprep.subr.mxu0 0.0
        %3857 = vmatpush1.msra.mxu0 0.0
        %3858 = vmatprep.subr.mxu0 0.0
        %3859 = vmatpush1.msra.mxu0 0.0
        %3860 = vmatprep.subr.mxu0 0.0
        %3861 = vmatpush1.msra.mxu0 0.0
        %3862 = vmatprep.subr.mxu0 0.0
        %3863 = vmatpush1.msra.mxu0 0.0
        %3864 = vmatprep.subr.mxu0 0.0
        %3865 = vmatpush1.msra.mxu0 0.0
        %3866 = vmatprep.subr.mxu0 0.0
        %3867 = vmatpush1.msra.mxu0 0.0
        %3868 = vmatprep.subr.mxu0 0.0
        %3869 = vmatpush1.msra.mxu0 0.0
        %3870 = vmatprep.subr.mxu0 0.0
        %3871 = vmatpush1.msra.mxu0 0.0
        %3872 = vmatprep.subr.mxu0 0.0
        %3873 = vmatpush1.msra.mxu0 0.0
        %3874 = vmatprep.subr.mxu0 0.0
        %3875 = vmatpush1.msra.mxu0 0.0
        %3876 = vmatprep.subr.mxu0 0.0
        %3877 = vmatpush1.msra.mxu0 0.0
        %3878 = vmatprep.subr.mxu0 0.0
        %3879 = vmatpush1.msra.mxu0 0.0
        %3880 = vmatprep.subr.mxu0 0.0
        %3881 = vmatpush1.msra.mxu0 0.0
        %3882 = vmatprep.subr.mxu0 0.0
        %3883 = vmatpush1.msra.mxu0 0.0
        %3884 = vmatprep.mubr.f32.mxu0 0.0
        %3885 = vmatmul.mubr.f32.gmra.mrb[0].mxu0 %v3810
        %v3886 = vpop.f32.mrb[0].mxu0
        %v3887 = vadd.f32 0.0, %v3886
        %v3888 = vpop.f32.mrb[0].mxu0
        %v3889 = vadd.f32 0.0, %v3888
        %3890 = vdwg.mxu0
        %3891 = vmatprep.subr.mxu0 %v3818
        %3892 = vmatpush1.msra.mxu0 %v3816
        %3893 = vmatprep.subr.mxu0 0.0
        %3894 = vmatpush1.msra.mxu0 0.0
        %3895 = vmatprep.subr.mxu0 0.0
        %3896 = vmatpush1.msra.mxu0 0.0
        %3897 = vmatprep.subr.mxu0 0.0
        %3898 = vmatpush1.msra.mxu0 0.0
        %3899 = vmatprep.subr.mxu0 0.0
        %3900 = vmatpush1.msra.mxu0 0.0
        %3901 = vmatprep.subr.mxu0 0.0
        %3902 = vmatpush1.msra.mxu0 0.0
        %3903 = vmatprep.subr.mxu0 0.0
        %3904 = vmatpush1.msra.mxu0 0.0
        %3905 = vmatprep.subr.mxu0 0.0
        %3906 = vmatpush1.msra.mxu0 0.0
        %3907 = vmatprep.subr.mxu0 0.0
        %3908 = vmatpush1.msra.mxu0 0.0
        %3909 = vmatprep.subr.mxu0 0.0
        %3910 = vmatpush1.msra.mxu0 0.0
        %3911 = vmatprep.subr.mxu0 0.0
        %3912 = vmatpush1.msra.mxu0 0.0
        %3913 = vmatprep.subr.mxu0 0.0
        %3914 = vmatpush1.msra.mxu0 0.0
        %3915 = vmatprep.subr.mxu0 0.0
        %3916 = vmatpush1.msra.mxu0 0.0
        %3917 = vmatprep.subr.mxu0 0.0
        %3918 = vmatpush1.msra.mxu0 0.0
        %3919 = vmatprep.subr.mxu0 0.0
        %3920 = vmatpush1.msra.mxu0 0.0
        %3921 = vmatprep.subr.mxu0 0.0
        %3922 = vmatpush1.msra.mxu0 0.0
        %3923 = vmatprep.subr.mxu0 0.0
        %3924 = vmatpush1.msra.mxu0 0.0
        %3925 = vmatprep.subr.mxu0 0.0
        %3926 = vmatpush1.msra.mxu0 0.0
        %3927 = vmatprep.subr.mxu0 0.0
        %3928 = vmatpush1.msra.mxu0 0.0
        %3929 = vmatprep.subr.mxu0 0.0
        %3930 = vmatpush1.msra.mxu0 0.0
        %3931 = vmatprep.subr.mxu0 0.0
        %3932 = vmatpush1.msra.mxu0 0.0
        %3933 = vmatprep.subr.mxu0 0.0
        %3934 = vmatpush1.msra.mxu0 0.0
        %3935 = vmatprep.subr.mxu0 0.0
        %3936 = vmatpush1.msra.mxu0 0.0
        %3937 = vmatprep.subr.mxu0 0.0
        %3938 = vmatpush1.msra.mxu0 0.0
        %3939 = vmatprep.subr.mxu0 0.0
        %3940 = vmatpush1.msra.mxu0 0.0
        %3941 = vmatprep.subr.mxu0 0.0
        %3942 = vmatpush1.msra.mxu0 0.0
        %3943 = vmatprep.subr.mxu0 0.0
        %3944 = vmatpush1.msra.mxu0 0.0
        %3945 = vmatprep.subr.mxu0 0.0
        %3946 = vmatpush1.msra.mxu0 0.0
        %3947 = vmatprep.subr.mxu0 0.0
        %3948 = vmatpush1.msra.mxu0 0.0
        %3949 = vmatprep.subr.mxu0 0.0
        %3950 = vmatpush1.msra.mxu0 0.0
        %3951 = vmatprep.subr.mxu0 0.0
        %3952 = vmatpush1.msra.mxu0 0.0
        %3953 = vmatprep.subr.mxu0 0.0
        %3954 = vmatpush1.msra.mxu0 0.0
        %3955 = vmatprep.mubr.f32.mxu0 0.0
        %3956 = vmatmul.mubr.f32.gmra.mrb[0].mxu0 %v3810
        %v3957 = vpop.f32.mrb[0].mxu0
        %v3958 = vadd.f32 0.0, %v3957
        %v3959 = vpop.f32.mrb[0].mxu0
        %v3960 = vadd.f32 0.0, %v3959
        %3961 = vdwg.mxu0
        %v3962 = vadd.f32 %v3788, %v3887
        %v3963 = vadd.f32 %v3789, %v3889
        %v3964 = vadd.f32 %v3790, %v3958
        %v3965 = vadd.f32 %v3791, %v3960
        %s3966 = scalar_lea.vmem %s5, 28
        %v3967 = vld [vmem:[%s3966] sm:$0xf]
        %3968 = vrot.lane.b32.xlu0 %v2783, 79
        %v3969 = vpop.permute.xlu0 %3968
        %3970 = vrot.lane.b32.xlu0 %v2784, 79
        %v3971 = vpop.permute.xlu0 %3970
        %3972 = vrot.lane.b32.xlu0 %v2785, 79
        %v3973 = vpop.permute.xlu0 %3972
        %3974 = vrot.lane.b32.xlu0 %v2786, 79
        %v3975 = vpop.permute.xlu0 %3974
        %3976 = vrot.lane.b32.xlu0 %v2787, 79
        %v3977 = vpop.permute.xlu0 %3976
        %v3978 = vsel %vm2186, %v3969, %v3971
        %v3979 = vsel %vm2186, %v3971, %v3973
        %v3980 = vsel %vm2186, %v3973, %v3975
        %v3981 = vsel %vm2186, %v3975, %v3977
        %v3983 = vsel %vm487, %v3967, 0
        %v3985 = vsel %vm491, %v3978, 0
        %v3987 = vsel %vm491, %v3979, 0
        %v3989 = vsel %vm491, %v3980, 0
        %v3991 = vsel %vm491, %v3981, 0
        %3993 = vmatprep.subr.mxu0 %v3987
        %3994 = vmatpush1.msra.mxu0 %v3985
        %3995 = vmatprep.subr.mxu0 0.0
        %3996 = vmatpush1.msra.mxu0 0.0
        %3997 = vmatprep.subr.mxu0 0.0
        %3998 = vmatpush1.msra.mxu0 0.0
        %3999 = vmatprep.subr.mxu0 0.0
        %4000 = vmatpush1.msra.mxu0 0.0
        %4001 = vmatprep.subr.mxu0 0.0
        %4002 = vmatpush1.msra.mxu0 0.0
        %4003 = vmatprep.subr.mxu0 0.0
        %4004 = vmatpush1.msra.mxu0 0.0
        %4005 = vmatprep.subr.mxu0 0.0
        %4006 = vmatpush1.msra.mxu0 0.0
        %4007 = vmatprep.subr.mxu0 0.0
        %4008 = vmatpush1.msra.mxu0 0.0
        %4009 = vmatprep.subr.mxu0 0.0
        %4010 = vmatpush1.msra.mxu0 0.0
        %4011 = vmatprep.subr.mxu0 0.0
        %4012 = vmatpush1.msra.mxu0 0.0
        %4013 = vmatprep.subr.mxu0 0.0
        %4014 = vmatpush1.msra.mxu0 0.0
        %4015 = vmatprep.subr.mxu0 0.0
        %4016 = vmatpush1.msra.mxu0 0.0
        %4017 = vmatprep.subr.mxu0 0.0
        %4018 = vmatpush1.msra.mxu0 0.0
        %4019 = vmatprep.subr.mxu0 0.0
        %4020 = vmatpush1.msra.mxu0 0.0
        %4021 = vmatprep.subr.mxu0 0.0
        %4022 = vmatpush1.msra.mxu0 0.0
        %4023 = vmatprep.subr.mxu0 0.0
        %4024 = vmatpush1.msra.mxu0 0.0
        %4025 = vmatprep.subr.mxu0 0.0
        %4026 = vmatpush1.msra.mxu0 0.0
        %4027 = vmatprep.subr.mxu0 0.0
        %4028 = vmatpush1.msra.mxu0 0.0
        %4029 = vmatprep.subr.mxu0 0.0
        %4030 = vmatpush1.msra.mxu0 0.0
        %4031 = vmatprep.subr.mxu0 0.0
        %4032 = vmatpush1.msra.mxu0 0.0
        %4033 = vmatprep.subr.mxu0 0.0
        %4034 = vmatpush1.msra.mxu0 0.0
        %4035 = vmatprep.subr.mxu0 0.0
        %4036 = vmatpush1.msra.mxu0 0.0
        %4037 = vmatprep.subr.mxu0 0.0
        %4038 = vmatpush1.msra.mxu0 0.0
        %4039 = vmatprep.subr.mxu0 0.0
        %4040 = vmatpush1.msra.mxu0 0.0
        %4041 = vmatprep.subr.mxu0 0.0
        %4042 = vmatpush1.msra.mxu0 0.0
        %4043 = vmatprep.subr.mxu0 0.0
        %4044 = vmatpush1.msra.mxu0 0.0
        %4045 = vmatprep.subr.mxu0 0.0
        %4046 = vmatpush1.msra.mxu0 0.0
        %4047 = vmatprep.subr.mxu0 0.0
        %4048 = vmatpush1.msra.mxu0 0.0
        %4049 = vmatprep.subr.mxu0 0.0
        %4050 = vmatpush1.msra.mxu0 0.0
        %4051 = vmatprep.subr.mxu0 0.0
        %4052 = vmatpush1.msra.mxu0 0.0
        %4053 = vmatprep.subr.mxu0 0.0
        %4054 = vmatpush1.msra.mxu0 0.0
        %4055 = vmatprep.subr.mxu0 0.0
        %4056 = vmatpush1.msra.mxu0 0.0
        %4057 = vmatprep.mubr.f32.mxu0 0.0
        %4058 = vmatmul.mubr.f32.gmra.mrb[0].mxu0 %v3983
        %v4059 = vpop.f32.mrb[0].mxu0
        %v4060 = vadd.f32 0.0, %v4059
        %v4061 = vpop.f32.mrb[0].mxu0
        %v4062 = vadd.f32 0.0, %v4061
        %4063 = vdwg.mxu0
        %4064 = vmatprep.subr.mxu0 %v3991
        %4065 = vmatpush1.msra.mxu0 %v3989
        %4066 = vmatprep.subr.mxu0 0.0
        %4067 = vmatpush1.msra.mxu0 0.0
        %4068 = vmatprep.subr.mxu0 0.0
        %4069 = vmatpush1.msra.mxu0 0.0
        %4070 = vmatprep.subr.mxu0 0.0
        %4071 = vmatpush1.msra.mxu0 0.0
        %4072 = vmatprep.subr.mxu0 0.0
        %4073 = vmatpush1.msra.mxu0 0.0
        %4074 = vmatprep.subr.mxu0 0.0
        %4075 = vmatpush1.msra.mxu0 0.0
        %4076 = vmatprep.subr.mxu0 0.0
        %4077 = vmatpush1.msra.mxu0 0.0
        %4078 = vmatprep.subr.mxu0 0.0
        %4079 = vmatpush1.msra.mxu0 0.0
        %4080 = vmatprep.subr.mxu0 0.0
        %4081 = vmatpush1.msra.mxu0 0.0
        %4082 = vmatprep.subr.mxu0 0.0
        %4083 = vmatpush1.msra.mxu0 0.0
        %4084 = vmatprep.subr.mxu0 0.0
        %4085 = vmatpush1.msra.mxu0 0.0
        %4086 = vmatprep.subr.mxu0 0.0
        %4087 = vmatpush1.msra.mxu0 0.0
        %4088 = vmatprep.subr.mxu0 0.0
        %4089 = vmatpush1.msra.mxu0 0.0
        %4090 = vmatprep.subr.mxu0 0.0
        %4091 = vmatpush1.msra.mxu0 0.0
        %4092 = vmatprep.subr.mxu0 0.0
        %4093 = vmatpush1.msra.mxu0 0.0
        %4094 = vmatprep.subr.mxu0 0.0
        %4095 = vmatpush1.msra.mxu0 0.0
        %4096 = vmatprep.subr.mxu0 0.0
        %4097 = vmatpush1.msra.mxu0 0.0
        %4098 = vmatprep.subr.mxu0 0.0
        %4099 = vmatpush1.msra.mxu0 0.0
        %4100 = vmatprep.subr.mxu0 0.0
        %4101 = vmatpush1.msra.mxu0 0.0
        %4102 = vmatprep.subr.mxu0 0.0
        %4103 = vmatpush1.msra.mxu0 0.0
        %4104 = vmatprep.subr.mxu0 0.0
        %4105 = vmatpush1.msra.mxu0 0.0
        %4106 = vmatprep.subr.mxu0 0.0
        %4107 = vmatpush1.msra.mxu0 0.0
        %4108 = vmatprep.subr.mxu0 0.0
        %4109 = vmatpush1.msra.mxu0 0.0
        %4110 = vmatprep.subr.mxu0 0.0
        %4111 = vmatpush1.msra.mxu0 0.0
        %4112 = vmatprep.subr.mxu0 0.0
        %4113 = vmatpush1.msra.mxu0 0.0
        %4114 = vmatprep.subr.mxu0 0.0
        %4115 = vmatpush1.msra.mxu0 0.0
        %4116 = vmatprep.subr.mxu0 0.0
        %4117 = vmatpush1.msra.mxu0 0.0
        %4118 = vmatprep.subr.mxu0 0.0
        %4119 = vmatpush1.msra.mxu0 0.0
        %4120 = vmatprep.subr.mxu0 0.0
        %4121 = vmatpush1.msra.mxu0 0.0
        %4122 = vmatprep.subr.mxu0 0.0
        %4123 = vmatpush1.msra.mxu0 0.0
        %4124 = vmatprep.subr.mxu0 0.0
        %4125 = vmatpush1.msra.mxu0 0.0
        %4126 = vmatprep.subr.mxu0 0.0
        %4127 = vmatpush1.msra.mxu0 0.0
        %4128 = vmatprep.mubr.f32.mxu0 0.0
        %4129 = vmatmul.mubr.f32.gmra.mrb[0].mxu0 %v3983
        %v4130 = vpop.f32.mrb[0].mxu0
        %v4131 = vadd.f32 0.0, %v4130
        %v4132 = vpop.f32.mrb[0].mxu0
        %v4133 = vadd.f32 0.0, %v4132
        %4134 = vdwg.mxu0
        %v4135 = vadd.f32 %v3962, %v4060
        %v4136 = vadd.f32 %v3963, %v4062
        %v4137 = vadd.f32 %v3964, %v4131
        %v4138 = vadd.f32 %v3965, %v4133
        %s4139 = scalar_lea.vmem %s5, 32
        %v4140 = vld [vmem:[%s4139] sm:$0xf]
        %4141 = vrot.lane.b32.xlu0 %v2783, 78
        %v4142 = vpop.permute.xlu0 %4141
        %4143 = vrot.lane.b32.xlu0 %v2784, 78
        %v4144 = vpop.permute.xlu0 %4143
        %4145 = vrot.lane.b32.xlu0 %v2785, 78
        %v4146 = vpop.permute.xlu0 %4145
        %4147 = vrot.lane.b32.xlu0 %v2786, 78
        %v4148 = vpop.permute.xlu0 %4147
        %4149 = vrot.lane.b32.xlu0 %v2787, 78
        %v4150 = vpop.permute.xlu0 %4149
        %v4151 = vsel %vm2433, %v4142, %v4144
        %v4152 = vsel %vm2433, %v4144, %v4146
        %v4153 = vsel %vm2433, %v4146, %v4148
        %v4154 = vsel %vm2433, %v4148, %v4150
        %v4156 = vsel %vm487, %v4140, 0
        %v4158 = vsel %vm491, %v4151, 0
        %v4160 = vsel %vm491, %v4152, 0
        %v4162 = vsel %vm491, %v4153, 0
        %v4164 = vsel %vm491, %v4154, 0
        %4166 = vmatprep.subr.mxu0 %v4160
        %4167 = vmatpush1.msra.mxu0 %v4158
        %4168 = vmatprep.subr.mxu0 0.0
        %4169 = vmatpush1.msra.mxu0 0.0
        %4170 = vmatprep.subr.mxu0 0.0
        %4171 = vmatpush1.msra.mxu0 0.0
        %4172 = vmatprep.subr.mxu0 0.0
        %4173 = vmatpush1.msra.mxu0 0.0
        %4174 = vmatprep.subr.mxu0 0.0
        %4175 = vmatpush1.msra.mxu0 0.0
        %4176 = vmatprep.subr.mxu0 0.0
        %4177 = vmatpush1.msra.mxu0 0.0
        %4178 = vmatprep.subr.mxu0 0.0
        %4179 = vmatpush1.msra.mxu0 0.0
        %4180 = vmatprep.subr.mxu0 0.0
        %4181 = vmatpush1.msra.mxu0 0.0
        %4182 = vmatprep.subr.mxu0 0.0
        %4183 = vmatpush1.msra.mxu0 0.0
        %4184 = vmatprep.subr.mxu0 0.0
        %4185 = vmatpush1.msra.mxu0 0.0
        %4186 = vmatprep.subr.mxu0 0.0
        %4187 = vmatpush1.msra.mxu0 0.0
        %4188 = vmatprep.subr.mxu0 0.0
        %4189 = vmatpush1.msra.mxu0 0.0
        %4190 = vmatprep.subr.mxu0 0.0
        %4191 = vmatpush1.msra.mxu0 0.0
        %4192 = vmatprep.subr.mxu0 0.0
        %4193 = vmatpush1.msra.mxu0 0.0
        %4194 = vmatprep.subr.mxu0 0.0
        %4195 = vmatpush1.msra.mxu0 0.0
        %4196 = vmatprep.subr.mxu0 0.0
        %4197 = vmatpush1.msra.mxu0 0.0
        %4198 = vmatprep.subr.mxu0 0.0
        %4199 = vmatpush1.msra.mxu0 0.0
        %4200 = vmatprep.subr.mxu0 0.0
        %4201 = vmatpush1.msra.mxu0 0.0
        %4202 = vmatprep.subr.mxu0 0.0
        %4203 = vmatpush1.msra.mxu0 0.0
        %4204 = vmatprep.subr.mxu0 0.0
        %4205 = vmatpush1.msra.mxu0 0.0
        %4206 = vmatprep.subr.mxu0 0.0
        %4207 = vmatpush1.msra.mxu0 0.0
        %4208 = vmatprep.subr.mxu0 0.0
        %4209 = vmatpush1.msra.mxu0 0.0
        %4210 = vmatprep.subr.mxu0 0.0
        %4211 = vmatpush1.msra.mxu0 0.0
        %4212 = vmatprep.subr.mxu0 0.0
        %4213 = vmatpush1.msra.mxu0 0.0
        %4214 = vmatprep.subr.mxu0 0.0
        %4215 = vmatpush1.msra.mxu0 0.0
        %4216 = vmatprep.subr.mxu0 0.0
        %4217 = vmatpush1.msra.mxu0 0.0
        %4218 = vmatprep.subr.mxu0 0.0
        %4219 = vmatpush1.msra.mxu0 0.0
        %4220 = vmatprep.subr.mxu0 0.0
        %4221 = vmatpush1.msra.mxu0 0.0
        %4222 = vmatprep.subr.mxu0 0.0
        %4223 = vmatpush1.msra.mxu0 0.0
        %4224 = vmatprep.subr.mxu0 0.0
        %4225 = vmatpush1.msra.mxu0 0.0
        %4226 = vmatprep.subr.mxu0 0.0
        %4227 = vmatpush1.msra.mxu0 0.0
        %4228 = vmatprep.subr.mxu0 0.0
        %4229 = vmatpush1.msra.mxu0 0.0
        %4230 = vmatprep.mubr.f32.mxu0 0.0
        %4231 = vmatmul.mubr.f32.gmra.mrb[0].mxu0 %v4156
        %v4232 = vpop.f32.mrb[0].mxu0
        %v4233 = vadd.f32 0.0, %v4232
        %v4234 = vpop.f32.mrb[0].mxu0
        %v4235 = vadd.f32 0.0, %v4234
        %4236 = vdwg.mxu0
        %4237 = vmatprep.subr.mxu0 %v4164
        %4238 = vmatpush1.msra.mxu0 %v4162
        %4239 = vmatprep.subr.mxu0 0.0
        %4240 = vmatpush1.msra.mxu0 0.0
        %4241 = vmatprep.subr.mxu0 0.0
        %4242 = vmatpush1.msra.mxu0 0.0
        %4243 = vmatprep.subr.mxu0 0.0
        %4244 = vmatpush1.msra.mxu0 0.0
        %4245 = vmatprep.subr.mxu0 0.0
        %4246 = vmatpush1.msra.mxu0 0.0
        %4247 = vmatprep.subr.mxu0 0.0
        %4248 = vmatpush1.msra.mxu0 0.0
        %4249 = vmatprep.subr.mxu0 0.0
        %4250 = vmatpush1.msra.mxu0 0.0
        %4251 = vmatprep.subr.mxu0 0.0
        %4252 = vmatpush1.msra.mxu0 0.0
        %4253 = vmatprep.subr.mxu0 0.0
        %4254 = vmatpush1.msra.mxu0 0.0
        %4255 = vmatprep.subr.mxu0 0.0
        %4256 = vmatpush1.msra.mxu0 0.0
        %4257 = vmatprep.subr.mxu0 0.0
        %4258 = vmatpush1.msra.mxu0 0.0
        %4259 = vmatprep.subr.mxu0 0.0
        %4260 = vmatpush1.msra.mxu0 0.0
        %4261 = vmatprep.subr.mxu0 0.0
        %4262 = vmatpush1.msra.mxu0 0.0
        %4263 = vmatprep.subr.mxu0 0.0
        %4264 = vmatpush1.msra.mxu0 0.0
        %4265 = vmatprep.subr.mxu0 0.0
        %4266 = vmatpush1.msra.mxu0 0.0
        %4267 = vmatprep.subr.mxu0 0.0
        %4268 = vmatpush1.msra.mxu0 0.0
        %4269 = vmatprep.subr.mxu0 0.0
        %4270 = vmatpush1.msra.mxu0 0.0
        %4271 = vmatprep.subr.mxu0 0.0
        %4272 = vmatpush1.msra.mxu0 0.0
        %4273 = vmatprep.subr.mxu0 0.0
        %4274 = vmatpush1.msra.mxu0 0.0
        %4275 = vmatprep.subr.mxu0 0.0
        %4276 = vmatpush1.msra.mxu0 0.0
        %4277 = vmatprep.subr.mxu0 0.0
        %4278 = vmatpush1.msra.mxu0 0.0
        %4279 = vmatprep.subr.mxu0 0.0
        %4280 = vmatpush1.msra.mxu0 0.0
        %4281 = vmatprep.subr.mxu0 0.0
        %4282 = vmatpush1.msra.mxu0 0.0
        %4283 = vmatprep.subr.mxu0 0.0
        %4284 = vmatpush1.msra.mxu0 0.0
        %4285 = vmatprep.subr.mxu0 0.0
        %4286 = vmatpush1.msra.mxu0 0.0
        %4287 = vmatprep.subr.mxu0 0.0
        %4288 = vmatpush1.msra.mxu0 0.0
        %4289 = vmatprep.subr.mxu0 0.0
        %4290 = vmatpush1.msra.mxu0 0.0
        %4291 = vmatprep.subr.mxu0 0.0
        %4292 = vmatpush1.msra.mxu0 0.0
        %4293 = vmatprep.subr.mxu0 0.0
        %4294 = vmatpush1.msra.mxu0 0.0
        %4295 = vmatprep.subr.mxu0 0.0
        %4296 = vmatpush1.msra.mxu0 0.0
        %4297 = vmatprep.subr.mxu0 0.0
        %4298 = vmatpush1.msra.mxu0 0.0
        %4299 = vmatprep.subr.mxu0 0.0
        %4300 = vmatpush1.msra.mxu0 0.0
        %4301 = vmatprep.mubr.f32.mxu0 0.0
        %4302 = vmatmul.mubr.f32.gmra.mrb[0].mxu0 %v4156
        %v4303 = vpop.f32.mrb[0].mxu0
        %v4304 = vadd.f32 0.0, %v4303
        %v4305 = vpop.f32.mrb[0].mxu0
        %v4306 = vadd.f32 0.0, %v4305
        %4307 = vdwg.mxu0
        %v4308 = vadd.f32 %v4135, %v4233
        %v4309 = vadd.f32 %v4136, %v4235
        %v4310 = vadd.f32 %v4137, %v4304
        %v4311 = vadd.f32 %v4138, %v4306
        %v4312 = vld [vmem:[%s7] sm:$0xf]
        %4314 = vset.pattern.permute.xlu0 0
        %4315 = vperm.xlu0 %4314, %v4312
        %v4316 = vpop.permute.xlu0 %4315
        %v4318 = vadd.f32 %v4308, %v4316
        %v4319 = vadd.f32 %v4309, %v4316
        %v4320 = vadd.f32 %v4310, %v4316
        %v4321 = vadd.f32 %v4311, %v4316
        %v4322 = vld [vmem:[%s375] sm:$0xf]
        %4324 = vset.pattern.permute.xlu0 0
        %4325 = vperm.xlu0 %4324, %v4322
        %v4326 = vpop.permute.xlu0 %4325
        %v4328 = vmul.f32 %v4318, %v4326
        %v4329 = vmul.f32 %v4319, %v4326
        %v4330 = vmul.f32 %v4320, %v4326
        %v4331 = vmul.f32 %v4321, %v4326
        %v4332 = vmul.f32 %v4328, %v460
        %v4333 = vmul.f32 %v4329, %v461
        %v4334 = vmul.f32 %v4330, %v462
        %v4335 = vmul.f32 %v4331, %v463
        %v4336 = vsel %vm491, %v4332, 0.0
        %v4337 = vsel %vm491, %v4333, 0.0
        %v4338 = vadd.f32 %v4336, %v4337
        %v4339 = vsel %vm491, %v4334, 0.0
        %v4340 = vadd.f32 %v4338, %v4339
        %vm4341 = vcmask 781312
        %v4342 = vsel %vm4341, %v4335, 0.0
        %v4343 = vadd.f32 %v4340, %v4342
        %4344 = vadd.xlane.f32.xlu0 %v4343
        %v4345 = vpop.xlane.xlu0 %4344
        %v4346 = vrot.slane %v4345, 4
        %v4347 = vadd.f32 %v4345, %v4346
        %v4348 = vrot.slane %v4347, 2
        %v4349 = vadd.f32 %v4347, %v4348
        %v4350 = vrot.slane %v4349, 1
        %v4351 = vadd.f32 %v4349, %v4350
        %s4352 = vtos %v4351
        %v4353 = vstv %s4352
        %v4354 = vrcp.pop 1600.0
        %v4355 = vmul.f32 %v4353, %v4354
        %v4356 = vsub.f32 %v4332, %v4355
        %v4357 = vsub.f32 %v4333, %v4355
        %v4358 = vsub.f32 %v4334, %v4355
        %v4359 = vsub.f32 %v4335, %v4355
        %v4360 = vmul.f32 %v4356, %v460
        %v4361 = vmul.f32 %v4357, %v461
        %v4362 = vmul.f32 %v4358, %v462
        %v4363 = vmul.f32 %v4359, %v463
        %v4364 = vmul.f32 %v4360, %v4360
        %v4365 = vmul.f32 %v4361, %v4361
        %v4366 = vmul.f32 %v4362, %v4362
        %v4367 = vmul.f32 %v4363, %v4363
        %v4368 = vsel %vm491, %v4364, 0.0
        %v4369 = vsel %vm491, %v4365, 0.0
        %v4370 = vadd.f32 %v4368, %v4369
        %v4371 = vsel %vm491, %v4366, 0.0
        %v4372 = vadd.f32 %v4370, %v4371
        %v4373 = vsel %vm4341, %v4367, 0.0
        %v4374 = vadd.f32 %v4372, %v4373
        %4375 = vadd.xlane.f32.xlu0 %v4374
        %v4376 = vpop.xlane.xlu0 %4375
        %v4377 = vrot.slane %v4376, 4
        %v4378 = vadd.f32 %v4376, %v4377
        %v4379 = vrot.slane %v4378, 2
        %v4380 = vadd.f32 %v4378, %v4379
        %v4381 = vrot.slane %v4380, 1
        %v4382 = vadd.f32 %v4380, %v4381
        %s4383 = vtos %v4382
        %v4384 = vstv %s4383
        %v4385 = vrcp.pop 1599.0
        %v4386 = vmul.f32 %v4384, %v4385
        %v4387 = vrsqrt.pop %v4386
        %v4390 = vunpack.c.l.s4 1966171168
        %v4391 = vunpack.c.0.s8 %v4390
        %v4392 = vlaneseq
        %v4393 = vshrl.u32 %v4392, 7
        %v4394 = vsub.s32 %v4391, %v4393
        %v4395 = vrot.slane %v383, %v4394
        %v4396 = vcombine.high %v4395, %v4395
        %v4398 = vunpack.c.l.s4 1966171168
        %v4399 = vunpack.c.0.s8 %v4398
        %v4400 = vlaneseq
        %v4401 = vshrl.u32 %v4400, 7
        %v4402 = vsub.s32 %v4399, %v4401
        %v4403 = vrot.slane %v4396, %v4402
        %v4405 = vmul.f32 %v382, %v4403
        %v4406 = vsel %vm2755, %v4405, 0.0
        %4407 = vadd.xlane.f32.xlu0 %v4406
        %v4408 = vpop.xlane.xlu0 %4407
        %v4409 = vrot.slane %v4408, 4
        %v4410 = vadd.f32 %v4408, %v4409
        %v4411 = vrot.slane %v4410, 2
        %v4412 = vadd.f32 %v4410, %v4411
        %v4413 = vrot.slane %v4412, 1
        %v4414 = vadd.f32 %v4412, %v4413
        %s4415 = vtos %v4414
        %v4416 = vstv %s4415
        %v4417 = vtanh.pop %v4416
        %v4418 = vmul.f32 %v4360, %v4387
        %v4419 = vmul.f32 %v4361, %v4387
        %v4420 = vmul.f32 %v4362, %v4387
        %v4421 = vmul.f32 %v4363, %v4387
        %v4422 = vadd.f32 %v4418, %v4417
        %v4423 = vadd.f32 %v4419, %v4417
        %v4424 = vadd.f32 %v4420, %v4417
        %v4425 = vadd.f32 %v4421, %v4417
        %v4426 = vmul.f32 %v4422, %v460
        %v4427 = vmul.f32 %v4423, %v461
        %v4428 = vmul.f32 %v4424, %v462
        %v4429 = vmul.f32 %v4425, %v463
        %v4434 = vadd.f32 %v4426, %v2434
        %v4435 = vadd.f32 %v4427, %v2435
        %v4436 = vadd.f32 %v4428, %v2436
        %v4437 = vadd.f32 %v4429, %v2437
        %v4442 = vcombine.low %v4434, %v4435
        %v4443 = vcombine.low %v4436, %v4437
        %4446 = vst [vmem:[%s362] sm:$0xff] %v4442
        %vm4447 = vcmask 785412
        %vm4448 = vmor %vm4447, %vm491
        %4449 = vst.msk [vmem:[%s362 + $0x8] sm:$0xff] %vm4448, %v4443
        %s4450 = sand.u32 %s240, 1
        %s4451 = scalar_lea.sflag [#allocation3], %s4450
        %s4452 = sand.u32 %s240, 1
        %s4453 = smul.addr %s4452, 16
        %s4454 = scalar_lea.vmem [#allocation2], %s4453
        // Predicated region
        $region57: #{tpu_custom_call.1} parent=55 // pred_check
          %p4455 = pneg %p250
        $region58: #{tpu_custom_call.1} parent=55 // pred_check_branch
          %4457 = sbr.rel (%p4455) target = $region60
        $region59: #{tpu_custom_call.1} parent=55 // pred_region
          %s4459 = ssub.s32 256, 256
          %4460 = vsyncadd %s4451, %s4459
          %s4461 = smul.addr %s23, 4
          %s4462 = smul.addr %s4461, 64
          %s4463 = scalar_lea.hbm %s9, %s4462
          %s4465 = sshll.u32 %s4454, 4
          %s4466 = int_to_ptr.vmem [resolvable:$true] %s4465
          %4468 = dma.vmem_to_hbm [thread:$0]  %s4466, 256, %s4463, %s4451
        $region60: #{tpu_custom_call.1} parent=55 // pred_fallthru
          _
      $region56: #{tpu_custom_call.1} parent=5 // pred_fallthru
        _
      %p4469 = scmp.le.s32.totalorder 2, %s18
      // Predicated region
      $region61: #{tpu_custom_call.1} parent=5 // pred_check
        %p4470 = pneg %p4469
      $region62: #{tpu_custom_call.1} parent=5 // pred_check_branch
        %4472 = sbr.rel (%p4470) target = $region64
      $region63: #{tpu_custom_call.1} parent=5 // pred_region
        %s4473 = ssub.s32 %s18, 2
        // Predicated region
        $region65: #{tpu_custom_call.1} parent=63 // pred_check
          %p4474 = pneg %p256
        $region66: #{tpu_custom_call.1} parent=63 // pred_check_branch
          %4476 = sbr.rel (%p4474) target = $region68
        $region67: #{tpu_custom_call.1} parent=63 // pred_region
          %s4477 = sand.u32 %s241, 1
          %s4478 = scalar_lea.sflag [#allocation3], %s4477
          %s4479 = sand.u32 %s241, 1
          %s4480 = smul.addr %s4479, 16
          %s4481 = scalar_lea.vmem [#allocation2], %s4480
          %4482 = dma.done %s4478, 256
        $region68: #{tpu_custom_call.1} parent=63 // pred_fallthru
          _
      $region64: #{tpu_custom_call.1} parent=5 // pred_fallthru
        _
    $region6: #{tpu_custom_call.1} parent=1 // loop_footer
      %s22 = sadd.s32 1, %s18
    $region7: #{tpu_custom_call.1} parent=1 // loop_footer_branch
      %17 = sbr.rel target = $region3
    $region8: #{tpu_custom_call.1} parent=1 // loop_exit
      _
    %4483 = vsyncpa [#allocation3], 1
    %s4484 = scalar_lea.sflag [#allocation3], 1
    %4485 = vsyncpa %s4484, 1

</llo_original>
